<compile_context>
chip_gen: v7x
topology: tpu7x:2x2x1
jax: 0.10.0
libtpu: 0.0.40
codegen_flags: <defaults>
</compile_context>

<pallas_src>
import jax
import jax.numpy as jnp
from jax.experimental import pallas as pl
from jax.experimental.pallas import tpu as pltpu


HIDDEN_DIM = 256          # self.hidden_dim in the torch module
FC_WIDTH = 1024           # fc1/fc2 width


def _round_up(x, m):
    return ((x + m - 1) // m) * m


def _mlp_encoder_kernel(
    x_ref,                 # (TB, d_in)      bf16
    w1_ref, b1_ref,        # (d_in, 1024) bf16, (1, 1024) f32
    w2_ref, b2_ref,        # (1024, 1024) bf16, (1, 1024) f32
    w3_ref, b3_ref,        # (1024, 256)  bf16, (1, 256)  f32
    wh_ref, bh_ref,        # (256, head_w) bf16, (1, head_w) f32  (fused mu|logvar)
    z_ref, head_ref,       # (TB, 256) f32, (TB, head_w) f32
):
    # fc1 + ReLU (bf16 matmul, f32 accumulate / epilogue)
    h = jnp.dot(x_ref[...], w1_ref[...], preferred_element_type=jnp.float32)
    h = jnp.maximum(h + b1_ref[...], 0.0)

    # fc2 + ReLU
    h = jnp.dot(h.astype(jnp.bfloat16), w2_ref[...],
                preferred_element_type=jnp.float32)
    h = jnp.maximum(h + b2_ref[...], 0.0)

    # fc3 (no activation) -> hidden z
    z = jnp.dot(h.astype(jnp.bfloat16), w3_ref[...],
                preferred_element_type=jnp.float32) + b3_ref[...]
    z_ref[...] = z.astype(z_ref.dtype)

    # fused dense_mu | dense_logvar head (lane-padded to head_w)
    head = jnp.dot(z.astype(jnp.bfloat16), wh_ref[...],
                   preferred_element_type=jnp.float32)
    head_ref[...] = (head + bh_ref[...]).astype(head_ref.dtype)


def mlp_encoder_forward(x_nchw, params, latent_dim):
    """x_nchw: (B, 1, H, W).  Returns dict mirroring the torch module output."""
    B, C, H, W = x_nchw.shape
    assert C == 1, "torch forward only reshape-consistent for C == 1"
    d_in = H * W

    # TODO(synk): for very large flattened images (d_in >= ~4096) add a K-reduction
    # grid axis for fc1 (tiled w1 + accumulator scratch) so w1 never has to be
    # fully resident in VMEM; not needed for the small image sizes exercised here.

    # torch .view(-1, H*W) == row-major reshape
    x2d = x_nchw.reshape(B * C, d_in)

    # ---- batch tiling ------------------------------------------------------
    TB = 256 if B >= 256 else _round_up(max(B, 1), 8)
    B_pad = _round_up(B, TB)
    if B_pad != B:
        x2d = jnp.pad(x2d, ((0, B_pad - B), (0, 0)))
    x2d = x2d.astype(jnp.bfloat16)
    n_tiles = B_pad // TB

    # ---- parameter prep: bf16 weights, fused + lane-padded head ------------
    L = latent_dim
    head_w = _round_up(2 * L, 128)

    w1 = params["w1"].astype(jnp.bfloat16)
    w2 = params["w2"].astype(jnp.bfloat16)
    w3 = params["w3"].astype(jnp.bfloat16)
    wh = jnp.concatenate([params["wmu"], params["wlv"]], axis=1)
    wh = jnp.pad(wh, ((0, 0), (0, head_w - 2 * L))).astype(jnp.bfloat16)

    b1 = params["b1"].astype(jnp.float32)
    b2 = params["b2"].astype(jnp.float32)
    b3 = params["b3"].astype(jnp.float32)
    bh = jnp.concatenate([params["bmu"], params["blv"]], axis=1)
    bh = jnp.pad(bh, ((0, 0), (0, head_w - 2 * L))).astype(jnp.float32)

    # ---- specs -------------------------------------------------------------
    def resident(shape):
        # whole-array block, pinned at the origin -> stays in VMEM across steps
        return pl.BlockSpec(shape, lambda i: (0, 0))

    in_specs = [
        pl.BlockSpec((TB, d_in), lambda i: (i, 0)),          # x tile (pipelined)
        resident((d_in, FC_WIDTH)), resident((1, FC_WIDTH)),  # fc1
        resident((FC_WIDTH, FC_WIDTH)), resident((1, FC_WIDTH)),  # fc2
        resident((FC_WIDTH, HIDDEN_DIM)), resident((1, HIDDEN_DIM)),  # fc3
        resident((HIDDEN_DIM, head_w)), resident((1, head_w)),  # fused heads
    ]
    out_specs = (
        pl.BlockSpec((TB, HIDDEN_DIM), lambda i: (i, 0)),
        pl.BlockSpec((TB, head_w), lambda i: (i, 0)),
    )
    out_shapes = (
        jax.ShapeDtypeStruct((B_pad, HIDDEN_DIM), jnp.float32),  # z (hidden)
        jax.ShapeDtypeStruct((B_pad, head_w), jnp.float32),      # mu|logvar (padded)
    )

    # ---- VMEM budget (sized from footprint, clamped for v7x's 64 MiB) ------
    est_bytes = (
        2 * (d_in * FC_WIDTH + FC_WIDTH * FC_WIDTH
             + FC_WIDTH * HIDDEN_DIM + HIDDEN_DIM * head_w)   # resident bf16 weights
        + 4 * (2 * FC_WIDTH + HIDDEN_DIM + head_w)            # f32 biases
        + 2 * 2 * TB * d_in                                   # 2x-buffered bf16 x tile
        + 2 * 4 * TB * (HIDDEN_DIM + head_w)                  # 2x-buffered f32 outputs
        + 3 * 4 * TB * FC_WIDTH                               # live f32 intermediates
    )
    vmem_limit = min(48 << 20, _round_up(est_bytes + (8 << 20), 1 << 20))

    z_full, head_full = pl.pallas_call(
        _mlp_encoder_kernel,
        out_shape=out_shapes,
        grid=(n_tiles,),
        in_specs=in_specs,
        out_specs=out_specs,
        compiler_params=pltpu.CompilerParams(
            dimension_semantics=("parallel",),
            vmem_limit_bytes=vmem_limit,
        ),
    )(x2d, w1, b1, w2, b2, w3, b3, wh, bh)

    z = z_full[:B]
    mu = head_full[:B, :L]
    logvar = head_full[:B, L:2 * L]
    return {"continuous": [mu, logvar], "hidden": z}


def init_params(key, d_in, latent_dim):
    """Deterministic synthetic parameters (torch-Linear-like uniform fan-in init)."""
    def linear(k, fan_in, fan_out):
        kw, kb = jax.random.split(k)
        bound = 1.0 / jnp.sqrt(fan_in)
        # stored as (fan_in, fan_out) so the kernel does x @ W (= torch x @ W.T)
        w = jax.random.uniform(kw, (fan_in, fan_out), jnp.float32, -bound, bound)
        b = jax.random.uniform(kb, (1, fan_out), jnp.float32, -bound, bound)
        return w, b

    k1, k2, k3, k4, k5 = jax.random.split(key, 5)
    w1, b1 = linear(k1, d_in, FC_WIDTH)
    w2, b2 = linear(k2, FC_WIDTH, FC_WIDTH)
    w3, b3 = linear(k3, FC_WIDTH, HIDDEN_DIM)
    wmu, bmu = linear(k4, HIDDEN_DIM, latent_dim)
    wlv, blv = linear(k5, HIDDEN_DIM, latent_dim)
    return dict(w1=w1, b1=b1, w2=w2, b2=b2, w3=w3, b3=b3,
                wmu=wmu, bmu=bmu, wlv=wlv, blv=blv)


if __name__ == "__main__":
    # input_dim = (C, H, W) = (1, 16, 16) -> flattened feature dim 256
    B, C, H, W = 2, 1, 16, 16
    latent_dim_continuous = 8

    key = jax.random.PRNGKey(0)
    kx, kp = jax.random.split(key)

    x = jax.random.normal(kx, (B, C, H, W), dtype=jnp.float32)
    params = init_params(kp, H * W, latent_dim_continuous)

    latent_dist = mlp_encoder_forward(x, params, latent_dim_continuous)
    jax.block_until_ready(latent_dist)

    mu, logvar = latent_dist["continuous"]
    z = latent_dist["hidden"]
    assert z.shape == (B, HIDDEN_DIM)
    assert mu.shape == (B, latent_dim_continuous)
    assert logvar.shape == (B, latent_dim_continuous)

    # sanity check against a plain-JAX reference with matching bf16/f32 mixed precision
    bf16 = jnp.bfloat16
    xb = x.reshape(B, -1).astype(bf16)
    h_ref = jnp.maximum(
        jnp.dot(xb, params["w1"].astype(bf16), preferred_element_type=jnp.float32)
        + params["b1"], 0.0)
    h_ref = jnp.maximum(
        jnp.dot(h_ref.astype(bf16), params["w2"].astype(bf16),
                preferred_element_type=jnp.float32) + params["b2"], 0.0)
    z_ref = jnp.dot(h_ref.astype(bf16), params["w3"].astype(bf16),
                    preferred_element_type=jnp.float32) + params["b3"]
    mu_ref = jnp.dot(z_ref.astype(bf16), params["wmu"].astype(bf16),
                     preferred_element_type=jnp.float32) + params["bmu"]
    lv_ref = jnp.dot(z_ref.astype(bf16), params["wlv"].astype(bf16),
                     preferred_element_type=jnp.float32) + params["blv"]

    assert jnp.allclose(z, z_ref, atol=2e-2, rtol=2e-2)
    assert jnp.allclose(mu, mu_ref, atol=2e-2, rtol=2e-2)
    assert jnp.allclose(logvar, lv_ref, atol=2e-2, rtol=2e-2)

    print("KERNEL_OK")
</pallas_src>

<mosaic_0001>
module attributes {stable_mosaic.version = 11 : i64} {
  func.func @_mlp_encoder_kernel(%arg0: i32, %arg1: memref<8x256xbf16, #tpu.memory_space<vmem>>, %arg2: memref<256x1024xbf16, #tpu.memory_space<vmem>>, %arg3: memref<1x1024xf32, #tpu.memory_space<vmem>>, %arg4: memref<1024x1024xbf16, #tpu.memory_space<vmem>>, %arg5: memref<1x1024xf32, #tpu.memory_space<vmem>>, %arg6: memref<1024x256xbf16, #tpu.memory_space<vmem>>, %arg7: memref<1x256xf32, #tpu.memory_space<vmem>>, %arg8: memref<256x128xbf16, #tpu.memory_space<vmem>>, %arg9: memref<1x128xf32, #tpu.memory_space<vmem>>, %arg10: memref<8x256xf32, #tpu.memory_space<vmem>>, %arg11: memref<8x128xf32, #tpu.memory_space<vmem>>) attributes {dimension_semantics = [#tpu.dimension_semantics<parallel>], iteration_bounds = array<i64: 1>, scalar_prefetch = 0 : i64, scratch_operands = 0 : i64, tpu.core_type = #tpu.core_type<tc>, window_params = [{transform_indices = @transform_0, window_bounds = array<i64: 8, 256>}, {pipeline_mode = #tpu.pipeline_mode<synchronous>, transform_indices = @transform_1, window_bounds = array<i64: 256, 1024>}, {pipeline_mode = #tpu.pipeline_mode<synchronous>, transform_indices = @transform_2, window_bounds = array<i64: 1, 1024>}, {pipeline_mode = #tpu.pipeline_mode<synchronous>, transform_indices = @transform_3, window_bounds = array<i64: 1024, 1024>}, {pipeline_mode = #tpu.pipeline_mode<synchronous>, transform_indices = @transform_4, window_bounds = array<i64: 1, 1024>}, {pipeline_mode = #tpu.pipeline_mode<synchronous>, transform_indices = @transform_5, window_bounds = array<i64: 1024, 256>}, {pipeline_mode = #tpu.pipeline_mode<synchronous>, transform_indices = @transform_6, window_bounds = array<i64: 1, 256>}, {pipeline_mode = #tpu.pipeline_mode<synchronous>, transform_indices = @transform_7, window_bounds = array<i64: 256, 128>}, {pipeline_mode = #tpu.pipeline_mode<synchronous>, transform_indices = @transform_8, window_bounds = array<i64: 1, 128>}, {transform_indices = @transform_9, window_bounds = array<i64: 8, 256>}, {transform_indices = @transform_10, window_bounds = array<i64: 8, 128>}]} {
    %c0 = arith.constant 0 : index
    %c0_0 = arith.constant 0 : index
    %0 = vector.load %arg1[%c0, %c0_0] : memref<8x256xbf16, #tpu.memory_space<vmem>>, vector<8x256xbf16>
    %c0_1 = arith.constant 0 : index
    %c0_2 = arith.constant 0 : index
    %1 = vector.load %arg2[%c0_1, %c0_2] : memref<256x1024xbf16, #tpu.memory_space<vmem>>, vector<256x1024xbf16>
    %cst = arith.constant dense<0.000000e+00> : vector<8x1024xf32>
    %2 = tpu.matmul %0, %1, %cst {dimension_numbers = #tpu.dot_dimension_numbers<[1], [0], [0], [1], [0, 0, 1, 1], [], []>} : vector<8x256xbf16>, vector<256x1024xbf16>, vector<8x1024xf32> -> vector<8x1024xf32>
    %c0_3 = arith.constant 0 : index
    %c0_4 = arith.constant 0 : index
    %3 = vector.load %arg3[%c0_3, %c0_4] : memref<1x1024xf32, #tpu.memory_space<vmem>>, vector<1x1024xf32>
    %4 = vector.broadcast %3 : vector<1x1024xf32> to vector<8x1024xf32>
    %5 = arith.addf %2, %4 : vector<8x1024xf32>
    %cst_5 = arith.constant 0.000000e+00 : f32
    %6 = vector.broadcast %cst_5 : f32 to vector<8x1024xf32>
    %7 = arith.maximumf %5, %6 : vector<8x1024xf32>
    %8 = arith.truncf %7 : vector<8x1024xf32> to vector<8x1024xbf16>
    %c0_6 = arith.constant 0 : index
    %c0_7 = arith.constant 0 : index
    %9 = vector.load %arg4[%c0_6, %c0_7] : memref<1024x1024xbf16, #tpu.memory_space<vmem>>, vector<1024x1024xbf16>
    %cst_8 = arith.constant dense<0.000000e+00> : vector<8x1024xf32>
    %10 = tpu.matmul %8, %9, %cst_8 {dimension_numbers = #tpu.dot_dimension_numbers<[1], [0], [0], [1], [0, 0, 1, 1], [], []>} : vector<8x1024xbf16>, vector<1024x1024xbf16>, vector<8x1024xf32> -> vector<8x1024xf32>
    %c0_9 = arith.constant 0 : index
    %c0_10 = arith.constant 0 : index
    %11 = vector.load %arg5[%c0_9, %c0_10] : memref<1x1024xf32, #tpu.memory_space<vmem>>, vector<1x1024xf32>
    %12 = vector.broadcast %11 : vector<1x1024xf32> to vector<8x1024xf32>
    %13 = arith.addf %10, %12 : vector<8x1024xf32>
    %cst_11 = arith.constant 0.000000e+00 : f32
    %14 = vector.broadcast %cst_11 : f32 to vector<8x1024xf32>
    %15 = arith.maximumf %13, %14 : vector<8x1024xf32>
    %16 = arith.truncf %15 : vector<8x1024xf32> to vector<8x1024xbf16>
    %c0_12 = arith.constant 0 : index
    %c0_13 = arith.constant 0 : index
    %17 = vector.load %arg6[%c0_12, %c0_13] : memref<1024x256xbf16, #tpu.memory_space<vmem>>, vector<1024x256xbf16>
    %cst_14 = arith.constant dense<0.000000e+00> : vector<8x256xf32>
    %18 = tpu.matmul %16, %17, %cst_14 {dimension_numbers = #tpu.dot_dimension_numbers<[1], [0], [0], [1], [0, 0, 1, 1], [], []>} : vector<8x1024xbf16>, vector<1024x256xbf16>, vector<8x256xf32> -> vector<8x256xf32>
    %c0_15 = arith.constant 0 : index
    %c0_16 = arith.constant 0 : index
    %19 = vector.load %arg7[%c0_15, %c0_16] : memref<1x256xf32, #tpu.memory_space<vmem>>, vector<1x256xf32>
    %20 = vector.broadcast %19 : vector<1x256xf32> to vector<8x256xf32>
    %21 = arith.addf %18, %20 : vector<8x256xf32>
    %c0_17 = arith.constant 0 : index
    %c0_18 = arith.constant 0 : index
    %22 = vector.load %arg10[%c0_17, %c0_18] : memref<8x256xf32, #tpu.memory_space<vmem>>, vector<8x256xf32>
    tpu.vector_store %arg10[%c0_17, %c0_18], %21 {strides = array<i32>} : memref<8x256xf32, #tpu.memory_space<vmem>>, vector<8x256xf32>,
    %23 = arith.truncf %21 : vector<8x256xf32> to vector<8x256xbf16>
    %c0_19 = arith.constant 0 : index
    %c0_20 = arith.constant 0 : index
    %24 = vector.load %arg8[%c0_19, %c0_20] : memref<256x128xbf16, #tpu.memory_space<vmem>>, vector<256x128xbf16>
    %cst_21 = arith.constant dense<0.000000e+00> : vector<8x128xf32>
    %25 = tpu.matmul %23, %24, %cst_21 {dimension_numbers = #tpu.dot_dimension_numbers<[1], [0], [0], [1], [0, 0, 1, 1], [], []>} : vector<8x256xbf16>, vector<256x128xbf16>, vector<8x128xf32> -> vector<8x128xf32>
    %c0_22 = arith.constant 0 : index
    %c0_23 = arith.constant 0 : index
    %26 = vector.load %arg9[%c0_22, %c0_23] : memref<1x128xf32, #tpu.memory_space<vmem>>, vector<1x128xf32>
    %27 = vector.broadcast %26 : vector<1x128xf32> to vector<8x128xf32>
    %28 = arith.addf %25, %27 : vector<8x128xf32>
    %c0_24 = arith.constant 0 : index
    %c0_25 = arith.constant 0 : index
    %29 = vector.load %arg11[%c0_24, %c0_25] : memref<8x128xf32, #tpu.memory_space<vmem>>, vector<8x128xf32>
    tpu.vector_store %arg11[%c0_24, %c0_25], %28 {strides = array<i32>} : memref<8x128xf32, #tpu.memory_space<vmem>>, vector<8x128xf32>,
    return
  }
  func.func @transform_0(%arg0: i32) -> (i32, i32) {
    %c0_i32 = arith.constant 0 : i32
    %c0_i32_0 = arith.constant 0 : i32
    return %arg0, %c0_i32 : i32, i32
  }
  func.func @transform_1(%arg0: i32) -> (i32, i32) {
    %c0_i32 = arith.constant 0 : i32
    %c0_i32_0 = arith.constant 0 : i32
    %c0_i32_1 = arith.constant 0 : i32
    return %c0_i32, %c0_i32_0 : i32, i32
  }
  func.func @transform_2(%arg0: i32) -> (i32, i32) {
    %c0_i32 = arith.constant 0 : i32
    %c0_i32_0 = arith.constant 0 : i32
    %c0_i32_1 = arith.constant 0 : i32
    return %c0_i32, %c0_i32_0 : i32, i32
  }
  func.func @transform_3(%arg0: i32) -> (i32, i32) {
    %c0_i32 = arith.constant 0 : i32
    %c0_i32_0 = arith.constant 0 : i32
    %c0_i32_1 = arith.constant 0 : i32
    return %c0_i32, %c0_i32_0 : i32, i32
  }
  func.func @transform_4(%arg0: i32) -> (i32, i32) {
    %c0_i32 = arith.constant 0 : i32
    %c0_i32_0 = arith.constant 0 : i32
    %c0_i32_1 = arith.constant 0 : i32
    return %c0_i32, %c0_i32_0 : i32, i32
  }
  func.func @transform_5(%arg0: i32) -> (i32, i32) {
    %c0_i32 = arith.constant 0 : i32
    %c0_i32_0 = arith.constant 0 : i32
    %c0_i32_1 = arith.constant 0 : i32
    return %c0_i32, %c0_i32_0 : i32, i32
  }
  func.func @transform_6(%arg0: i32) -> (i32, i32) {
    %c0_i32 = arith.constant 0 : i32
    %c0_i32_0 = arith.constant 0 : i32
    %c0_i32_1 = arith.constant 0 : i32
    return %c0_i32, %c0_i32_0 : i32, i32
  }
  func.func @transform_7(%arg0: i32) -> (i32, i32) {
    %c0_i32 = arith.constant 0 : i32
    %c0_i32_0 = arith.constant 0 : i32
    %c0_i32_1 = arith.constant 0 : i32
    return %c0_i32, %c0_i32_0 : i32, i32
  }
  func.func @transform_8(%arg0: i32) -> (i32, i32) {
    %c0_i32 = arith.constant 0 : i32
    %c0_i32_0 = arith.constant 0 : i32
    %c0_i32_1 = arith.constant 0 : i32
    return %c0_i32, %c0_i32_0 : i32, i32
  }
  func.func @transform_9(%arg0: i32) -> (i32, i32) {
    %c0_i32 = arith.constant 0 : i32
    %c0_i32_0 = arith.constant 0 : i32
    return %arg0, %c0_i32 : i32, i32
  }
  func.func @transform_10(%arg0: i32) -> (i32, i32) {
    %c0_i32 = arith.constant 0 : i32
    %c0_i32_0 = arith.constant 0 : i32
    return %arg0, %c0_i32 : i32, i32
  }
}

</mosaic_0001>

<llo_original>
// kernel: tpu_custom_call.1
$region0: #{tpu_custom_call.1}
  #allocation0 [shape = 'u32[]', space=smem, size = 0x4, offset = 0x4, fixed_abs, tag = 'smem constant byte address 0x4 - core index']
  #allocation1 [shape = 'u32[144,128]{1,0:T(1,128)}', space=vmem, size = 0x12000, scoped, tag = 'internal scratch']
  %s0 = inlined_call_operand.hbm [shape: bf16[8,256], index: 0, kind: input, shape index: {}]
  %s1 = inlined_call_operand.hbm [shape: bf16[256,1024], index: 1, kind: input, shape index: {}]
  %s2 = inlined_call_operand.hbm [shape: f32[1,1024], index: 2, kind: input, shape index: {}]
  %s3 = inlined_call_operand.hbm [shape: bf16[1024,1024], index: 3, kind: input, shape index: {}]
  %s4 = inlined_call_operand.hbm [shape: f32[1,1024], index: 4, kind: input, shape index: {}]
  %s5 = inlined_call_operand.hbm [shape: bf16[1024,256], index: 5, kind: input, shape index: {}]
  %s6 = inlined_call_operand.hbm [shape: f32[1,256], index: 6, kind: input, shape index: {}]
  %s7 = inlined_call_operand.hbm [shape: bf16[256,128], index: 7, kind: input, shape index: {}]
  %s8 = inlined_call_operand.hbm [shape: f32[1,128], index: 8, kind: input, shape index: {}]
  %s9 = inlined_call_operand.hbm [shape: f32[8,256], index: 9, kind: output, shape index: {0}]
  %s10 = inlined_call_operand.hbm [shape: f32[8,128], index: 10, kind: output, shape index: {1}]
  %11 = xla_tuple %s9, %s10
  %s12 = sld [smem:[#allocation0]]
  $region90: #{tpu_custom_call.1} parent=0
    _
  %s14 = ssub.s32 1, %s12
  %s15 = scalar_select 0, %s14, %s12
  $region1: #{tpu_custom_call.1} parent=0
    #allocation2 [shape = 'u8[4096]{0}', space=vmem, size = 0x1000, scoped, tag = 'input window, operand 0, single buffered']
    #allocation3 [shape = 's32[1]{0}', space=sflag, size = 0x4, scoped, tag = 'scoped memory for tpu_custom_call.1']
    #allocation4 [shape = 's32[1]{0}', space=sflag, size = 0x4, scoped, tag = 'scoped memory for tpu_custom_call.1']
    #allocation5 [shape = 'u8[524288]{0}', space=vmem, size = 0x80000, scoped, tag = 'input window, operand 1, single buffered']
    #allocation6 [shape = 's32[1]{0}', space=sflag, size = 0x4, scoped, tag = 'scoped memory for tpu_custom_call.1']
    #allocation7 [shape = 'u8[4096]{0}', space=vmem, size = 0x1000, scoped, tag = 'input window, operand 2, single buffered']
    #allocation8 [shape = 'u8[2097152]{0}', space=vmem, size = 0x200000, scoped, tag = 'input window, operand 3, single buffered']
    #allocation9 [shape = 's32[1]{0}', space=sflag, size = 0x4, scoped, tag = 'scoped memory for tpu_custom_call.1']
    #allocation10 [shape = 'u8[4096]{0}', space=vmem, size = 0x1000, scoped, tag = 'input window, operand 4, single buffered']
    #allocation11 [shape = 'u8[524288]{0}', space=vmem, size = 0x80000, scoped, tag = 'input window, operand 5, single buffered']
    #allocation12 [shape = 's32[1]{0}', space=sflag, size = 0x4, scoped, tag = 'scoped memory for tpu_custom_call.1']
    #allocation13 [shape = 'u8[1024]{0}', space=vmem, size = 0x400, scoped, tag = 'input window, operand 6, single buffered']
    #allocation14 [shape = 'u8[65536]{0}', space=vmem, size = 0x10000, scoped, tag = 'input window, operand 7, single buffered']
    #allocation15 [shape = 's32[1]{0}', space=sflag, size = 0x4, scoped, tag = 'scoped memory for tpu_custom_call.1']
    #allocation16 [shape = 'u8[512]{0}', space=vmem, size = 0x400, scoped, tag = 'input window, operand 8, single buffered']
    #allocation17 [shape = 'u8[8192]{0}', space=vmem, size = 0x2000, scoped, tag = 'output window, operand 0, single buffered']
    #allocation18 [shape = 'u8[4096]{0}', space=vmem, size = 0x1000, scoped, tag = 'output window, operand 1, single buffered']
    #allocation19 [shape = 's32[1]{0}', space=sflag, size = 0x4, scoped, tag = 'scoped memory for tpu_custom_call.1']
    %16 = vsyncpa [#allocation3], 0
    %17 = vsyncpa [#allocation6], 0
    %18 = vsyncpa [#allocation9], 0
    %19 = vsyncpa [#allocation12], 0
    %20 = vsyncpa [#allocation15], 0
    %21 = vsyncpa [#allocation4], 0
    %22 = vsyncpa [#allocation19], 0
    // Predicated region
    $region2: #{tpu_custom_call.1} parent=1 // pred_check
      _
    $region3: #{tpu_custom_call.1} parent=1 // pred_check_branch
      %24 = sbr.rel (0) target = $region5
    $region4: #{tpu_custom_call.1} parent=1 // pred_region
      %s26 = ssub.s32 128, 128
      %27 = vsyncadd [#allocation3], %s26
      %s29 = sshll.u32 [#allocation2], 4
      %s30 = int_to_ptr.vmem [resolvable:$true] %s29
      %32 = dma.hbm_to_vmem [thread:$0]  %s0, 128, %s30, [#allocation3]
    $region5: #{tpu_custom_call.1} parent=1 // pred_fallthru
      _
    // Predicated region
    $region6: #{tpu_custom_call.1} parent=1 // pred_check
      _
    $region7: #{tpu_custom_call.1} parent=1 // pred_check_branch
      %34 = sbr.rel (0) target = $region9
    $region8: #{tpu_custom_call.1} parent=1 // pred_region
      %s36 = ssub.s32 16384, 16384
      %37 = vsyncadd [#allocation6], %s36
      %s38 = sshll.u32 [#allocation5], 4
      %s39 = int_to_ptr.vmem [resolvable:$true] %s38
      %44 = dma.hbm_to_vmem [thread:$0]  %s1, 16384, %s39, [#allocation6], 512, 512, 32
    $region9: #{tpu_custom_call.1} parent=1 // pred_fallthru
      _
    // Predicated region
    $region10: #{tpu_custom_call.1} parent=1 // pred_check
      _
    $region11: #{tpu_custom_call.1} parent=1 // pred_check_branch
      %46 = sbr.rel (0) target = $region13
    $region12: #{tpu_custom_call.1} parent=1 // pred_region
      %s48 = ssub.s32 128, 128
      %49 = vsyncadd [#allocation6], %s48
      %s51 = sshll.u32 [#allocation7], 4
      %s52 = int_to_ptr.vmem [resolvable:$true] %s51
      %54 = dma.hbm_to_vmem [thread:$0]  %s2, 128, %s52, [#allocation6]
    $region13: #{tpu_custom_call.1} parent=1 // pred_fallthru
      _
    // Predicated region
    $region14: #{tpu_custom_call.1} parent=1 // pred_check
      _
    $region15: #{tpu_custom_call.1} parent=1 // pred_check_branch
      %56 = sbr.rel (0) target = $region17
    $region16: #{tpu_custom_call.1} parent=1 // pred_region
      %s58 = ssub.s32 65536, 65536
      %59 = vsyncadd [#allocation9], %s58
      %s60 = sshll.u32 [#allocation8], 4
      %s61 = int_to_ptr.vmem [resolvable:$true] %s60
      %66 = dma.hbm_to_vmem [thread:$0]  %s3, 65536, %s61, [#allocation9], 512, 512, 32
    $region17: #{tpu_custom_call.1} parent=1 // pred_fallthru
      _
    // Predicated region
    $region18: #{tpu_custom_call.1} parent=1 // pred_check
      _
    $region19: #{tpu_custom_call.1} parent=1 // pred_check_branch
      %68 = sbr.rel (0) target = $region21
    $region20: #{tpu_custom_call.1} parent=1 // pred_region
      %s70 = ssub.s32 128, 128
      %71 = vsyncadd [#allocation9], %s70
      %s73 = sshll.u32 [#allocation10], 4
      %s74 = int_to_ptr.vmem [resolvable:$true] %s73
      %76 = dma.hbm_to_vmem [thread:$0]  %s4, 128, %s74, [#allocation9]
    $region21: #{tpu_custom_call.1} parent=1 // pred_fallthru
      _
    // Predicated region
    $region22: #{tpu_custom_call.1} parent=1 // pred_check
      _
    $region23: #{tpu_custom_call.1} parent=1 // pred_check_branch
      %78 = sbr.rel (0) target = $region25
    $region24: #{tpu_custom_call.1} parent=1 // pred_region
      %s80 = ssub.s32 16384, 16384
      %81 = vsyncadd [#allocation12], %s80
      %s82 = sshll.u32 [#allocation11], 4
      %s83 = int_to_ptr.vmem [resolvable:$true] %s82
      %88 = dma.hbm_to_vmem [thread:$0]  %s5, 16384, %s83, [#allocation12], 128, 128, 8
    $region25: #{tpu_custom_call.1} parent=1 // pred_fallthru
      _
    // Predicated region
    $region26: #{tpu_custom_call.1} parent=1 // pred_check
      _
    $region27: #{tpu_custom_call.1} parent=1 // pred_check_branch
      %90 = sbr.rel (0) target = $region29
    $region28: #{tpu_custom_call.1} parent=1 // pred_region
      %s92 = ssub.s32 32, 32
      %93 = vsyncadd [#allocation12], %s92
      %s95 = sshll.u32 [#allocation13], 4
      %s96 = int_to_ptr.vmem [resolvable:$true] %s95
      %98 = dma.hbm_to_vmem [thread:$0]  %s6, 32, %s96, [#allocation12]
    $region29: #{tpu_custom_call.1} parent=1 // pred_fallthru
      _
    // Predicated region
    $region30: #{tpu_custom_call.1} parent=1 // pred_check
      _
    $region31: #{tpu_custom_call.1} parent=1 // pred_check_branch
      %100 = sbr.rel (0) target = $region33
    $region32: #{tpu_custom_call.1} parent=1 // pred_region
      %s102 = ssub.s32 2048, 2048
      %103 = vsyncadd [#allocation15], %s102
      %s104 = sshll.u32 [#allocation14], 4
      %s105 = int_to_ptr.vmem [resolvable:$true] %s104
      %110 = dma.hbm_to_vmem [thread:$0]  %s7, 2048, %s105, [#allocation15], 64, 64, 4
    $region33: #{tpu_custom_call.1} parent=1 // pred_fallthru
      _
    // Predicated region
    $region34: #{tpu_custom_call.1} parent=1 // pred_check
      _
    $region35: #{tpu_custom_call.1} parent=1 // pred_check_branch
      %112 = sbr.rel (0) target = $region37
    $region36: #{tpu_custom_call.1} parent=1 // pred_region
      %s114 = ssub.s32 16, 16
      %115 = vsyncadd [#allocation15], %s114
      %s117 = sshll.u32 [#allocation16], 4
      %s118 = int_to_ptr.vmem [resolvable:$true] %s117
      %120 = dma.hbm_to_vmem [thread:$0]  %s8, 16, %s118, [#allocation15]
    $region37: #{tpu_custom_call.1} parent=1 // pred_fallthru
      _
    // Predicated region
    $region38: #{tpu_custom_call.1} parent=1 // pred_check
      _
    $region39: #{tpu_custom_call.1} parent=1 // pred_check_branch
      %122 = sbr.rel (0) target = $region41
    $region40: #{tpu_custom_call.1} parent=1 // pred_region
      %123 = dma.done [#allocation3], 128
    $region41: #{tpu_custom_call.1} parent=1 // pred_fallthru
      _
    // Predicated region
    $region42: #{tpu_custom_call.1} parent=1 // pred_check
      _
    $region43: #{tpu_custom_call.1} parent=1 // pred_check_branch
      %125 = sbr.rel (0) target = $region45
    $region44: #{tpu_custom_call.1} parent=1 // pred_region
      %126 = dma.done [#allocation6], 16384
    $region45: #{tpu_custom_call.1} parent=1 // pred_fallthru
      _
    // Predicated region
    $region46: #{tpu_custom_call.1} parent=1 // pred_check
      _
    $region47: #{tpu_custom_call.1} parent=1 // pred_check_branch
      %128 = sbr.rel (0) target = $region49
    $region48: #{tpu_custom_call.1} parent=1 // pred_region
      %129 = dma.done [#allocation6], 128
    $region49: #{tpu_custom_call.1} parent=1 // pred_fallthru
      _
    // Predicated region
    $region50: #{tpu_custom_call.1} parent=1 // pred_check
      _
    $region51: #{tpu_custom_call.1} parent=1 // pred_check_branch
      %131 = sbr.rel (0) target = $region53
    $region52: #{tpu_custom_call.1} parent=1 // pred_region
      %132 = dma.done [#allocation9], 65536
    $region53: #{tpu_custom_call.1} parent=1 // pred_fallthru
      _
    // Predicated region
    $region54: #{tpu_custom_call.1} parent=1 // pred_check
      _
    $region55: #{tpu_custom_call.1} parent=1 // pred_check_branch
      %134 = sbr.rel (0) target = $region57
    $region56: #{tpu_custom_call.1} parent=1 // pred_region
      %135 = dma.done [#allocation9], 128
    $region57: #{tpu_custom_call.1} parent=1 // pred_fallthru
      _
    // Predicated region
    $region58: #{tpu_custom_call.1} parent=1 // pred_check
      _
    $region59: #{tpu_custom_call.1} parent=1 // pred_check_branch
      %137 = sbr.rel (0) target = $region61
    $region60: #{tpu_custom_call.1} parent=1 // pred_region
      %138 = dma.done [#allocation12], 16384
    $region61: #{tpu_custom_call.1} parent=1 // pred_fallthru
      _
    // Predicated region
    $region62: #{tpu_custom_call.1} parent=1 // pred_check
      _
    $region63: #{tpu_custom_call.1} parent=1 // pred_check_branch
      %140 = sbr.rel (0) target = $region65
    $region64: #{tpu_custom_call.1} parent=1 // pred_region
      %141 = dma.done [#allocation12], 32
    $region65: #{tpu_custom_call.1} parent=1 // pred_fallthru
      _
    // Predicated region
    $region66: #{tpu_custom_call.1} parent=1 // pred_check
      _
    $region67: #{tpu_custom_call.1} parent=1 // pred_check_branch
      %143 = sbr.rel (0) target = $region69
    $region68: #{tpu_custom_call.1} parent=1 // pred_region
      %144 = dma.done [#allocation15], 2048
    $region69: #{tpu_custom_call.1} parent=1 // pred_fallthru
      _
    // Predicated region
    $region70: #{tpu_custom_call.1} parent=1 // pred_check
      _
    $region71: #{tpu_custom_call.1} parent=1 // pred_check_branch
      %146 = sbr.rel (0) target = $region73
    $region72: #{tpu_custom_call.1} parent=1 // pred_region
      %147 = dma.done [#allocation15], 16
    $region73: #{tpu_custom_call.1} parent=1 // pred_fallthru
      _
    %v149 = vld [vmem:[#allocation2] sm:$0xff]
    %v150 = vld [vmem:[#allocation5] sm:$0xff]
    %v151 = vld [vmem:[#allocation5 + $0x8] sm:$0xff]
    %v152 = vld [vmem:[#allocation5 + $0x10] sm:$0xff]
    %v153 = vld [vmem:[#allocation5 + $0x18] sm:$0xff]
    %v154 = vld [vmem:[#allocation5 + $0x20] sm:$0xff]
    %v155 = vld [vmem:[#allocation5 + $0x28] sm:$0xff]
    %v156 = vld [vmem:[#allocation5 + $0x30] sm:$0xff]
    %v157 = vld [vmem:[#allocation5 + $0x38] sm:$0xff]
    %v158 = vld [vmem:[#allocation5 + $0x40] sm:$0xff]
    %v159 = vld [vmem:[#allocation5 + $0x48] sm:$0xff]
    %v160 = vld [vmem:[#allocation5 + $0x50] sm:$0xff]
    %v161 = vld [vmem:[#allocation5 + $0x58] sm:$0xff]
    %v162 = vld [vmem:[#allocation5 + $0x60] sm:$0xff]
    %v163 = vld [vmem:[#allocation5 + $0x68] sm:$0xff]
    %v164 = vld [vmem:[#allocation5 + $0x70] sm:$0xff]
    %v165 = vld [vmem:[#allocation5 + $0x78] sm:$0xff]
    %v166 = vld [vmem:[#allocation5 + $0x80] sm:$0xff]
    %v167 = vld [vmem:[#allocation5 + $0x88] sm:$0xff]
    %v168 = vld [vmem:[#allocation5 + $0x90] sm:$0xff]
    %v169 = vld [vmem:[#allocation5 + $0x98] sm:$0xff]
    %v170 = vld [vmem:[#allocation5 + $0xa0] sm:$0xff]
    %v171 = vld [vmem:[#allocation5 + $0xa8] sm:$0xff]
    %v172 = vld [vmem:[#allocation5 + $0xb0] sm:$0xff]
    %v173 = vld [vmem:[#allocation5 + $0xb8] sm:$0xff]
    %v174 = vld [vmem:[#allocation5 + $0xc0] sm:$0xff]
    %v175 = vld [vmem:[#allocation5 + $0xc8] sm:$0xff]
    %v176 = vld [vmem:[#allocation5 + $0xd0] sm:$0xff]
    %v177 = vld [vmem:[#allocation5 + $0xd8] sm:$0xff]
    %v178 = vld [vmem:[#allocation5 + $0xe0] sm:$0xff]
    %v179 = vld [vmem:[#allocation5 + $0xe8] sm:$0xff]
    %v180 = vld [vmem:[#allocation5 + $0xf0] sm:$0xff]
    %v181 = vld [vmem:[#allocation5 + $0xf8] sm:$0xff]
    %v182 = vld [vmem:[#allocation5 + $0x100] sm:$0xff]
    %v183 = vld [vmem:[#allocation5 + $0x108] sm:$0xff]
    %v184 = vld [vmem:[#allocation5 + $0x110] sm:$0xff]
    %v185 = vld [vmem:[#allocation5 + $0x118] sm:$0xff]
    %v186 = vld [vmem:[#allocation5 + $0x120] sm:$0xff]
    %v187 = vld [vmem:[#allocation5 + $0x128] sm:$0xff]
    %v188 = vld [vmem:[#allocation5 + $0x130] sm:$0xff]
    %v189 = vld [vmem:[#allocation5 + $0x138] sm:$0xff]
    %v190 = vld [vmem:[#allocation5 + $0x140] sm:$0xff]
    %v191 = vld [vmem:[#allocation5 + $0x148] sm:$0xff]
    %v192 = vld [vmem:[#allocation5 + $0x150] sm:$0xff]
    %v193 = vld [vmem:[#allocation5 + $0x158] sm:$0xff]
    %v194 = vld [vmem:[#allocation5 + $0x160] sm:$0xff]
    %v195 = vld [vmem:[#allocation5 + $0x168] sm:$0xff]
    %v196 = vld [vmem:[#allocation5 + $0x170] sm:$0xff]
    %v197 = vld [vmem:[#allocation5 + $0x178] sm:$0xff]
    %v198 = vld [vmem:[#allocation5 + $0x180] sm:$0xff]
    %v199 = vld [vmem:[#allocation5 + $0x188] sm:$0xff]
    %v200 = vld [vmem:[#allocation5 + $0x190] sm:$0xff]
    %v201 = vld [vmem:[#allocation5 + $0x198] sm:$0xff]
    %v202 = vld [vmem:[#allocation5 + $0x1a0] sm:$0xff]
    %v203 = vld [vmem:[#allocation5 + $0x1a8] sm:$0xff]
    %v204 = vld [vmem:[#allocation5 + $0x1b0] sm:$0xff]
    %v205 = vld [vmem:[#allocation5 + $0x1b8] sm:$0xff]
    %v206 = vld [vmem:[#allocation5 + $0x1c0] sm:$0xff]
    %v207 = vld [vmem:[#allocation5 + $0x1c8] sm:$0xff]
    %v208 = vld [vmem:[#allocation5 + $0x1d0] sm:$0xff]
    %v209 = vld [vmem:[#allocation5 + $0x1d8] sm:$0xff]
    %v210 = vld [vmem:[#allocation5 + $0x1e0] sm:$0xff]
    %v211 = vld [vmem:[#allocation5 + $0x1e8] sm:$0xff]
    %v212 = vld [vmem:[#allocation5 + $0x1f0] sm:$0xff]
    %v213 = vld [vmem:[#allocation5 + $0x1f8] sm:$0xff]
    %v214 = vld [vmem:[#allocation5 + $0x200] sm:$0xff]
    %v215 = vld [vmem:[#allocation5 + $0x208] sm:$0xff]
    %v216 = vld [vmem:[#allocation5 + $0x210] sm:$0xff]
    %v217 = vld [vmem:[#allocation5 + $0x218] sm:$0xff]
    %v218 = vld [vmem:[#allocation5 + $0x220] sm:$0xff]
    %v219 = vld [vmem:[#allocation5 + $0x228] sm:$0xff]
    %v220 = vld [vmem:[#allocation5 + $0x230] sm:$0xff]
    %v221 = vld [vmem:[#allocation5 + $0x238] sm:$0xff]
    %v222 = vld [vmem:[#allocation5 + $0x240] sm:$0xff]
    %v223 = vld [vmem:[#allocation5 + $0x248] sm:$0xff]
    %v224 = vld [vmem:[#allocation5 + $0x250] sm:$0xff]
    %v225 = vld [vmem:[#allocation5 + $0x258] sm:$0xff]
    %v226 = vld [vmem:[#allocation5 + $0x260] sm:$0xff]
    %v227 = vld [vmem:[#allocation5 + $0x268] sm:$0xff]
    %v228 = vld [vmem:[#allocation5 + $0x270] sm:$0xff]
    %v229 = vld [vmem:[#allocation5 + $0x278] sm:$0xff]
    %v230 = vld [vmem:[#allocation5 + $0x280] sm:$0xff]
    %v231 = vld [vmem:[#allocation5 + $0x288] sm:$0xff]
    %v232 = vld [vmem:[#allocation5 + $0x290] sm:$0xff]
    %v233 = vld [vmem:[#allocation5 + $0x298] sm:$0xff]
    %v234 = vld [vmem:[#allocation5 + $0x2a0] sm:$0xff]
    %v235 = vld [vmem:[#allocation5 + $0x2a8] sm:$0xff]
    %v236 = vld [vmem:[#allocation5 + $0x2b0] sm:$0xff]
    %v237 = vld [vmem:[#allocation5 + $0x2b8] sm:$0xff]
    %v238 = vld [vmem:[#allocation5 + $0x2c0] sm:$0xff]
    %v239 = vld [vmem:[#allocation5 + $0x2c8] sm:$0xff]
    %v240 = vld [vmem:[#allocation5 + $0x2d0] sm:$0xff]
    %v241 = vld [vmem:[#allocation5 + $0x2d8] sm:$0xff]
    %v242 = vld [vmem:[#allocation5 + $0x2e0] sm:$0xff]
    %v243 = vld [vmem:[#allocation5 + $0x2e8] sm:$0xff]
    %v244 = vld [vmem:[#allocation5 + $0x2f0] sm:$0xff]
    %v245 = vld [vmem:[#allocation5 + $0x2f8] sm:$0xff]
    %v246 = vld [vmem:[#allocation5 + $0x300] sm:$0xff]
    %v247 = vld [vmem:[#allocation5 + $0x308] sm:$0xff]
    %v248 = vld [vmem:[#allocation5 + $0x310] sm:$0xff]
    %v249 = vld [vmem:[#allocation5 + $0x318] sm:$0xff]
    %v250 = vld [vmem:[#allocation5 + $0x320] sm:$0xff]
    %v251 = vld [vmem:[#allocation5 + $0x328] sm:$0xff]
    %v252 = vld [vmem:[#allocation5 + $0x330] sm:$0xff]
    %v253 = vld [vmem:[#allocation5 + $0x338] sm:$0xff]
    %v254 = vld [vmem:[#allocation5 + $0x340] sm:$0xff]
    %v255 = vld [vmem:[#allocation5 + $0x348] sm:$0xff]
    %v256 = vld [vmem:[#allocation5 + $0x350] sm:$0xff]
    %v257 = vld [vmem:[#allocation5 + $0x358] sm:$0xff]
    %v258 = vld [vmem:[#allocation5 + $0x360] sm:$0xff]
    %v259 = vld [vmem:[#allocation5 + $0x368] sm:$0xff]
    %v260 = vld [vmem:[#allocation5 + $0x370] sm:$0xff]
    %v261 = vld [vmem:[#allocation5 + $0x378] sm:$0xff]
    %v262 = vld [vmem:[#allocation5 + $0x380] sm:$0xff]
    %v263 = vld [vmem:[#allocation5 + $0x388] sm:$0xff]
    %v264 = vld [vmem:[#allocation5 + $0x390] sm:$0xff]
    %v265 = vld [vmem:[#allocation5 + $0x398] sm:$0xff]
    %v266 = vld [vmem:[#allocation5 + $0x3a0] sm:$0xff]
    %v267 = vld [vmem:[#allocation5 + $0x3a8] sm:$0xff]
    %v268 = vld [vmem:[#allocation5 + $0x3b0] sm:$0xff]
    %v269 = vld [vmem:[#allocation5 + $0x3b8] sm:$0xff]
    %v270 = vld [vmem:[#allocation5 + $0x3c0] sm:$0xff]
    %v271 = vld [vmem:[#allocation5 + $0x3c8] sm:$0xff]
    %v272 = vld [vmem:[#allocation5 + $0x3d0] sm:$0xff]
    %v273 = vld [vmem:[#allocation5 + $0x3d8] sm:$0xff]
    %v274 = vld [vmem:[#allocation5 + $0x3e0] sm:$0xff]
    %v275 = vld [vmem:[#allocation5 + $0x3e8] sm:$0xff]
    %v276 = vld [vmem:[#allocation5 + $0x3f0] sm:$0xff]
    %v277 = vld [vmem:[#allocation5 + $0x3f8] sm:$0xff]
    %v278 = vld [vmem:[#allocation7] sm:$0xff]
    %v280 = vlaneseq
    %v281 = vshrl.u32 %v280, 7
    %v282 = vsub.s32 0, %v281
    %v283 = vrot.slane %v278, %v282
    %v284 = vlaneseq
    %v285 = vshrl.u32 %v284, 7
    %v286 = vsub.s32 1, %v285
    %v287 = vrot.slane %v278, %v286
    %v288 = vlaneseq
    %v289 = vshrl.u32 %v288, 7
    %v290 = vsub.s32 2, %v289
    %v291 = vrot.slane %v278, %v290
    %v292 = vlaneseq
    %v293 = vshrl.u32 %v292, 7
    %v294 = vsub.s32 3, %v293
    %v295 = vrot.slane %v278, %v294
    %v296 = vlaneseq
    %v297 = vshrl.u32 %v296, 7
    %v298 = vsub.s32 4, %v297
    %v299 = vrot.slane %v278, %v298
    %v300 = vlaneseq
    %v301 = vshrl.u32 %v300, 7
    %v302 = vsub.s32 5, %v301
    %v303 = vrot.slane %v278, %v302
    %v304 = vlaneseq
    %v305 = vshrl.u32 %v304, 7
    %v306 = vsub.s32 6, %v305
    %v307 = vrot.slane %v278, %v306
    %v308 = vlaneseq
    %v309 = vshrl.u32 %v308, 7
    %v310 = vsub.s32 7, %v309
    %v311 = vrot.slane %v278, %v310
    %v321 = vunpack.c.l.b16 %v149
    %v322 = vunpack.c.h.b16 %v149
    %v323 = vpack.c.b16 %v321, %v321
    %v324 = vpack.c.b16 %v322, %v322
    %v455 = vunpack.c.l.b16 %v150
    %v456 = vunpack.c.h.b16 %v150
    %v457 = vunpack.c.l.b16 %v151
    %v458 = vunpack.c.h.b16 %v151
    %v459 = vunpack.c.l.b16 %v152
    %v460 = vunpack.c.h.b16 %v152
    %v461 = vunpack.c.l.b16 %v153
    %v462 = vunpack.c.h.b16 %v153
    %v463 = vunpack.c.l.b16 %v154
    %v464 = vunpack.c.h.b16 %v154
    %v465 = vunpack.c.l.b16 %v155
    %v466 = vunpack.c.h.b16 %v155
    %v467 = vunpack.c.l.b16 %v156
    %v468 = vunpack.c.h.b16 %v156
    %v469 = vunpack.c.l.b16 %v157
    %v470 = vunpack.c.h.b16 %v157
    %v471 = vunpack.c.l.b16 %v158
    %v472 = vunpack.c.h.b16 %v158
    %v473 = vunpack.c.l.b16 %v159
    %v474 = vunpack.c.h.b16 %v159
    %v475 = vunpack.c.l.b16 %v160
    %v476 = vunpack.c.h.b16 %v160
    %v477 = vunpack.c.l.b16 %v161
    %v478 = vunpack.c.h.b16 %v161
    %v479 = vunpack.c.l.b16 %v162
    %v480 = vunpack.c.h.b16 %v162
    %v481 = vunpack.c.l.b16 %v163
    %v482 = vunpack.c.h.b16 %v163
    %v483 = vunpack.c.l.b16 %v164
    %v484 = vunpack.c.h.b16 %v164
    %v485 = vunpack.c.l.b16 %v165
    %v486 = vunpack.c.h.b16 %v165
    %v487 = vunpack.c.l.b16 %v166
    %v488 = vunpack.c.h.b16 %v166
    %v489 = vunpack.c.l.b16 %v167
    %v490 = vunpack.c.h.b16 %v167
    %v491 = vunpack.c.l.b16 %v168
    %v492 = vunpack.c.h.b16 %v168
    %v493 = vunpack.c.l.b16 %v169
    %v494 = vunpack.c.h.b16 %v169
    %v495 = vunpack.c.l.b16 %v170
    %v496 = vunpack.c.h.b16 %v170
    %v497 = vunpack.c.l.b16 %v171
    %v498 = vunpack.c.h.b16 %v171
    %v499 = vunpack.c.l.b16 %v172
    %v500 = vunpack.c.h.b16 %v172
    %v501 = vunpack.c.l.b16 %v173
    %v502 = vunpack.c.h.b16 %v173
    %v503 = vunpack.c.l.b16 %v174
    %v504 = vunpack.c.h.b16 %v174
    %v505 = vunpack.c.l.b16 %v175
    %v506 = vunpack.c.h.b16 %v175
    %v507 = vunpack.c.l.b16 %v176
    %v508 = vunpack.c.h.b16 %v176
    %v509 = vunpack.c.l.b16 %v177
    %v510 = vunpack.c.h.b16 %v177
    %v511 = vunpack.c.l.b16 %v178
    %v512 = vunpack.c.h.b16 %v178
    %v513 = vunpack.c.l.b16 %v179
    %v514 = vunpack.c.h.b16 %v179
    %v515 = vunpack.c.l.b16 %v180
    %v516 = vunpack.c.h.b16 %v180
    %v517 = vunpack.c.l.b16 %v181
    %v518 = vunpack.c.h.b16 %v181
    %v519 = vunpack.c.l.b16 %v182
    %v520 = vunpack.c.h.b16 %v182
    %v521 = vunpack.c.l.b16 %v183
    %v522 = vunpack.c.h.b16 %v183
    %v523 = vunpack.c.l.b16 %v184
    %v524 = vunpack.c.h.b16 %v184
    %v525 = vunpack.c.l.b16 %v185
    %v526 = vunpack.c.h.b16 %v185
    %v527 = vunpack.c.l.b16 %v186
    %v528 = vunpack.c.h.b16 %v186
    %v529 = vunpack.c.l.b16 %v187
    %v530 = vunpack.c.h.b16 %v187
    %v531 = vunpack.c.l.b16 %v188
    %v532 = vunpack.c.h.b16 %v188
    %v533 = vunpack.c.l.b16 %v189
    %v534 = vunpack.c.h.b16 %v189
    %v535 = vunpack.c.l.b16 %v190
    %v536 = vunpack.c.h.b16 %v190
    %v537 = vunpack.c.l.b16 %v191
    %v538 = vunpack.c.h.b16 %v191
    %v539 = vunpack.c.l.b16 %v192
    %v540 = vunpack.c.h.b16 %v192
    %v541 = vunpack.c.l.b16 %v193
    %v542 = vunpack.c.h.b16 %v193
    %v543 = vunpack.c.l.b16 %v194
    %v544 = vunpack.c.h.b16 %v194
    %v545 = vunpack.c.l.b16 %v195
    %v546 = vunpack.c.h.b16 %v195
    %v547 = vunpack.c.l.b16 %v196
    %v548 = vunpack.c.h.b16 %v196
    %v549 = vunpack.c.l.b16 %v197
    %v550 = vunpack.c.h.b16 %v197
    %v551 = vunpack.c.l.b16 %v198
    %v552 = vunpack.c.h.b16 %v198
    %v553 = vunpack.c.l.b16 %v199
    %v554 = vunpack.c.h.b16 %v199
    %v555 = vunpack.c.l.b16 %v200
    %v556 = vunpack.c.h.b16 %v200
    %v557 = vunpack.c.l.b16 %v201
    %v558 = vunpack.c.h.b16 %v201
    %v559 = vunpack.c.l.b16 %v202
    %v560 = vunpack.c.h.b16 %v202
    %v561 = vunpack.c.l.b16 %v203
    %v562 = vunpack.c.h.b16 %v203
    %v563 = vunpack.c.l.b16 %v204
    %v564 = vunpack.c.h.b16 %v204
    %v565 = vunpack.c.l.b16 %v205
    %v566 = vunpack.c.h.b16 %v205
    %v567 = vunpack.c.l.b16 %v206
    %v568 = vunpack.c.h.b16 %v206
    %v569 = vunpack.c.l.b16 %v207
    %v570 = vunpack.c.h.b16 %v207
    %v571 = vunpack.c.l.b16 %v208
    %v572 = vunpack.c.h.b16 %v208
    %v573 = vunpack.c.l.b16 %v209
    %v574 = vunpack.c.h.b16 %v209
    %v575 = vunpack.c.l.b16 %v210
    %v576 = vunpack.c.h.b16 %v210
    %v577 = vunpack.c.l.b16 %v211
    %v578 = vunpack.c.h.b16 %v211
    %v579 = vunpack.c.l.b16 %v212
    %v580 = vunpack.c.h.b16 %v212
    %v581 = vunpack.c.l.b16 %v213
    %v582 = vunpack.c.h.b16 %v213
    %v583 = vunpack.c.l.b16 %v214
    %v584 = vunpack.c.h.b16 %v214
    %v585 = vunpack.c.l.b16 %v215
    %v586 = vunpack.c.h.b16 %v215
    %v587 = vunpack.c.l.b16 %v216
    %v588 = vunpack.c.h.b16 %v216
    %v589 = vunpack.c.l.b16 %v217
    %v590 = vunpack.c.h.b16 %v217
    %v591 = vunpack.c.l.b16 %v218
    %v592 = vunpack.c.h.b16 %v218
    %v593 = vunpack.c.l.b16 %v219
    %v594 = vunpack.c.h.b16 %v219
    %v595 = vunpack.c.l.b16 %v220
    %v596 = vunpack.c.h.b16 %v220
    %v597 = vunpack.c.l.b16 %v221
    %v598 = vunpack.c.h.b16 %v221
    %v599 = vunpack.c.l.b16 %v222
    %v600 = vunpack.c.h.b16 %v222
    %v601 = vunpack.c.l.b16 %v223
    %v602 = vunpack.c.h.b16 %v223
    %v603 = vunpack.c.l.b16 %v224
    %v604 = vunpack.c.h.b16 %v224
    %v605 = vunpack.c.l.b16 %v225
    %v606 = vunpack.c.h.b16 %v225
    %v607 = vunpack.c.l.b16 %v226
    %v608 = vunpack.c.h.b16 %v226
    %v609 = vunpack.c.l.b16 %v227
    %v610 = vunpack.c.h.b16 %v227
    %v611 = vunpack.c.l.b16 %v228
    %v612 = vunpack.c.h.b16 %v228
    %v613 = vunpack.c.l.b16 %v229
    %v614 = vunpack.c.h.b16 %v229
    %v615 = vunpack.c.l.b16 %v230
    %v616 = vunpack.c.h.b16 %v230
    %v617 = vunpack.c.l.b16 %v231
    %v618 = vunpack.c.h.b16 %v231
    %v619 = vunpack.c.l.b16 %v232
    %v620 = vunpack.c.h.b16 %v232
    %v621 = vunpack.c.l.b16 %v233
    %v622 = vunpack.c.h.b16 %v233
    %v623 = vunpack.c.l.b16 %v234
    %v624 = vunpack.c.h.b16 %v234
    %v625 = vunpack.c.l.b16 %v235
    %v626 = vunpack.c.h.b16 %v235
    %v627 = vunpack.c.l.b16 %v236
    %v628 = vunpack.c.h.b16 %v236
    %v629 = vunpack.c.l.b16 %v237
    %v630 = vunpack.c.h.b16 %v237
    %v631 = vunpack.c.l.b16 %v238
    %v632 = vunpack.c.h.b16 %v238
    %v633 = vunpack.c.l.b16 %v239
    %v634 = vunpack.c.h.b16 %v239
    %v635 = vunpack.c.l.b16 %v240
    %v636 = vunpack.c.h.b16 %v240
    %v637 = vunpack.c.l.b16 %v241
    %v638 = vunpack.c.h.b16 %v241
    %v639 = vunpack.c.l.b16 %v242
    %v640 = vunpack.c.h.b16 %v242
    %v641 = vunpack.c.l.b16 %v243
    %v642 = vunpack.c.h.b16 %v243
    %v643 = vunpack.c.l.b16 %v244
    %v644 = vunpack.c.h.b16 %v244
    %v645 = vunpack.c.l.b16 %v245
    %v646 = vunpack.c.h.b16 %v245
    %v647 = vunpack.c.l.b16 %v246
    %v648 = vunpack.c.h.b16 %v246
    %v649 = vunpack.c.l.b16 %v247
    %v650 = vunpack.c.h.b16 %v247
    %v651 = vunpack.c.l.b16 %v248
    %v652 = vunpack.c.h.b16 %v248
    %v653 = vunpack.c.l.b16 %v249
    %v654 = vunpack.c.h.b16 %v249
    %v655 = vunpack.c.l.b16 %v250
    %v656 = vunpack.c.h.b16 %v250
    %v657 = vunpack.c.l.b16 %v251
    %v658 = vunpack.c.h.b16 %v251
    %v659 = vunpack.c.l.b16 %v252
    %v660 = vunpack.c.h.b16 %v252
    %v661 = vunpack.c.l.b16 %v253
    %v662 = vunpack.c.h.b16 %v253
    %v663 = vunpack.c.l.b16 %v254
    %v664 = vunpack.c.h.b16 %v254
    %v665 = vunpack.c.l.b16 %v255
    %v666 = vunpack.c.h.b16 %v255
    %v667 = vunpack.c.l.b16 %v256
    %v668 = vunpack.c.h.b16 %v256
    %v669 = vunpack.c.l.b16 %v257
    %v670 = vunpack.c.h.b16 %v257
    %v671 = vunpack.c.l.b16 %v258
    %v672 = vunpack.c.h.b16 %v258
    %v673 = vunpack.c.l.b16 %v259
    %v674 = vunpack.c.h.b16 %v259
    %v675 = vunpack.c.l.b16 %v260
    %v676 = vunpack.c.h.b16 %v260
    %v677 = vunpack.c.l.b16 %v261
    %v678 = vunpack.c.h.b16 %v261
    %v679 = vunpack.c.l.b16 %v262
    %v680 = vunpack.c.h.b16 %v262
    %v681 = vunpack.c.l.b16 %v263
    %v682 = vunpack.c.h.b16 %v263
    %v683 = vunpack.c.l.b16 %v264
    %v684 = vunpack.c.h.b16 %v264
    %v685 = vunpack.c.l.b16 %v265
    %v686 = vunpack.c.h.b16 %v265
    %v687 = vunpack.c.l.b16 %v266
    %v688 = vunpack.c.h.b16 %v266
    %v689 = vunpack.c.l.b16 %v267
    %v690 = vunpack.c.h.b16 %v267
    %v691 = vunpack.c.l.b16 %v268
    %v692 = vunpack.c.h.b16 %v268
    %v693 = vunpack.c.l.b16 %v269
    %v694 = vunpack.c.h.b16 %v269
    %v695 = vunpack.c.l.b16 %v270
    %v696 = vunpack.c.h.b16 %v270
    %v697 = vunpack.c.l.b16 %v271
    %v698 = vunpack.c.h.b16 %v271
    %v699 = vunpack.c.l.b16 %v272
    %v700 = vunpack.c.h.b16 %v272
    %v701 = vunpack.c.l.b16 %v273
    %v702 = vunpack.c.h.b16 %v273
    %v703 = vunpack.c.l.b16 %v274
    %v704 = vunpack.c.h.b16 %v274
    %v705 = vunpack.c.l.b16 %v275
    %v706 = vunpack.c.h.b16 %v275
    %v707 = vunpack.c.l.b16 %v276
    %v708 = vunpack.c.h.b16 %v276
    %v709 = vunpack.c.l.b16 %v277
    %v710 = vunpack.c.h.b16 %v277
    %v711 = vpack.c.b16 %v463, %v455
    %v712 = vpack.c.b16 %v464, %v456
    %v713 = vpack.c.b16 %v465, %v457
    %v714 = vpack.c.b16 %v466, %v458
    %v715 = vpack.c.b16 %v467, %v459
    %v716 = vpack.c.b16 %v468, %v460
    %v717 = vpack.c.b16 %v469, %v461
    %v718 = vpack.c.b16 %v470, %v462
    %v719 = vpack.c.b16 %v479, %v471
    %v720 = vpack.c.b16 %v480, %v472
    %v721 = vpack.c.b16 %v481, %v473
    %v722 = vpack.c.b16 %v482, %v474
    %v723 = vpack.c.b16 %v483, %v475
    %v724 = vpack.c.b16 %v484, %v476
    %v725 = vpack.c.b16 %v485, %v477
    %v726 = vpack.c.b16 %v486, %v478
    %v727 = vpack.c.b16 %v495, %v487
    %v728 = vpack.c.b16 %v496, %v488
    %v729 = vpack.c.b16 %v497, %v489
    %v730 = vpack.c.b16 %v498, %v490
    %v731 = vpack.c.b16 %v499, %v491
    %v732 = vpack.c.b16 %v500, %v492
    %v733 = vpack.c.b16 %v501, %v493
    %v734 = vpack.c.b16 %v502, %v494
    %v735 = vpack.c.b16 %v511, %v503
    %v736 = vpack.c.b16 %v512, %v504
    %v737 = vpack.c.b16 %v513, %v505
    %v738 = vpack.c.b16 %v514, %v506
    %v739 = vpack.c.b16 %v515, %v507
    %v740 = vpack.c.b16 %v516, %v508
    %v741 = vpack.c.b16 %v517, %v509
    %v742 = vpack.c.b16 %v518, %v510
    %v743 = vpack.c.b16 %v527, %v519
    %v744 = vpack.c.b16 %v528, %v520
    %v745 = vpack.c.b16 %v529, %v521
    %v746 = vpack.c.b16 %v530, %v522
    %v747 = vpack.c.b16 %v531, %v523
    %v748 = vpack.c.b16 %v532, %v524
    %v749 = vpack.c.b16 %v533, %v525
    %v750 = vpack.c.b16 %v534, %v526
    %v751 = vpack.c.b16 %v543, %v535
    %v752 = vpack.c.b16 %v544, %v536
    %v753 = vpack.c.b16 %v545, %v537
    %v754 = vpack.c.b16 %v546, %v538
    %v755 = vpack.c.b16 %v547, %v539
    %v756 = vpack.c.b16 %v548, %v540
    %v757 = vpack.c.b16 %v549, %v541
    %v758 = vpack.c.b16 %v550, %v542
    %v759 = vpack.c.b16 %v559, %v551
    %v760 = vpack.c.b16 %v560, %v552
    %v761 = vpack.c.b16 %v561, %v553
    %v762 = vpack.c.b16 %v562, %v554
    %v763 = vpack.c.b16 %v563, %v555
    %v764 = vpack.c.b16 %v564, %v556
    %v765 = vpack.c.b16 %v565, %v557
    %v766 = vpack.c.b16 %v566, %v558
    %v767 = vpack.c.b16 %v575, %v567
    %v768 = vpack.c.b16 %v576, %v568
    %v769 = vpack.c.b16 %v577, %v569
    %v770 = vpack.c.b16 %v578, %v570
    %v771 = vpack.c.b16 %v579, %v571
    %v772 = vpack.c.b16 %v580, %v572
    %v773 = vpack.c.b16 %v581, %v573
    %v774 = vpack.c.b16 %v582, %v574
    %v775 = vpack.c.b16 %v591, %v583
    %v776 = vpack.c.b16 %v592, %v584
    %v777 = vpack.c.b16 %v593, %v585
    %v778 = vpack.c.b16 %v594, %v586
    %v779 = vpack.c.b16 %v595, %v587
    %v780 = vpack.c.b16 %v596, %v588
    %v781 = vpack.c.b16 %v597, %v589
    %v782 = vpack.c.b16 %v598, %v590
    %v783 = vpack.c.b16 %v607, %v599
    %v784 = vpack.c.b16 %v608, %v600
    %v785 = vpack.c.b16 %v609, %v601
    %v786 = vpack.c.b16 %v610, %v602
    %v787 = vpack.c.b16 %v611, %v603
    %v788 = vpack.c.b16 %v612, %v604
    %v789 = vpack.c.b16 %v613, %v605
    %v790 = vpack.c.b16 %v614, %v606
    %v791 = vpack.c.b16 %v623, %v615
    %v792 = vpack.c.b16 %v624, %v616
    %v793 = vpack.c.b16 %v625, %v617
    %v794 = vpack.c.b16 %v626, %v618
    %v795 = vpack.c.b16 %v627, %v619
    %v796 = vpack.c.b16 %v628, %v620
    %v797 = vpack.c.b16 %v629, %v621
    %v798 = vpack.c.b16 %v630, %v622
    %v799 = vpack.c.b16 %v639, %v631
    %v800 = vpack.c.b16 %v640, %v632
    %v801 = vpack.c.b16 %v641, %v633
    %v802 = vpack.c.b16 %v642, %v634
    %v803 = vpack.c.b16 %v643, %v635
    %v804 = vpack.c.b16 %v644, %v636
    %v805 = vpack.c.b16 %v645, %v637
    %v806 = vpack.c.b16 %v646, %v638
    %v807 = vpack.c.b16 %v655, %v647
    %v808 = vpack.c.b16 %v656, %v648
    %v809 = vpack.c.b16 %v657, %v649
    %v810 = vpack.c.b16 %v658, %v650
    %v811 = vpack.c.b16 %v659, %v651
    %v812 = vpack.c.b16 %v660, %v652
    %v813 = vpack.c.b16 %v661, %v653
    %v814 = vpack.c.b16 %v662, %v654
    %v815 = vpack.c.b16 %v671, %v663
    %v816 = vpack.c.b16 %v672, %v664
    %v817 = vpack.c.b16 %v673, %v665
    %v818 = vpack.c.b16 %v674, %v666
    %v819 = vpack.c.b16 %v675, %v667
    %v820 = vpack.c.b16 %v676, %v668
    %v821 = vpack.c.b16 %v677, %v669
    %v822 = vpack.c.b16 %v678, %v670
    %v823 = vpack.c.b16 %v687, %v679
    %v824 = vpack.c.b16 %v688, %v680
    %v825 = vpack.c.b16 %v689, %v681
    %v826 = vpack.c.b16 %v690, %v682
    %v827 = vpack.c.b16 %v691, %v683
    %v828 = vpack.c.b16 %v692, %v684
    %v829 = vpack.c.b16 %v693, %v685
    %v830 = vpack.c.b16 %v694, %v686
    %v831 = vpack.c.b16 %v703, %v695
    %v832 = vpack.c.b16 %v704, %v696
    %v833 = vpack.c.b16 %v705, %v697
    %v834 = vpack.c.b16 %v706, %v698
    %v835 = vpack.c.b16 %v707, %v699
    %v836 = vpack.c.b16 %v708, %v700
    %v837 = vpack.c.b16 %v709, %v701
    %v838 = vpack.c.b16 %v710, %v702
    %967 = vmatprep.subr.bf16.mxu0 %v712
    %968 = vmatpush1.bf16.msra.mxu0 %v711
    %969 = vmatprep.subr.bf16.mxu0 %v720
    %970 = vmatpush1.bf16.msra.mxu0 %v719
    %971 = vmatprep.subr.bf16.mxu0 %v728
    %972 = vmatpush1.bf16.msra.mxu0 %v727
    %973 = vmatprep.subr.bf16.mxu0 %v736
    %974 = vmatpush1.bf16.msra.mxu0 %v735
    %975 = vmatprep.subr.bf16.mxu0 %v744
    %976 = vmatpush1.bf16.msra.mxu0 %v743
    %977 = vmatprep.subr.bf16.mxu0 %v752
    %978 = vmatpush1.bf16.msra.mxu0 %v751
    %979 = vmatprep.subr.bf16.mxu0 %v760
    %980 = vmatpush1.bf16.msra.mxu0 %v759
    %981 = vmatprep.subr.bf16.mxu0 %v768
    %982 = vmatpush1.bf16.msra.mxu0 %v767
    %983 = vmatprep.subr.bf16.mxu0 %v776
    %984 = vmatpush1.bf16.msra.mxu0 %v775
    %985 = vmatprep.subr.bf16.mxu0 %v784
    %986 = vmatpush1.bf16.msra.mxu0 %v783
    %987 = vmatprep.subr.bf16.mxu0 %v792
    %988 = vmatpush1.bf16.msra.mxu0 %v791
    %989 = vmatprep.subr.bf16.mxu0 %v800
    %990 = vmatpush1.bf16.msra.mxu0 %v799
    %991 = vmatprep.subr.bf16.mxu0 %v808
    %992 = vmatpush1.bf16.msra.mxu0 %v807
    %993 = vmatprep.subr.bf16.mxu0 %v816
    %994 = vmatpush1.bf16.msra.mxu0 %v815
    %995 = vmatprep.subr.bf16.mxu0 %v824
    %996 = vmatpush1.bf16.msra.mxu0 %v823
    %997 = vmatprep.subr.bf16.mxu0 %v832
    %998 = vmatpush1.bf16.msra.mxu0 %v831
    %999 = vmatprep.mubr.bf16.mxu0 %v324
    %1000 = vmatmul.mubr.bf16.gmra.mrb[0].mxu0 %v323
    %v1001 = vpop.f32.mrb[0].mxu0
    %v1002 = vadd.f32 %v283, %v1001
    %v1003 = vpop.f32.mrb[0].mxu0
    %v1004 = vadd.f32 %v287, %v1003
    %v1005 = vpop.f32.mrb[0].mxu0
    %v1006 = vpop.f32.mrb[0].mxu0
    %1007 = vdwg.mxu0
    %1008 = vmatprep.subr.bf16.mxu0 %v714
    %1009 = vmatpush1.bf16.msra.mxu0 %v713
    %1010 = vmatprep.subr.bf16.mxu0 %v722
    %1011 = vmatpush1.bf16.msra.mxu0 %v721
    %1012 = vmatprep.subr.bf16.mxu0 %v730
    %1013 = vmatpush1.bf16.msra.mxu0 %v729
    %1014 = vmatprep.subr.bf16.mxu0 %v738
    %1015 = vmatpush1.bf16.msra.mxu0 %v737
    %1016 = vmatprep.subr.bf16.mxu0 %v746
    %1017 = vmatpush1.bf16.msra.mxu0 %v745
    %1018 = vmatprep.subr.bf16.mxu0 %v754
    %1019 = vmatpush1.bf16.msra.mxu0 %v753
    %1020 = vmatprep.subr.bf16.mxu0 %v762
    %1021 = vmatpush1.bf16.msra.mxu0 %v761
    %1022 = vmatprep.subr.bf16.mxu0 %v770
    %1023 = vmatpush1.bf16.msra.mxu0 %v769
    %1024 = vmatprep.subr.bf16.mxu0 %v778
    %1025 = vmatpush1.bf16.msra.mxu0 %v777
    %1026 = vmatprep.subr.bf16.mxu0 %v786
    %1027 = vmatpush1.bf16.msra.mxu0 %v785
    %1028 = vmatprep.subr.bf16.mxu0 %v794
    %1029 = vmatpush1.bf16.msra.mxu0 %v793
    %1030 = vmatprep.subr.bf16.mxu0 %v802
    %1031 = vmatpush1.bf16.msra.mxu0 %v801
    %1032 = vmatprep.subr.bf16.mxu0 %v810
    %1033 = vmatpush1.bf16.msra.mxu0 %v809
    %1034 = vmatprep.subr.bf16.mxu0 %v818
    %1035 = vmatpush1.bf16.msra.mxu0 %v817
    %1036 = vmatprep.subr.bf16.mxu0 %v826
    %1037 = vmatpush1.bf16.msra.mxu0 %v825
    %1038 = vmatprep.subr.bf16.mxu0 %v834
    %1039 = vmatpush1.bf16.msra.mxu0 %v833
    %1040 = vmatprep.mubr.bf16.mxu0 %v324
    %1041 = vmatmul.mubr.bf16.gmra.mrb[0].mxu0 %v323
    %v1042 = vpop.f32.mrb[0].mxu0
    %v1043 = vadd.f32 %v291, %v1042
    %v1044 = vpop.f32.mrb[0].mxu0
    %v1045 = vadd.f32 %v295, %v1044
    %v1046 = vpop.f32.mrb[0].mxu0
    %v1047 = vpop.f32.mrb[0].mxu0
    %1048 = vdwg.mxu0
    %1049 = vmatprep.subr.bf16.mxu0 %v716
    %1050 = vmatpush1.bf16.msra.mxu0 %v715
    %1051 = vmatprep.subr.bf16.mxu0 %v724
    %1052 = vmatpush1.bf16.msra.mxu0 %v723
    %1053 = vmatprep.subr.bf16.mxu0 %v732
    %1054 = vmatpush1.bf16.msra.mxu0 %v731
    %1055 = vmatprep.subr.bf16.mxu0 %v740
    %1056 = vmatpush1.bf16.msra.mxu0 %v739
    %1057 = vmatprep.subr.bf16.mxu0 %v748
    %1058 = vmatpush1.bf16.msra.mxu0 %v747
    %1059 = vmatprep.subr.bf16.mxu0 %v756
    %1060 = vmatpush1.bf16.msra.mxu0 %v755
    %1061 = vmatprep.subr.bf16.mxu0 %v764
    %1062 = vmatpush1.bf16.msra.mxu0 %v763
    %1063 = vmatprep.subr.bf16.mxu0 %v772
    %1064 = vmatpush1.bf16.msra.mxu0 %v771
    %1065 = vmatprep.subr.bf16.mxu0 %v780
    %1066 = vmatpush1.bf16.msra.mxu0 %v779
    %1067 = vmatprep.subr.bf16.mxu0 %v788
    %1068 = vmatpush1.bf16.msra.mxu0 %v787
    %1069 = vmatprep.subr.bf16.mxu0 %v796
    %1070 = vmatpush1.bf16.msra.mxu0 %v795
    %1071 = vmatprep.subr.bf16.mxu0 %v804
    %1072 = vmatpush1.bf16.msra.mxu0 %v803
    %1073 = vmatprep.subr.bf16.mxu0 %v812
    %1074 = vmatpush1.bf16.msra.mxu0 %v811
    %1075 = vmatprep.subr.bf16.mxu0 %v820
    %1076 = vmatpush1.bf16.msra.mxu0 %v819
    %1077 = vmatprep.subr.bf16.mxu0 %v828
    %1078 = vmatpush1.bf16.msra.mxu0 %v827
    %1079 = vmatprep.subr.bf16.mxu0 %v836
    %1080 = vmatpush1.bf16.msra.mxu0 %v835
    %1081 = vmatprep.mubr.bf16.mxu0 %v324
    %1082 = vmatmul.mubr.bf16.gmra.mrb[0].mxu0 %v323
    %v1083 = vpop.f32.mrb[0].mxu0
    %v1084 = vadd.f32 %v299, %v1083
    %v1085 = vpop.f32.mrb[0].mxu0
    %v1086 = vadd.f32 %v303, %v1085
    %v1087 = vpop.f32.mrb[0].mxu0
    %v1088 = vpop.f32.mrb[0].mxu0
    %1089 = vdwg.mxu0
    %1090 = vmatprep.subr.bf16.mxu0 %v718
    %1091 = vmatpush1.bf16.msra.mxu0 %v717
    %1092 = vmatprep.subr.bf16.mxu0 %v726
    %1093 = vmatpush1.bf16.msra.mxu0 %v725
    %1094 = vmatprep.subr.bf16.mxu0 %v734
    %1095 = vmatpush1.bf16.msra.mxu0 %v733
    %1096 = vmatprep.subr.bf16.mxu0 %v742
    %1097 = vmatpush1.bf16.msra.mxu0 %v741
    %1098 = vmatprep.subr.bf16.mxu0 %v750
    %1099 = vmatpush1.bf16.msra.mxu0 %v749
    %1100 = vmatprep.subr.bf16.mxu0 %v758
    %1101 = vmatpush1.bf16.msra.mxu0 %v757
    %1102 = vmatprep.subr.bf16.mxu0 %v766
    %1103 = vmatpush1.bf16.msra.mxu0 %v765
    %1104 = vmatprep.subr.bf16.mxu0 %v774
    %1105 = vmatpush1.bf16.msra.mxu0 %v773
    %1106 = vmatprep.subr.bf16.mxu0 %v782
    %1107 = vmatpush1.bf16.msra.mxu0 %v781
    %1108 = vmatprep.subr.bf16.mxu0 %v790
    %1109 = vmatpush1.bf16.msra.mxu0 %v789
    %1110 = vmatprep.subr.bf16.mxu0 %v798
    %1111 = vmatpush1.bf16.msra.mxu0 %v797
    %1112 = vmatprep.subr.bf16.mxu0 %v806
    %1113 = vmatpush1.bf16.msra.mxu0 %v805
    %1114 = vmatprep.subr.bf16.mxu0 %v814
    %1115 = vmatpush1.bf16.msra.mxu0 %v813
    %1116 = vmatprep.subr.bf16.mxu0 %v822
    %1117 = vmatpush1.bf16.msra.mxu0 %v821
    %1118 = vmatprep.subr.bf16.mxu0 %v830
    %1119 = vmatpush1.bf16.msra.mxu0 %v829
    %1120 = vmatprep.subr.bf16.mxu0 %v838
    %1121 = vmatpush1.bf16.msra.mxu0 %v837
    %1122 = vmatprep.mubr.bf16.mxu0 %v324
    %1123 = vmatmul.mubr.bf16.gmra.mrb[0].mxu0 %v323
    %v1124 = vpop.f32.mrb[0].mxu0
    %v1125 = vadd.f32 %v307, %v1124
    %v1126 = vpop.f32.mrb[0].mxu0
    %v1127 = vadd.f32 %v311, %v1126
    %v1128 = vpop.f32.mrb[0].mxu0
    %v1129 = vpop.f32.mrb[0].mxu0
    %1130 = vdwg.mxu0
    %v1131 = vmax.f32 %v1002, 0.0
    %v1132 = vmax.f32 %v1004, 0.0
    %v1133 = vmax.f32 %v1043, 0.0
    %v1134 = vmax.f32 %v1045, 0.0
    %v1135 = vmax.f32 %v1084, 0.0
    %v1136 = vmax.f32 %v1086, 0.0
    %v1137 = vmax.f32 %v1125, 0.0
    %v1138 = vmax.f32 %v1127, 0.0
    %v1139 = vpack.c.bf16 %v1131, %v1131
    %v1140 = vpack.c.bf16 %v1132, %v1132
    %v1141 = vpack.c.bf16 %v1133, %v1133
    %v1142 = vpack.c.bf16 %v1134, %v1134
    %v1143 = vpack.c.bf16 %v1135, %v1135
    %v1144 = vpack.c.bf16 %v1136, %v1136
    %v1145 = vpack.c.bf16 %v1137, %v1137
    %v1146 = vpack.c.bf16 %v1138, %v1138
    %v1147 = vld [vmem:[#allocation8] sm:$0xff]
    %v1148 = vld [vmem:[#allocation8 + $0x8] sm:$0xff]
    %v1149 = vld [vmem:[#allocation8 + $0x10] sm:$0xff]
    %v1150 = vld [vmem:[#allocation8 + $0x18] sm:$0xff]
    %v1151 = vld [vmem:[#allocation8 + $0x20] sm:$0xff]
    %v1152 = vld [vmem:[#allocation8 + $0x28] sm:$0xff]
    %v1153 = vld [vmem:[#allocation8 + $0x30] sm:$0xff]
    %v1154 = vld [vmem:[#allocation8 + $0x38] sm:$0xff]
    %v1155 = vld [vmem:[#allocation8 + $0x40] sm:$0xff]
    %v1156 = vld [vmem:[#allocation8 + $0x48] sm:$0xff]
    %v1157 = vld [vmem:[#allocation8 + $0x50] sm:$0xff]
    %v1158 = vld [vmem:[#allocation8 + $0x58] sm:$0xff]
    %v1159 = vld [vmem:[#allocation8 + $0x60] sm:$0xff]
    %v1160 = vld [vmem:[#allocation8 + $0x68] sm:$0xff]
    %v1161 = vld [vmem:[#allocation8 + $0x70] sm:$0xff]
    %v1162 = vld [vmem:[#allocation8 + $0x78] sm:$0xff]
    %v1163 = vld [vmem:[#allocation8 + $0x80] sm:$0xff]
    %v1164 = vld [vmem:[#allocation8 + $0x88] sm:$0xff]
    %v1165 = vld [vmem:[#allocation8 + $0x90] sm:$0xff]
    %v1166 = vld [vmem:[#allocation8 + $0x98] sm:$0xff]
    %v1167 = vld [vmem:[#allocation8 + $0xa0] sm:$0xff]
    %v1168 = vld [vmem:[#allocation8 + $0xa8] sm:$0xff]
    %v1169 = vld [vmem:[#allocation8 + $0xb0] sm:$0xff]
    %v1170 = vld [vmem:[#allocation8 + $0xb8] sm:$0xff]
    %v1171 = vld [vmem:[#allocation8 + $0xc0] sm:$0xff]
    %v1172 = vld [vmem:[#allocation8 + $0xc8] sm:$0xff]
    %v1173 = vld [vmem:[#allocation8 + $0xd0] sm:$0xff]
    %v1174 = vld [vmem:[#allocation8 + $0xd8] sm:$0xff]
    %v1175 = vld [vmem:[#allocation8 + $0xe0] sm:$0xff]
    %v1176 = vld [vmem:[#allocation8 + $0xe8] sm:$0xff]
    %v1177 = vld [vmem:[#allocation8 + $0xf0] sm:$0xff]
    %v1178 = vld [vmem:[#allocation8 + $0xf8] sm:$0xff]
    %v1179 = vld [vmem:[#allocation8 + $0x100] sm:$0xff]
    %v1180 = vld [vmem:[#allocation8 + $0x108] sm:$0xff]
    %v1181 = vld [vmem:[#allocation8 + $0x110] sm:$0xff]
    %v1182 = vld [vmem:[#allocation8 + $0x118] sm:$0xff]
    %v1183 = vld [vmem:[#allocation8 + $0x120] sm:$0xff]
    %v1184 = vld [vmem:[#allocation8 + $0x128] sm:$0xff]
    %v1185 = vld [vmem:[#allocation8 + $0x130] sm:$0xff]
    %v1186 = vld [vmem:[#allocation8 + $0x138] sm:$0xff]
    %v1187 = vld [vmem:[#allocation8 + $0x140] sm:$0xff]
    %v1188 = vld [vmem:[#allocation8 + $0x148] sm:$0xff]
    %v1189 = vld [vmem:[#allocation8 + $0x150] sm:$0xff]
    %v1190 = vld [vmem:[#allocation8 + $0x158] sm:$0xff]
    %v1191 = vld [vmem:[#allocation8 + $0x160] sm:$0xff]
    %v1192 = vld [vmem:[#allocation8 + $0x168] sm:$0xff]
    %v1193 = vld [vmem:[#allocation8 + $0x170] sm:$0xff]
    %v1194 = vld [vmem:[#allocation8 + $0x178] sm:$0xff]
    %v1195 = vld [vmem:[#allocation8 + $0x180] sm:$0xff]
    %v1196 = vld [vmem:[#allocation8 + $0x188] sm:$0xff]
    %v1197 = vld [vmem:[#allocation8 + $0x190] sm:$0xff]
    %v1198 = vld [vmem:[#allocation8 + $0x198] sm:$0xff]
    %v1199 = vld [vmem:[#allocation8 + $0x1a0] sm:$0xff]
    %v1200 = vld [vmem:[#allocation8 + $0x1a8] sm:$0xff]
    %v1201 = vld [vmem:[#allocation8 + $0x1b0] sm:$0xff]
    %v1202 = vld [vmem:[#allocation8 + $0x1b8] sm:$0xff]
    %v1203 = vld [vmem:[#allocation8 + $0x1c0] sm:$0xff]
    %v1204 = vld [vmem:[#allocation8 + $0x1c8] sm:$0xff]
    %v1205 = vld [vmem:[#allocation8 + $0x1d0] sm:$0xff]
    %v1206 = vld [vmem:[#allocation8 + $0x1d8] sm:$0xff]
    %v1207 = vld [vmem:[#allocation8 + $0x1e0] sm:$0xff]
    %v1208 = vld [vmem:[#allocation8 + $0x1e8] sm:$0xff]
    %v1209 = vld [vmem:[#allocation8 + $0x1f0] sm:$0xff]
    %v1210 = vld [vmem:[#allocation8 + $0x1f8] sm:$0xff]
    %v1211 = vld [vmem:[#allocation8 + $0x200] sm:$0xff]
    %v1212 = vld [vmem:[#allocation8 + $0x208] sm:$0xff]
    %v1213 = vld [vmem:[#allocation8 + $0x210] sm:$0xff]
    %v1214 = vld [vmem:[#allocation8 + $0x218] sm:$0xff]
    %v1215 = vld [vmem:[#allocation8 + $0x220] sm:$0xff]
    %v1216 = vld [vmem:[#allocation8 + $0x228] sm:$0xff]
    %v1217 = vld [vmem:[#allocation8 + $0x230] sm:$0xff]
    %v1218 = vld [vmem:[#allocation8 + $0x238] sm:$0xff]
    %v1219 = vld [vmem:[#allocation8 + $0x240] sm:$0xff]
    %v1220 = vld [vmem:[#allocation8 + $0x248] sm:$0xff]
    %v1221 = vld [vmem:[#allocation8 + $0x250] sm:$0xff]
    %v1222 = vld [vmem:[#allocation8 + $0x258] sm:$0xff]
    %v1223 = vld [vmem:[#allocation8 + $0x260] sm:$0xff]
    %v1224 = vld [vmem:[#allocation8 + $0x268] sm:$0xff]
    %v1225 = vld [vmem:[#allocation8 + $0x270] sm:$0xff]
    %v1226 = vld [vmem:[#allocation8 + $0x278] sm:$0xff]
    %v1227 = vld [vmem:[#allocation8 + $0x280] sm:$0xff]
    %v1228 = vld [vmem:[#allocation8 + $0x288] sm:$0xff]
    %v1229 = vld [vmem:[#allocation8 + $0x290] sm:$0xff]
    %v1230 = vld [vmem:[#allocation8 + $0x298] sm:$0xff]
    %v1231 = vld [vmem:[#allocation8 + $0x2a0] sm:$0xff]
    %v1232 = vld [vmem:[#allocation8 + $0x2a8] sm:$0xff]
    %v1233 = vld [vmem:[#allocation8 + $0x2b0] sm:$0xff]
    %v1234 = vld [vmem:[#allocation8 + $0x2b8] sm:$0xff]
    %v1235 = vld [vmem:[#allocation8 + $0x2c0] sm:$0xff]
    %v1236 = vld [vmem:[#allocation8 + $0x2c8] sm:$0xff]
    %v1237 = vld [vmem:[#allocation8 + $0x2d0] sm:$0xff]
    %v1238 = vld [vmem:[#allocation8 + $0x2d8] sm:$0xff]
    %v1239 = vld [vmem:[#allocation8 + $0x2e0] sm:$0xff]
    %v1240 = vld [vmem:[#allocation8 + $0x2e8] sm:$0xff]
    %v1241 = vld [vmem:[#allocation8 + $0x2f0] sm:$0xff]
    %v1242 = vld [vmem:[#allocation8 + $0x2f8] sm:$0xff]
    %v1243 = vld [vmem:[#allocation8 + $0x300] sm:$0xff]
    %v1244 = vld [vmem:[#allocation8 + $0x308] sm:$0xff]
    %v1245 = vld [vmem:[#allocation8 + $0x310] sm:$0xff]
    %v1246 = vld [vmem:[#allocation8 + $0x318] sm:$0xff]
    %v1247 = vld [vmem:[#allocation8 + $0x320] sm:$0xff]
    %v1248 = vld [vmem:[#allocation8 + $0x328] sm:$0xff]
    %v1249 = vld [vmem:[#allocation8 + $0x330] sm:$0xff]
    %v1250 = vld [vmem:[#allocation8 + $0x338] sm:$0xff]
    %v1251 = vld [vmem:[#allocation8 + $0x340] sm:$0xff]
    %v1252 = vld [vmem:[#allocation8 + $0x348] sm:$0xff]
    %v1253 = vld [vmem:[#allocation8 + $0x350] sm:$0xff]
    %v1254 = vld [vmem:[#allocation8 + $0x358] sm:$0xff]
    %v1255 = vld [vmem:[#allocation8 + $0x360] sm:$0xff]
    %v1256 = vld [vmem:[#allocation8 + $0x368] sm:$0xff]
    %v1257 = vld [vmem:[#allocation8 + $0x370] sm:$0xff]
    %v1258 = vld [vmem:[#allocation8 + $0x378] sm:$0xff]
    %v1259 = vld [vmem:[#allocation8 + $0x380] sm:$0xff]
    %v1260 = vld [vmem:[#allocation8 + $0x388] sm:$0xff]
    %v1261 = vld [vmem:[#allocation8 + $0x390] sm:$0xff]
    %v1262 = vld [vmem:[#allocation8 + $0x398] sm:$0xff]
    %v1263 = vld [vmem:[#allocation8 + $0x3a0] sm:$0xff]
    %v1264 = vld [vmem:[#allocation8 + $0x3a8] sm:$0xff]
    %v1265 = vld [vmem:[#allocation8 + $0x3b0] sm:$0xff]
    %v1266 = vld [vmem:[#allocation8 + $0x3b8] sm:$0xff]
    %v1267 = vld [vmem:[#allocation8 + $0x3c0] sm:$0xff]
    %v1268 = vld [vmem:[#allocation8 + $0x3c8] sm:$0xff]
    %v1269 = vld [vmem:[#allocation8 + $0x3d0] sm:$0xff]
    %v1270 = vld [vmem:[#allocation8 + $0x3d8] sm:$0xff]
    %v1271 = vld [vmem:[#allocation8 + $0x3e0] sm:$0xff]
    %v1272 = vld [vmem:[#allocation8 + $0x3e8] sm:$0xff]
    %v1273 = vld [vmem:[#allocation8 + $0x3f0] sm:$0xff]
    %v1274 = vld [vmem:[#allocation8 + $0x3f8] sm:$0xff]
    %v1275 = vld [vmem:[#allocation8 + $0x400] sm:$0xff]
    %v1276 = vld [vmem:[#allocation8 + $0x408] sm:$0xff]
    %v1277 = vld [vmem:[#allocation8 + $0x410] sm:$0xff]
    %v1278 = vld [vmem:[#allocation8 + $0x418] sm:$0xff]
    %v1279 = vld [vmem:[#allocation8 + $0x420] sm:$0xff]
    %v1280 = vld [vmem:[#allocation8 + $0x428] sm:$0xff]
    %v1281 = vld [vmem:[#allocation8 + $0x430] sm:$0xff]
    %v1282 = vld [vmem:[#allocation8 + $0x438] sm:$0xff]
    %v1283 = vld [vmem:[#allocation8 + $0x440] sm:$0xff]
    %v1284 = vld [vmem:[#allocation8 + $0x448] sm:$0xff]
    %v1285 = vld [vmem:[#allocation8 + $0x450] sm:$0xff]
    %v1286 = vld [vmem:[#allocation8 + $0x458] sm:$0xff]
    %v1287 = vld [vmem:[#allocation8 + $0x460] sm:$0xff]
    %v1288 = vld [vmem:[#allocation8 + $0x468] sm:$0xff]
    %v1289 = vld [vmem:[#allocation8 + $0x470] sm:$0xff]
    %v1290 = vld [vmem:[#allocation8 + $0x478] sm:$0xff]
    %v1291 = vld [vmem:[#allocation8 + $0x480] sm:$0xff]
    %v1292 = vld [vmem:[#allocation8 + $0x488] sm:$0xff]
    %v1293 = vld [vmem:[#allocation8 + $0x490] sm:$0xff]
    %v1294 = vld [vmem:[#allocation8 + $0x498] sm:$0xff]
    %v1295 = vld [vmem:[#allocation8 + $0x4a0] sm:$0xff]
    %v1296 = vld [vmem:[#allocation8 + $0x4a8] sm:$0xff]
    %v1297 = vld [vmem:[#allocation8 + $0x4b0] sm:$0xff]
    %v1298 = vld [vmem:[#allocation8 + $0x4b8] sm:$0xff]
    %v1299 = vld [vmem:[#allocation8 + $0x4c0] sm:$0xff]
    %v1300 = vld [vmem:[#allocation8 + $0x4c8] sm:$0xff]
    %v1301 = vld [vmem:[#allocation8 + $0x4d0] sm:$0xff]
    %v1302 = vld [vmem:[#allocation8 + $0x4d8] sm:$0xff]
    %v1303 = vld [vmem:[#allocation8 + $0x4e0] sm:$0xff]
    %v1304 = vld [vmem:[#allocation8 + $0x4e8] sm:$0xff]
    %v1305 = vld [vmem:[#allocation8 + $0x4f0] sm:$0xff]
    %v1306 = vld [vmem:[#allocation8 + $0x4f8] sm:$0xff]
    %v1307 = vld [vmem:[#allocation8 + $0x500] sm:$0xff]
    %v1308 = vld [vmem:[#allocation8 + $0x508] sm:$0xff]
    %v1309 = vld [vmem:[#allocation8 + $0x510] sm:$0xff]
    %v1310 = vld [vmem:[#allocation8 + $0x518] sm:$0xff]
    %v1311 = vld [vmem:[#allocation8 + $0x520] sm:$0xff]
    %v1312 = vld [vmem:[#allocation8 + $0x528] sm:$0xff]
    %v1313 = vld [vmem:[#allocation8 + $0x530] sm:$0xff]
    %v1314 = vld [vmem:[#allocation8 + $0x538] sm:$0xff]
    %v1315 = vld [vmem:[#allocation8 + $0x540] sm:$0xff]
    %v1316 = vld [vmem:[#allocation8 + $0x548] sm:$0xff]
    %v1317 = vld [vmem:[#allocation8 + $0x550] sm:$0xff]
    %v1318 = vld [vmem:[#allocation8 + $0x558] sm:$0xff]
    %v1319 = vld [vmem:[#allocation8 + $0x560] sm:$0xff]
    %v1320 = vld [vmem:[#allocation8 + $0x568] sm:$0xff]
    %v1321 = vld [vmem:[#allocation8 + $0x570] sm:$0xff]
    %v1322 = vld [vmem:[#allocation8 + $0x578] sm:$0xff]
    %v1323 = vld [vmem:[#allocation8 + $0x580] sm:$0xff]
    %v1324 = vld [vmem:[#allocation8 + $0x588] sm:$0xff]
    %v1325 = vld [vmem:[#allocation8 + $0x590] sm:$0xff]
    %v1326 = vld [vmem:[#allocation8 + $0x598] sm:$0xff]
    %v1327 = vld [vmem:[#allocation8 + $0x5a0] sm:$0xff]
    %v1328 = vld [vmem:[#allocation8 + $0x5a8] sm:$0xff]
    %v1329 = vld [vmem:[#allocation8 + $0x5b0] sm:$0xff]
    %v1330 = vld [vmem:[#allocation8 + $0x5b8] sm:$0xff]
    %v1331 = vld [vmem:[#allocation8 + $0x5c0] sm:$0xff]
    %v1332 = vld [vmem:[#allocation8 + $0x5c8] sm:$0xff]
    %v1333 = vld [vmem:[#allocation8 + $0x5d0] sm:$0xff]
    %v1334 = vld [vmem:[#allocation8 + $0x5d8] sm:$0xff]
    %v1335 = vld [vmem:[#allocation8 + $0x5e0] sm:$0xff]
    %v1336 = vld [vmem:[#allocation8 + $0x5e8] sm:$0xff]
    %v1337 = vld [vmem:[#allocation8 + $0x5f0] sm:$0xff]
    %v1338 = vld [vmem:[#allocation8 + $0x5f8] sm:$0xff]
    %v1339 = vld [vmem:[#allocation8 + $0x600] sm:$0xff]
    %v1340 = vld [vmem:[#allocation8 + $0x608] sm:$0xff]
    %v1341 = vld [vmem:[#allocation8 + $0x610] sm:$0xff]
    %v1342 = vld [vmem:[#allocation8 + $0x618] sm:$0xff]
    %v1343 = vld [vmem:[#allocation8 + $0x620] sm:$0xff]
    %v1344 = vld [vmem:[#allocation8 + $0x628] sm:$0xff]
    %v1345 = vld [vmem:[#allocation8 + $0x630] sm:$0xff]
    %v1346 = vld [vmem:[#allocation8 + $0x638] sm:$0xff]
    %v1347 = vld [vmem:[#allocation8 + $0x640] sm:$0xff]
    %v1348 = vld [vmem:[#allocation8 + $0x648] sm:$0xff]
    %v1349 = vld [vmem:[#allocation8 + $0x650] sm:$0xff]
    %v1350 = vld [vmem:[#allocation8 + $0x658] sm:$0xff]
    %v1351 = vld [vmem:[#allocation8 + $0x660] sm:$0xff]
    %v1352 = vld [vmem:[#allocation8 + $0x668] sm:$0xff]
    %v1353 = vld [vmem:[#allocation8 + $0x670] sm:$0xff]
    %v1354 = vld [vmem:[#allocation8 + $0x678] sm:$0xff]
    %v1355 = vld [vmem:[#allocation8 + $0x680] sm:$0xff]
    %v1356 = vld [vmem:[#allocation8 + $0x688] sm:$0xff]
    %v1357 = vld [vmem:[#allocation8 + $0x690] sm:$0xff]
    %v1358 = vld [vmem:[#allocation8 + $0x698] sm:$0xff]
    %v1359 = vld [vmem:[#allocation8 + $0x6a0] sm:$0xff]
    %v1360 = vld [vmem:[#allocation8 + $0x6a8] sm:$0xff]
    %v1361 = vld [vmem:[#allocation8 + $0x6b0] sm:$0xff]
    %v1362 = vld [vmem:[#allocation8 + $0x6b8] sm:$0xff]
    %v1363 = vld [vmem:[#allocation8 + $0x6c0] sm:$0xff]
    %v1364 = vld [vmem:[#allocation8 + $0x6c8] sm:$0xff]
    %v1365 = vld [vmem:[#allocation8 + $0x6d0] sm:$0xff]
    %v1366 = vld [vmem:[#allocation8 + $0x6d8] sm:$0xff]
    %v1367 = vld [vmem:[#allocation8 + $0x6e0] sm:$0xff]
    %v1368 = vld [vmem:[#allocation8 + $0x6e8] sm:$0xff]
    %v1369 = vld [vmem:[#allocation8 + $0x6f0] sm:$0xff]
    %v1370 = vld [vmem:[#allocation8 + $0x6f8] sm:$0xff]
    %v1371 = vld [vmem:[#allocation8 + $0x700] sm:$0xff]
    %v1372 = vld [vmem:[#allocation8 + $0x708] sm:$0xff]
    %v1373 = vld [vmem:[#allocation8 + $0x710] sm:$0xff]
    %v1374 = vld [vmem:[#allocation8 + $0x718] sm:$0xff]
    %v1375 = vld [vmem:[#allocation8 + $0x720] sm:$0xff]
    %v1376 = vld [vmem:[#allocation8 + $0x728] sm:$0xff]
    %v1377 = vld [vmem:[#allocation8 + $0x730] sm:$0xff]
    %v1378 = vld [vmem:[#allocation8 + $0x738] sm:$0xff]
    %v1379 = vld [vmem:[#allocation8 + $0x740] sm:$0xff]
    %v1380 = vld [vmem:[#allocation8 + $0x748] sm:$0xff]
    %v1381 = vld [vmem:[#allocation8 + $0x750] sm:$0xff]
    %v1382 = vld [vmem:[#allocation8 + $0x758] sm:$0xff]
    %v1383 = vld [vmem:[#allocation8 + $0x760] sm:$0xff]
    %v1384 = vld [vmem:[#allocation8 + $0x768] sm:$0xff]
    %v1385 = vld [vmem:[#allocation8 + $0x770] sm:$0xff]
    %v1386 = vld [vmem:[#allocation8 + $0x778] sm:$0xff]
    %v1387 = vld [vmem:[#allocation8 + $0x780] sm:$0xff]
    %v1388 = vld [vmem:[#allocation8 + $0x788] sm:$0xff]
    %v1389 = vld [vmem:[#allocation8 + $0x790] sm:$0xff]
    %v1390 = vld [vmem:[#allocation8 + $0x798] sm:$0xff]
    %v1391 = vld [vmem:[#allocation8 + $0x7a0] sm:$0xff]
    %v1392 = vld [vmem:[#allocation8 + $0x7a8] sm:$0xff]
    %v1393 = vld [vmem:[#allocation8 + $0x7b0] sm:$0xff]
    %v1394 = vld [vmem:[#allocation8 + $0x7b8] sm:$0xff]
    %v1395 = vld [vmem:[#allocation8 + $0x7c0] sm:$0xff]
    %v1396 = vld [vmem:[#allocation8 + $0x7c8] sm:$0xff]
    %v1397 = vld [vmem:[#allocation8 + $0x7d0] sm:$0xff]
    %v1398 = vld [vmem:[#allocation8 + $0x7d8] sm:$0xff]
    %v1399 = vld [vmem:[#allocation8 + $0x7e0] sm:$0xff]
    %v1400 = vld [vmem:[#allocation8 + $0x7e8] sm:$0xff]
    %v1401 = vld [vmem:[#allocation8 + $0x7f0] sm:$0xff]
    %v1402 = vld [vmem:[#allocation8 + $0x7f8] sm:$0xff]
    %v1403 = vld [vmem:[#allocation8 + $0x800] sm:$0xff]
    %v1404 = vld [vmem:[#allocation8 + $0x808] sm:$0xff]
    %v1405 = vld [vmem:[#allocation8 + $0x810] sm:$0xff]
    %v1406 = vld [vmem:[#allocation8 + $0x818] sm:$0xff]
    %v1407 = vld [vmem:[#allocation8 + $0x820] sm:$0xff]
    %v1408 = vld [vmem:[#allocation8 + $0x828] sm:$0xff]
    %v1409 = vld [vmem:[#allocation8 + $0x830] sm:$0xff]
    %v1410 = vld [vmem:[#allocation8 + $0x838] sm:$0xff]
    %v1411 = vld [vmem:[#allocation8 + $0x840] sm:$0xff]
    %v1412 = vld [vmem:[#allocation8 + $0x848] sm:$0xff]
    %v1413 = vld [vmem:[#allocation8 + $0x850] sm:$0xff]
    %v1414 = vld [vmem:[#allocation8 + $0x858] sm:$0xff]
    %v1415 = vld [vmem:[#allocation8 + $0x860] sm:$0xff]
    %v1416 = vld [vmem:[#allocation8 + $0x868] sm:$0xff]
    %v1417 = vld [vmem:[#allocation8 + $0x870] sm:$0xff]
    %v1418 = vld [vmem:[#allocation8 + $0x878] sm:$0xff]
    %v1419 = vld [vmem:[#allocation8 + $0x880] sm:$0xff]
    %v1420 = vld [vmem:[#allocation8 + $0x888] sm:$0xff]
    %v1421 = vld [vmem:[#allocation8 + $0x890] sm:$0xff]
    %v1422 = vld [vmem:[#allocation8 + $0x898] sm:$0xff]
    %v1423 = vld [vmem:[#allocation8 + $0x8a0] sm:$0xff]
    %v1424 = vld [vmem:[#allocation8 + $0x8a8] sm:$0xff]
    %v1425 = vld [vmem:[#allocation8 + $0x8b0] sm:$0xff]
    %v1426 = vld [vmem:[#allocation8 + $0x8b8] sm:$0xff]
    %v1427 = vld [vmem:[#allocation8 + $0x8c0] sm:$0xff]
    %v1428 = vld [vmem:[#allocation8 + $0x8c8] sm:$0xff]
    %v1429 = vld [vmem:[#allocation8 + $0x8d0] sm:$0xff]
    %v1430 = vld [vmem:[#allocation8 + $0x8d8] sm:$0xff]
    %v1431 = vld [vmem:[#allocation8 + $0x8e0] sm:$0xff]
    %v1432 = vld [vmem:[#allocation8 + $0x8e8] sm:$0xff]
    %v1433 = vld [vmem:[#allocation8 + $0x8f0] sm:$0xff]
    %v1434 = vld [vmem:[#allocation8 + $0x8f8] sm:$0xff]
    %v1435 = vld [vmem:[#allocation8 + $0x900] sm:$0xff]
    %v1436 = vld [vmem:[#allocation8 + $0x908] sm:$0xff]
    %v1437 = vld [vmem:[#allocation8 + $0x910] sm:$0xff]
    %v1438 = vld [vmem:[#allocation8 + $0x918] sm:$0xff]
    %v1439 = vld [vmem:[#allocation8 + $0x920] sm:$0xff]
    %v1440 = vld [vmem:[#allocation8 + $0x928] sm:$0xff]
    %v1441 = vld [vmem:[#allocation8 + $0x930] sm:$0xff]
    %v1442 = vld [vmem:[#allocation8 + $0x938] sm:$0xff]
    %v1443 = vld [vmem:[#allocation8 + $0x940] sm:$0xff]
    %v1444 = vld [vmem:[#allocation8 + $0x948] sm:$0xff]
    %v1445 = vld [vmem:[#allocation8 + $0x950] sm:$0xff]
    %v1446 = vld [vmem:[#allocation8 + $0x958] sm:$0xff]
    %v1447 = vld [vmem:[#allocation8 + $0x960] sm:$0xff]
    %v1448 = vld [vmem:[#allocation8 + $0x968] sm:$0xff]
    %v1449 = vld [vmem:[#allocation8 + $0x970] sm:$0xff]
    %v1450 = vld [vmem:[#allocation8 + $0x978] sm:$0xff]
    %v1451 = vld [vmem:[#allocation8 + $0x980] sm:$0xff]
    %v1452 = vld [vmem:[#allocation8 + $0x988] sm:$0xff]
    %v1453 = vld [vmem:[#allocation8 + $0x990] sm:$0xff]
    %v1454 = vld [vmem:[#allocation8 + $0x998] sm:$0xff]
    %v1455 = vld [vmem:[#allocation8 + $0x9a0] sm:$0xff]
    %v1456 = vld [vmem:[#allocation8 + $0x9a8] sm:$0xff]
    %v1457 = vld [vmem:[#allocation8 + $0x9b0] sm:$0xff]
    %v1458 = vld [vmem:[#allocation8 + $0x9b8] sm:$0xff]
    %v1459 = vld [vmem:[#allocation8 + $0x9c0] sm:$0xff]
    %v1460 = vld [vmem:[#allocation8 + $0x9c8] sm:$0xff]
    %v1461 = vld [vmem:[#allocation8 + $0x9d0] sm:$0xff]
    %v1462 = vld [vmem:[#allocation8 + $0x9d8] sm:$0xff]
    %v1463 = vld [vmem:[#allocation8 + $0x9e0] sm:$0xff]
    %v1464 = vld [vmem:[#allocation8 + $0x9e8] sm:$0xff]
    %v1465 = vld [vmem:[#allocation8 + $0x9f0] sm:$0xff]
    %v1466 = vld [vmem:[#allocation8 + $0x9f8] sm:$0xff]
    %v1467 = vld [vmem:[#allocation8 + $0xa00] sm:$0xff]
    %v1468 = vld [vmem:[#allocation8 + $0xa08] sm:$0xff]
    %v1469 = vld [vmem:[#allocation8 + $0xa10] sm:$0xff]
    %v1470 = vld [vmem:[#allocation8 + $0xa18] sm:$0xff]
    %v1471 = vld [vmem:[#allocation8 + $0xa20] sm:$0xff]
    %v1472 = vld [vmem:[#allocation8 + $0xa28] sm:$0xff]
    %v1473 = vld [vmem:[#allocation8 + $0xa30] sm:$0xff]
    %v1474 = vld [vmem:[#allocation8 + $0xa38] sm:$0xff]
    %v1475 = vld [vmem:[#allocation8 + $0xa40] sm:$0xff]
    %v1476 = vld [vmem:[#allocation8 + $0xa48] sm:$0xff]
    %v1477 = vld [vmem:[#allocation8 + $0xa50] sm:$0xff]
    %v1478 = vld [vmem:[#allocation8 + $0xa58] sm:$0xff]
    %v1479 = vld [vmem:[#allocation8 + $0xa60] sm:$0xff]
    %v1480 = vld [vmem:[#allocation8 + $0xa68] sm:$0xff]
    %v1481 = vld [vmem:[#allocation8 + $0xa70] sm:$0xff]
    %v1482 = vld [vmem:[#allocation8 + $0xa78] sm:$0xff]
    %v1483 = vld [vmem:[#allocation8 + $0xa80] sm:$0xff]
    %v1484 = vld [vmem:[#allocation8 + $0xa88] sm:$0xff]
    %v1485 = vld [vmem:[#allocation8 + $0xa90] sm:$0xff]
    %v1486 = vld [vmem:[#allocation8 + $0xa98] sm:$0xff]
    %v1487 = vld [vmem:[#allocation8 + $0xaa0] sm:$0xff]
    %v1488 = vld [vmem:[#allocation8 + $0xaa8] sm:$0xff]
    %v1489 = vld [vmem:[#allocation8 + $0xab0] sm:$0xff]
    %v1490 = vld [vmem:[#allocation8 + $0xab8] sm:$0xff]
    %v1491 = vld [vmem:[#allocation8 + $0xac0] sm:$0xff]
    %v1492 = vld [vmem:[#allocation8 + $0xac8] sm:$0xff]
    %v1493 = vld [vmem:[#allocation8 + $0xad0] sm:$0xff]
    %v1494 = vld [vmem:[#allocation8 + $0xad8] sm:$0xff]
    %v1495 = vld [vmem:[#allocation8 + $0xae0] sm:$0xff]
    %v1496 = vld [vmem:[#allocation8 + $0xae8] sm:$0xff]
    %v1497 = vld [vmem:[#allocation8 + $0xaf0] sm:$0xff]
    %v1498 = vld [vmem:[#allocation8 + $0xaf8] sm:$0xff]
    %v1499 = vld [vmem:[#allocation8 + $0xb00] sm:$0xff]
    %v1500 = vld [vmem:[#allocation8 + $0xb08] sm:$0xff]
    %v1501 = vld [vmem:[#allocation8 + $0xb10] sm:$0xff]
    %v1502 = vld [vmem:[#allocation8 + $0xb18] sm:$0xff]
    %v1503 = vld [vmem:[#allocation8 + $0xb20] sm:$0xff]
    %v1504 = vld [vmem:[#allocation8 + $0xb28] sm:$0xff]
    %v1505 = vld [vmem:[#allocation8 + $0xb30] sm:$0xff]
    %v1506 = vld [vmem:[#allocation8 + $0xb38] sm:$0xff]
    %v1507 = vld [vmem:[#allocation8 + $0xb40] sm:$0xff]
    %v1508 = vld [vmem:[#allocation8 + $0xb48] sm:$0xff]
    %v1509 = vld [vmem:[#allocation8 + $0xb50] sm:$0xff]
    %v1510 = vld [vmem:[#allocation8 + $0xb58] sm:$0xff]
    %v1511 = vld [vmem:[#allocation8 + $0xb60] sm:$0xff]
    %v1512 = vld [vmem:[#allocation8 + $0xb68] sm:$0xff]
    %v1513 = vld [vmem:[#allocation8 + $0xb70] sm:$0xff]
    %v1514 = vld [vmem:[#allocation8 + $0xb78] sm:$0xff]
    %v1515 = vld [vmem:[#allocation8 + $0xb80] sm:$0xff]
    %v1516 = vld [vmem:[#allocation8 + $0xb88] sm:$0xff]
    %v1517 = vld [vmem:[#allocation8 + $0xb90] sm:$0xff]
    %v1518 = vld [vmem:[#allocation8 + $0xb98] sm:$0xff]
    %v1519 = vld [vmem:[#allocation8 + $0xba0] sm:$0xff]
    %v1520 = vld [vmem:[#allocation8 + $0xba8] sm:$0xff]
    %v1521 = vld [vmem:[#allocation8 + $0xbb0] sm:$0xff]
    %v1522 = vld [vmem:[#allocation8 + $0xbb8] sm:$0xff]
    %v1523 = vld [vmem:[#allocation8 + $0xbc0] sm:$0xff]
    %v1524 = vld [vmem:[#allocation8 + $0xbc8] sm:$0xff]
    %v1525 = vld [vmem:[#allocation8 + $0xbd0] sm:$0xff]
    %v1526 = vld [vmem:[#allocation8 + $0xbd8] sm:$0xff]
    %v1527 = vld [vmem:[#allocation8 + $0xbe0] sm:$0xff]
    %v1528 = vld [vmem:[#allocation8 + $0xbe8] sm:$0xff]
    %v1529 = vld [vmem:[#allocation8 + $0xbf0] sm:$0xff]
    %v1530 = vld [vmem:[#allocation8 + $0xbf8] sm:$0xff]
    %v1531 = vld [vmem:[#allocation8 + $0xc00] sm:$0xff]
    %v1532 = vld [vmem:[#allocation8 + $0xc08] sm:$0xff]
    %v1533 = vld [vmem:[#allocation8 + $0xc10] sm:$0xff]
    %v1534 = vld [vmem:[#allocation8 + $0xc18] sm:$0xff]
    %v1535 = vld [vmem:[#allocation8 + $0xc20] sm:$0xff]
    %v1536 = vld [vmem:[#allocation8 + $0xc28] sm:$0xff]
    %v1537 = vld [vmem:[#allocation8 + $0xc30] sm:$0xff]
    %v1538 = vld [vmem:[#allocation8 + $0xc38] sm:$0xff]
    %v1539 = vld [vmem:[#allocation8 + $0xc40] sm:$0xff]
    %v1540 = vld [vmem:[#allocation8 + $0xc48] sm:$0xff]
    %v1541 = vld [vmem:[#allocation8 + $0xc50] sm:$0xff]
    %v1542 = vld [vmem:[#allocation8 + $0xc58] sm:$0xff]
    %v1543 = vld [vmem:[#allocation8 + $0xc60] sm:$0xff]
    %v1544 = vld [vmem:[#allocation8 + $0xc68] sm:$0xff]
    %v1545 = vld [vmem:[#allocation8 + $0xc70] sm:$0xff]
    %v1546 = vld [vmem:[#allocation8 + $0xc78] sm:$0xff]
    %v1547 = vld [vmem:[#allocation8 + $0xc80] sm:$0xff]
    %v1548 = vld [vmem:[#allocation8 + $0xc88] sm:$0xff]
    %v1549 = vld [vmem:[#allocation8 + $0xc90] sm:$0xff]
    %v1550 = vld [vmem:[#allocation8 + $0xc98] sm:$0xff]
    %v1551 = vld [vmem:[#allocation8 + $0xca0] sm:$0xff]
    %v1552 = vld [vmem:[#allocation8 + $0xca8] sm:$0xff]
    %v1553 = vld [vmem:[#allocation8 + $0xcb0] sm:$0xff]
    %v1554 = vld [vmem:[#allocation8 + $0xcb8] sm:$0xff]
    %v1555 = vld [vmem:[#allocation8 + $0xcc0] sm:$0xff]
    %v1556 = vld [vmem:[#allocation8 + $0xcc8] sm:$0xff]
    %v1557 = vld [vmem:[#allocation8 + $0xcd0] sm:$0xff]
    %v1558 = vld [vmem:[#allocation8 + $0xcd8] sm:$0xff]
    %v1559 = vld [vmem:[#allocation8 + $0xce0] sm:$0xff]
    %v1560 = vld [vmem:[#allocation8 + $0xce8] sm:$0xff]
    %v1561 = vld [vmem:[#allocation8 + $0xcf0] sm:$0xff]
    %v1562 = vld [vmem:[#allocation8 + $0xcf8] sm:$0xff]
    %v1563 = vld [vmem:[#allocation8 + $0xd00] sm:$0xff]
    %v1564 = vld [vmem:[#allocation8 + $0xd08] sm:$0xff]
    %v1565 = vld [vmem:[#allocation8 + $0xd10] sm:$0xff]
    %v1566 = vld [vmem:[#allocation8 + $0xd18] sm:$0xff]
    %v1567 = vld [vmem:[#allocation8 + $0xd20] sm:$0xff]
    %v1568 = vld [vmem:[#allocation8 + $0xd28] sm:$0xff]
    %v1569 = vld [vmem:[#allocation8 + $0xd30] sm:$0xff]
    %v1570 = vld [vmem:[#allocation8 + $0xd38] sm:$0xff]
    %v1571 = vld [vmem:[#allocation8 + $0xd40] sm:$0xff]
    %v1572 = vld [vmem:[#allocation8 + $0xd48] sm:$0xff]
    %v1573 = vld [vmem:[#allocation8 + $0xd50] sm:$0xff]
    %v1574 = vld [vmem:[#allocation8 + $0xd58] sm:$0xff]
    %v1575 = vld [vmem:[#allocation8 + $0xd60] sm:$0xff]
    %v1576 = vld [vmem:[#allocation8 + $0xd68] sm:$0xff]
    %v1577 = vld [vmem:[#allocation8 + $0xd70] sm:$0xff]
    %v1578 = vld [vmem:[#allocation8 + $0xd78] sm:$0xff]
    %v1579 = vld [vmem:[#allocation8 + $0xd80] sm:$0xff]
    %v1580 = vld [vmem:[#allocation8 + $0xd88] sm:$0xff]
    %v1581 = vld [vmem:[#allocation8 + $0xd90] sm:$0xff]
    %v1582 = vld [vmem:[#allocation8 + $0xd98] sm:$0xff]
    %v1583 = vld [vmem:[#allocation8 + $0xda0] sm:$0xff]
    %v1584 = vld [vmem:[#allocation8 + $0xda8] sm:$0xff]
    %v1585 = vld [vmem:[#allocation8 + $0xdb0] sm:$0xff]
    %v1586 = vld [vmem:[#allocation8 + $0xdb8] sm:$0xff]
    %v1587 = vld [vmem:[#allocation8 + $0xdc0] sm:$0xff]
    %v1588 = vld [vmem:[#allocation8 + $0xdc8] sm:$0xff]
    %v1589 = vld [vmem:[#allocation8 + $0xdd0] sm:$0xff]
    %v1590 = vld [vmem:[#allocation8 + $0xdd8] sm:$0xff]
    %v1591 = vld [vmem:[#allocation8 + $0xde0] sm:$0xff]
    %v1592 = vld [vmem:[#allocation8 + $0xde8] sm:$0xff]
    %v1593 = vld [vmem:[#allocation8 + $0xdf0] sm:$0xff]
    %v1594 = vld [vmem:[#allocation8 + $0xdf8] sm:$0xff]
    %v1595 = vld [vmem:[#allocation8 + $0xe00] sm:$0xff]
    %v1596 = vld [vmem:[#allocation8 + $0xe08] sm:$0xff]
    %v1597 = vld [vmem:[#allocation8 + $0xe10] sm:$0xff]
    %v1598 = vld [vmem:[#allocation8 + $0xe18] sm:$0xff]
    %v1599 = vld [vmem:[#allocation8 + $0xe20] sm:$0xff]
    %v1600 = vld [vmem:[#allocation8 + $0xe28] sm:$0xff]
    %v1601 = vld [vmem:[#allocation8 + $0xe30] sm:$0xff]
    %v1602 = vld [vmem:[#allocation8 + $0xe38] sm:$0xff]
    %v1603 = vld [vmem:[#allocation8 + $0xe40] sm:$0xff]
    %v1604 = vld [vmem:[#allocation8 + $0xe48] sm:$0xff]
    %v1605 = vld [vmem:[#allocation8 + $0xe50] sm:$0xff]
    %v1606 = vld [vmem:[#allocation8 + $0xe58] sm:$0xff]
    %v1607 = vld [vmem:[#allocation8 + $0xe60] sm:$0xff]
    %v1608 = vld [vmem:[#allocation8 + $0xe68] sm:$0xff]
    %v1609 = vld [vmem:[#allocation8 + $0xe70] sm:$0xff]
    %v1610 = vld [vmem:[#allocation8 + $0xe78] sm:$0xff]
    %v1611 = vld [vmem:[#allocation8 + $0xe80] sm:$0xff]
    %v1612 = vld [vmem:[#allocation8 + $0xe88] sm:$0xff]
    %v1613 = vld [vmem:[#allocation8 + $0xe90] sm:$0xff]
    %v1614 = vld [vmem:[#allocation8 + $0xe98] sm:$0xff]
    %v1615 = vld [vmem:[#allocation8 + $0xea0] sm:$0xff]
    %v1616 = vld [vmem:[#allocation8 + $0xea8] sm:$0xff]
    %v1617 = vld [vmem:[#allocation8 + $0xeb0] sm:$0xff]
    %v1618 = vld [vmem:[#allocation8 + $0xeb8] sm:$0xff]
    %v1619 = vld [vmem:[#allocation8 + $0xec0] sm:$0xff]
    %v1620 = vld [vmem:[#allocation8 + $0xec8] sm:$0xff]
    %v1621 = vld [vmem:[#allocation8 + $0xed0] sm:$0xff]
    %v1622 = vld [vmem:[#allocation8 + $0xed8] sm:$0xff]
    %v1623 = vld [vmem:[#allocation8 + $0xee0] sm:$0xff]
    %v1624 = vld [vmem:[#allocation8 + $0xee8] sm:$0xff]
    %v1625 = vld [vmem:[#allocation8 + $0xef0] sm:$0xff]
    %v1626 = vld [vmem:[#allocation8 + $0xef8] sm:$0xff]
    %v1627 = vld [vmem:[#allocation8 + $0xf00] sm:$0xff]
    %v1628 = vld [vmem:[#allocation8 + $0xf08] sm:$0xff]
    %v1629 = vld [vmem:[#allocation8 + $0xf10] sm:$0xff]
    %v1630 = vld [vmem:[#allocation8 + $0xf18] sm:$0xff]
    %v1631 = vld [vmem:[#allocation8 + $0xf20] sm:$0xff]
    %v1632 = vld [vmem:[#allocation8 + $0xf28] sm:$0xff]
    %v1633 = vld [vmem:[#allocation8 + $0xf30] sm:$0xff]
    %v1634 = vld [vmem:[#allocation8 + $0xf38] sm:$0xff]
    %v1635 = vld [vmem:[#allocation8 + $0xf40] sm:$0xff]
    %v1636 = vld [vmem:[#allocation8 + $0xf48] sm:$0xff]
    %v1637 = vld [vmem:[#allocation8 + $0xf50] sm:$0xff]
    %v1638 = vld [vmem:[#allocation8 + $0xf58] sm:$0xff]
    %v1639 = vld [vmem:[#allocation8 + $0xf60] sm:$0xff]
    %v1640 = vld [vmem:[#allocation8 + $0xf68] sm:$0xff]
    %v1641 = vld [vmem:[#allocation8 + $0xf70] sm:$0xff]
    %v1642 = vld [vmem:[#allocation8 + $0xf78] sm:$0xff]
    %v1643 = vld [vmem:[#allocation8 + $0xf80] sm:$0xff]
    %v1644 = vld [vmem:[#allocation8 + $0xf88] sm:$0xff]
    %v1645 = vld [vmem:[#allocation8 + $0xf90] sm:$0xff]
    %v1646 = vld [vmem:[#allocation8 + $0xf98] sm:$0xff]
    %v1647 = vld [vmem:[#allocation8 + $0xfa0] sm:$0xff]
    %v1648 = vld [vmem:[#allocation8 + $0xfa8] sm:$0xff]
    %v1649 = vld [vmem:[#allocation8 + $0xfb0] sm:$0xff]
    %v1650 = vld [vmem:[#allocation8 + $0xfb8] sm:$0xff]
    %v1651 = vld [vmem:[#allocation8 + $0xfc0] sm:$0xff]
    %v1652 = vld [vmem:[#allocation8 + $0xfc8] sm:$0xff]
    %v1653 = vld [vmem:[#allocation8 + $0xfd0] sm:$0xff]
    %v1654 = vld [vmem:[#allocation8 + $0xfd8] sm:$0xff]
    %v1655 = vld [vmem:[#allocation8 + $0xfe0] sm:$0xff]
    %v1656 = vld [vmem:[#allocation8 + $0xfe8] sm:$0xff]
    %v1657 = vld [vmem:[#allocation8 + $0xff0] sm:$0xff]
    %v1658 = vld [vmem:[#allocation8 + $0xff8] sm:$0xff]
    %v1659 = vld [vmem:[#allocation10] sm:$0xff]
    %v1661 = vlaneseq
    %v1662 = vshrl.u32 %v1661, 7
    %v1663 = vsub.s32 0, %v1662
    %v1664 = vrot.slane %v1659, %v1663
    %v1665 = vlaneseq
    %v1666 = vshrl.u32 %v1665, 7
    %v1667 = vsub.s32 1, %v1666
    %v1668 = vrot.slane %v1659, %v1667
    %v1669 = vlaneseq
    %v1670 = vshrl.u32 %v1669, 7
    %v1671 = vsub.s32 2, %v1670
    %v1672 = vrot.slane %v1659, %v1671
    %v1673 = vlaneseq
    %v1674 = vshrl.u32 %v1673, 7
    %v1675 = vsub.s32 3, %v1674
    %v1676 = vrot.slane %v1659, %v1675
    %v1677 = vlaneseq
    %v1678 = vshrl.u32 %v1677, 7
    %v1679 = vsub.s32 4, %v1678
    %v1680 = vrot.slane %v1659, %v1679
    %v1681 = vlaneseq
    %v1682 = vshrl.u32 %v1681, 7
    %v1683 = vsub.s32 5, %v1682
    %v1684 = vrot.slane %v1659, %v1683
    %v1685 = vlaneseq
    %v1686 = vshrl.u32 %v1685, 7
    %v1687 = vsub.s32 6, %v1686
    %v1688 = vrot.slane %v1659, %v1687
    %v1689 = vlaneseq
    %v1690 = vshrl.u32 %v1689, 7
    %v1691 = vsub.s32 7, %v1690
    %v1692 = vrot.slane %v1659, %v1691
    %v2213 = vunpack.c.l.b16 %v1147
    %v2214 = vunpack.c.h.b16 %v1147
    %v2215 = vunpack.c.l.b16 %v1148
    %v2216 = vunpack.c.h.b16 %v1148
    %v2217 = vunpack.c.l.b16 %v1149
    %v2218 = vunpack.c.h.b16 %v1149
    %v2219 = vunpack.c.l.b16 %v1150
    %v2220 = vunpack.c.h.b16 %v1150
    %v2221 = vunpack.c.l.b16 %v1151
    %v2222 = vunpack.c.h.b16 %v1151
    %v2223 = vunpack.c.l.b16 %v1152
    %v2224 = vunpack.c.h.b16 %v1152
    %v2225 = vunpack.c.l.b16 %v1153
    %v2226 = vunpack.c.h.b16 %v1153
    %v2227 = vunpack.c.l.b16 %v1154
    %v2228 = vunpack.c.h.b16 %v1154
    %v2229 = vunpack.c.l.b16 %v1155
    %v2230 = vunpack.c.h.b16 %v1155
    %v2231 = vunpack.c.l.b16 %v1156
    %v2232 = vunpack.c.h.b16 %v1156
    %v2233 = vunpack.c.l.b16 %v1157
    %v2234 = vunpack.c.h.b16 %v1157
    %v2235 = vunpack.c.l.b16 %v1158
    %v2236 = vunpack.c.h.b16 %v1158
    %v2237 = vunpack.c.l.b16 %v1159
    %v2238 = vunpack.c.h.b16 %v1159
    %v2239 = vunpack.c.l.b16 %v1160
    %v2240 = vunpack.c.h.b16 %v1160
    %v2241 = vunpack.c.l.b16 %v1161
    %v2242 = vunpack.c.h.b16 %v1161
    %v2243 = vunpack.c.l.b16 %v1162
    %v2244 = vunpack.c.h.b16 %v1162
    %v2245 = vunpack.c.l.b16 %v1163
    %v2246 = vunpack.c.h.b16 %v1163
    %v2247 = vunpack.c.l.b16 %v1164
    %v2248 = vunpack.c.h.b16 %v1164
    %v2249 = vunpack.c.l.b16 %v1165
    %v2250 = vunpack.c.h.b16 %v1165
    %v2251 = vunpack.c.l.b16 %v1166
    %v2252 = vunpack.c.h.b16 %v1166
    %v2253 = vunpack.c.l.b16 %v1167
    %v2254 = vunpack.c.h.b16 %v1167
    %v2255 = vunpack.c.l.b16 %v1168
    %v2256 = vunpack.c.h.b16 %v1168
    %v2257 = vunpack.c.l.b16 %v1169
    %v2258 = vunpack.c.h.b16 %v1169
    %v2259 = vunpack.c.l.b16 %v1170
    %v2260 = vunpack.c.h.b16 %v1170
    %v2261 = vunpack.c.l.b16 %v1171
    %v2262 = vunpack.c.h.b16 %v1171
    %v2263 = vunpack.c.l.b16 %v1172
    %v2264 = vunpack.c.h.b16 %v1172
    %v2265 = vunpack.c.l.b16 %v1173
    %v2266 = vunpack.c.h.b16 %v1173
    %v2267 = vunpack.c.l.b16 %v1174
    %v2268 = vunpack.c.h.b16 %v1174
    %v2269 = vunpack.c.l.b16 %v1175
    %v2270 = vunpack.c.h.b16 %v1175
    %v2271 = vunpack.c.l.b16 %v1176
    %v2272 = vunpack.c.h.b16 %v1176
    %v2273 = vunpack.c.l.b16 %v1177
    %v2274 = vunpack.c.h.b16 %v1177
    %v2275 = vunpack.c.l.b16 %v1178
    %v2276 = vunpack.c.h.b16 %v1178
    %v2277 = vunpack.c.l.b16 %v1179
    %v2278 = vunpack.c.h.b16 %v1179
    %v2279 = vunpack.c.l.b16 %v1180
    %v2280 = vunpack.c.h.b16 %v1180
    %v2281 = vunpack.c.l.b16 %v1181
    %v2282 = vunpack.c.h.b16 %v1181
    %v2283 = vunpack.c.l.b16 %v1182
    %v2284 = vunpack.c.h.b16 %v1182
    %v2285 = vunpack.c.l.b16 %v1183
    %v2286 = vunpack.c.h.b16 %v1183
    %v2287 = vunpack.c.l.b16 %v1184
    %v2288 = vunpack.c.h.b16 %v1184
    %v2289 = vunpack.c.l.b16 %v1185
    %v2290 = vunpack.c.h.b16 %v1185
    %v2291 = vunpack.c.l.b16 %v1186
    %v2292 = vunpack.c.h.b16 %v1186
    %v2293 = vunpack.c.l.b16 %v1187
    %v2294 = vunpack.c.h.b16 %v1187
    %v2295 = vunpack.c.l.b16 %v1188
    %v2296 = vunpack.c.h.b16 %v1188
    %v2297 = vunpack.c.l.b16 %v1189
    %v2298 = vunpack.c.h.b16 %v1189
    %v2299 = vunpack.c.l.b16 %v1190
    %v2300 = vunpack.c.h.b16 %v1190
    %v2301 = vunpack.c.l.b16 %v1191
    %v2302 = vunpack.c.h.b16 %v1191
    %v2303 = vunpack.c.l.b16 %v1192
    %v2304 = vunpack.c.h.b16 %v1192
    %v2305 = vunpack.c.l.b16 %v1193
    %v2306 = vunpack.c.h.b16 %v1193
    %v2307 = vunpack.c.l.b16 %v1194
    %v2308 = vunpack.c.h.b16 %v1194
    %v2309 = vunpack.c.l.b16 %v1195
    %v2310 = vunpack.c.h.b16 %v1195
    %v2311 = vunpack.c.l.b16 %v1196
    %v2312 = vunpack.c.h.b16 %v1196
    %v2313 = vunpack.c.l.b16 %v1197
    %v2314 = vunpack.c.h.b16 %v1197
    %v2315 = vunpack.c.l.b16 %v1198
    %v2316 = vunpack.c.h.b16 %v1198
    %v2317 = vunpack.c.l.b16 %v1199
    %v2318 = vunpack.c.h.b16 %v1199
    %v2319 = vunpack.c.l.b16 %v1200
    %v2320 = vunpack.c.h.b16 %v1200
    %v2321 = vunpack.c.l.b16 %v1201
    %v2322 = vunpack.c.h.b16 %v1201
    %v2323 = vunpack.c.l.b16 %v1202
    %v2324 = vunpack.c.h.b16 %v1202
    %v2325 = vunpack.c.l.b16 %v1203
    %v2326 = vunpack.c.h.b16 %v1203
    %v2327 = vunpack.c.l.b16 %v1204
    %v2328 = vunpack.c.h.b16 %v1204
    %v2329 = vunpack.c.l.b16 %v1205
    %v2330 = vunpack.c.h.b16 %v1205
    %v2331 = vunpack.c.l.b16 %v1206
    %v2332 = vunpack.c.h.b16 %v1206
    %v2333 = vunpack.c.l.b16 %v1207
    %v2334 = vunpack.c.h.b16 %v1207
    %v2335 = vunpack.c.l.b16 %v1208
    %v2336 = vunpack.c.h.b16 %v1208
    %v2337 = vunpack.c.l.b16 %v1209
    %v2338 = vunpack.c.h.b16 %v1209
    %v2339 = vunpack.c.l.b16 %v1210
    %v2340 = vunpack.c.h.b16 %v1210
    %v2341 = vunpack.c.l.b16 %v1211
    %v2342 = vunpack.c.h.b16 %v1211
    %v2343 = vunpack.c.l.b16 %v1212
    %v2344 = vunpack.c.h.b16 %v1212
    %v2345 = vunpack.c.l.b16 %v1213
    %v2346 = vunpack.c.h.b16 %v1213
    %v2347 = vunpack.c.l.b16 %v1214
    %v2348 = vunpack.c.h.b16 %v1214
    %v2349 = vunpack.c.l.b16 %v1215
    %v2350 = vunpack.c.h.b16 %v1215
    %v2351 = vunpack.c.l.b16 %v1216
    %v2352 = vunpack.c.h.b16 %v1216
    %v2353 = vunpack.c.l.b16 %v1217
    %v2354 = vunpack.c.h.b16 %v1217
    %v2355 = vunpack.c.l.b16 %v1218
    %v2356 = vunpack.c.h.b16 %v1218
    %v2357 = vunpack.c.l.b16 %v1219
    %v2358 = vunpack.c.h.b16 %v1219
    %v2359 = vunpack.c.l.b16 %v1220
    %v2360 = vunpack.c.h.b16 %v1220
    %v2361 = vunpack.c.l.b16 %v1221
    %v2362 = vunpack.c.h.b16 %v1221
    %v2363 = vunpack.c.l.b16 %v1222
    %v2364 = vunpack.c.h.b16 %v1222
    %v2365 = vunpack.c.l.b16 %v1223
    %v2366 = vunpack.c.h.b16 %v1223
    %v2367 = vunpack.c.l.b16 %v1224
    %v2368 = vunpack.c.h.b16 %v1224
    %v2369 = vunpack.c.l.b16 %v1225
    %v2370 = vunpack.c.h.b16 %v1225
    %v2371 = vunpack.c.l.b16 %v1226
    %v2372 = vunpack.c.h.b16 %v1226
    %v2373 = vunpack.c.l.b16 %v1227
    %v2374 = vunpack.c.h.b16 %v1227
    %v2375 = vunpack.c.l.b16 %v1228
    %v2376 = vunpack.c.h.b16 %v1228
    %v2377 = vunpack.c.l.b16 %v1229
    %v2378 = vunpack.c.h.b16 %v1229
    %v2379 = vunpack.c.l.b16 %v1230
    %v2380 = vunpack.c.h.b16 %v1230
    %v2381 = vunpack.c.l.b16 %v1231
    %v2382 = vunpack.c.h.b16 %v1231
    %v2383 = vunpack.c.l.b16 %v1232
    %v2384 = vunpack.c.h.b16 %v1232
    %v2385 = vunpack.c.l.b16 %v1233
    %v2386 = vunpack.c.h.b16 %v1233
    %v2387 = vunpack.c.l.b16 %v1234
    %v2388 = vunpack.c.h.b16 %v1234
    %v2389 = vunpack.c.l.b16 %v1235
    %v2390 = vunpack.c.h.b16 %v1235
    %v2391 = vunpack.c.l.b16 %v1236
    %v2392 = vunpack.c.h.b16 %v1236
    %v2393 = vunpack.c.l.b16 %v1237
    %v2394 = vunpack.c.h.b16 %v1237
    %v2395 = vunpack.c.l.b16 %v1238
    %v2396 = vunpack.c.h.b16 %v1238
    %v2397 = vunpack.c.l.b16 %v1239
    %v2398 = vunpack.c.h.b16 %v1239
    %v2399 = vunpack.c.l.b16 %v1240
    %v2400 = vunpack.c.h.b16 %v1240
    %v2401 = vunpack.c.l.b16 %v1241
    %v2402 = vunpack.c.h.b16 %v1241
    %v2403 = vunpack.c.l.b16 %v1242
    %v2404 = vunpack.c.h.b16 %v1242
    %v2405 = vunpack.c.l.b16 %v1243
    %v2406 = vunpack.c.h.b16 %v1243
    %v2407 = vunpack.c.l.b16 %v1244
    %v2408 = vunpack.c.h.b16 %v1244
    %v2409 = vunpack.c.l.b16 %v1245
    %v2410 = vunpack.c.h.b16 %v1245
    %v2411 = vunpack.c.l.b16 %v1246
    %v2412 = vunpack.c.h.b16 %v1246
    %v2413 = vunpack.c.l.b16 %v1247
    %v2414 = vunpack.c.h.b16 %v1247
    %v2415 = vunpack.c.l.b16 %v1248
    %v2416 = vunpack.c.h.b16 %v1248
    %v2417 = vunpack.c.l.b16 %v1249
    %v2418 = vunpack.c.h.b16 %v1249
    %v2419 = vunpack.c.l.b16 %v1250
    %v2420 = vunpack.c.h.b16 %v1250
    %v2421 = vunpack.c.l.b16 %v1251
    %v2422 = vunpack.c.h.b16 %v1251
    %v2423 = vunpack.c.l.b16 %v1252
    %v2424 = vunpack.c.h.b16 %v1252
    %v2425 = vunpack.c.l.b16 %v1253
    %v2426 = vunpack.c.h.b16 %v1253
    %v2427 = vunpack.c.l.b16 %v1254
    %v2428 = vunpack.c.h.b16 %v1254
    %v2429 = vunpack.c.l.b16 %v1255
    %v2430 = vunpack.c.h.b16 %v1255
    %v2431 = vunpack.c.l.b16 %v1256
    %v2432 = vunpack.c.h.b16 %v1256
    %v2433 = vunpack.c.l.b16 %v1257
    %v2434 = vunpack.c.h.b16 %v1257
    %v2435 = vunpack.c.l.b16 %v1258
    %v2436 = vunpack.c.h.b16 %v1258
    %v2437 = vunpack.c.l.b16 %v1259
    %v2438 = vunpack.c.h.b16 %v1259
    %v2439 = vunpack.c.l.b16 %v1260
    %v2440 = vunpack.c.h.b16 %v1260
    %v2441 = vunpack.c.l.b16 %v1261
    %v2442 = vunpack.c.h.b16 %v1261
    %v2443 = vunpack.c.l.b16 %v1262
    %v2444 = vunpack.c.h.b16 %v1262
    %v2445 = vunpack.c.l.b16 %v1263
    %v2446 = vunpack.c.h.b16 %v1263
    %v2447 = vunpack.c.l.b16 %v1264
    %v2448 = vunpack.c.h.b16 %v1264
    %v2449 = vunpack.c.l.b16 %v1265
    %v2450 = vunpack.c.h.b16 %v1265
    %v2451 = vunpack.c.l.b16 %v1266
    %v2452 = vunpack.c.h.b16 %v1266
    %v2453 = vunpack.c.l.b16 %v1267
    %v2454 = vunpack.c.h.b16 %v1267
    %v2455 = vunpack.c.l.b16 %v1268
    %v2456 = vunpack.c.h.b16 %v1268
    %v2457 = vunpack.c.l.b16 %v1269
    %v2458 = vunpack.c.h.b16 %v1269
    %v2459 = vunpack.c.l.b16 %v1270
    %v2460 = vunpack.c.h.b16 %v1270
    %v2461 = vunpack.c.l.b16 %v1271
    %v2462 = vunpack.c.h.b16 %v1271
    %v2463 = vunpack.c.l.b16 %v1272
    %v2464 = vunpack.c.h.b16 %v1272
    %v2465 = vunpack.c.l.b16 %v1273
    %v2466 = vunpack.c.h.b16 %v1273
    %v2467 = vunpack.c.l.b16 %v1274
    %v2468 = vunpack.c.h.b16 %v1274
    %v2469 = vunpack.c.l.b16 %v1275
    %v2470 = vunpack.c.h.b16 %v1275
    %v2471 = vunpack.c.l.b16 %v1276
    %v2472 = vunpack.c.h.b16 %v1276
    %v2473 = vunpack.c.l.b16 %v1277
    %v2474 = vunpack.c.h.b16 %v1277
    %v2475 = vunpack.c.l.b16 %v1278
    %v2476 = vunpack.c.h.b16 %v1278
    %v2477 = vunpack.c.l.b16 %v1279
    %v2478 = vunpack.c.h.b16 %v1279
    %v2479 = vunpack.c.l.b16 %v1280
    %v2480 = vunpack.c.h.b16 %v1280
    %v2481 = vunpack.c.l.b16 %v1281
    %v2482 = vunpack.c.h.b16 %v1281
    %v2483 = vunpack.c.l.b16 %v1282
    %v2484 = vunpack.c.h.b16 %v1282
    %v2485 = vunpack.c.l.b16 %v1283
    %v2486 = vunpack.c.h.b16 %v1283
    %v2487 = vunpack.c.l.b16 %v1284
    %v2488 = vunpack.c.h.b16 %v1284
    %v2489 = vunpack.c.l.b16 %v1285
    %v2490 = vunpack.c.h.b16 %v1285
    %v2491 = vunpack.c.l.b16 %v1286
    %v2492 = vunpack.c.h.b16 %v1286
    %v2493 = vunpack.c.l.b16 %v1287
    %v2494 = vunpack.c.h.b16 %v1287
    %v2495 = vunpack.c.l.b16 %v1288
    %v2496 = vunpack.c.h.b16 %v1288
    %v2497 = vunpack.c.l.b16 %v1289
    %v2498 = vunpack.c.h.b16 %v1289
    %v2499 = vunpack.c.l.b16 %v1290
    %v2500 = vunpack.c.h.b16 %v1290
    %v2501 = vunpack.c.l.b16 %v1291
    %v2502 = vunpack.c.h.b16 %v1291
    %v2503 = vunpack.c.l.b16 %v1292
    %v2504 = vunpack.c.h.b16 %v1292
    %v2505 = vunpack.c.l.b16 %v1293
    %v2506 = vunpack.c.h.b16 %v1293
    %v2507 = vunpack.c.l.b16 %v1294
    %v2508 = vunpack.c.h.b16 %v1294
    %v2509 = vunpack.c.l.b16 %v1295
    %v2510 = vunpack.c.h.b16 %v1295
    %v2511 = vunpack.c.l.b16 %v1296
    %v2512 = vunpack.c.h.b16 %v1296
    %v2513 = vunpack.c.l.b16 %v1297
    %v2514 = vunpack.c.h.b16 %v1297
    %v2515 = vunpack.c.l.b16 %v1298
    %v2516 = vunpack.c.h.b16 %v1298
    %v2517 = vunpack.c.l.b16 %v1299
    %v2518 = vunpack.c.h.b16 %v1299
    %v2519 = vunpack.c.l.b16 %v1300
    %v2520 = vunpack.c.h.b16 %v1300
    %v2521 = vunpack.c.l.b16 %v1301
    %v2522 = vunpack.c.h.b16 %v1301
    %v2523 = vunpack.c.l.b16 %v1302
    %v2524 = vunpack.c.h.b16 %v1302
    %v2525 = vunpack.c.l.b16 %v1303
    %v2526 = vunpack.c.h.b16 %v1303
    %v2527 = vunpack.c.l.b16 %v1304
    %v2528 = vunpack.c.h.b16 %v1304
    %v2529 = vunpack.c.l.b16 %v1305
    %v2530 = vunpack.c.h.b16 %v1305
    %v2531 = vunpack.c.l.b16 %v1306
    %v2532 = vunpack.c.h.b16 %v1306
    %v2533 = vunpack.c.l.b16 %v1307
    %v2534 = vunpack.c.h.b16 %v1307
    %v2535 = vunpack.c.l.b16 %v1308
    %v2536 = vunpack.c.h.b16 %v1308
    %v2537 = vunpack.c.l.b16 %v1309
    %v2538 = vunpack.c.h.b16 %v1309
    %v2539 = vunpack.c.l.b16 %v1310
    %v2540 = vunpack.c.h.b16 %v1310
    %v2541 = vunpack.c.l.b16 %v1311
    %v2542 = vunpack.c.h.b16 %v1311
    %v2543 = vunpack.c.l.b16 %v1312
    %v2544 = vunpack.c.h.b16 %v1312
    %v2545 = vunpack.c.l.b16 %v1313
    %v2546 = vunpack.c.h.b16 %v1313
    %v2547 = vunpack.c.l.b16 %v1314
    %v2548 = vunpack.c.h.b16 %v1314
    %v2549 = vunpack.c.l.b16 %v1315
    %v2550 = vunpack.c.h.b16 %v1315
    %v2551 = vunpack.c.l.b16 %v1316
    %v2552 = vunpack.c.h.b16 %v1316
    %v2553 = vunpack.c.l.b16 %v1317
    %v2554 = vunpack.c.h.b16 %v1317
    %v2555 = vunpack.c.l.b16 %v1318
    %v2556 = vunpack.c.h.b16 %v1318
    %v2557 = vunpack.c.l.b16 %v1319
    %v2558 = vunpack.c.h.b16 %v1319
    %v2559 = vunpack.c.l.b16 %v1320
    %v2560 = vunpack.c.h.b16 %v1320
    %v2561 = vunpack.c.l.b16 %v1321
    %v2562 = vunpack.c.h.b16 %v1321
    %v2563 = vunpack.c.l.b16 %v1322
    %v2564 = vunpack.c.h.b16 %v1322
    %v2565 = vunpack.c.l.b16 %v1323
    %v2566 = vunpack.c.h.b16 %v1323
    %v2567 = vunpack.c.l.b16 %v1324
    %v2568 = vunpack.c.h.b16 %v1324
    %v2569 = vunpack.c.l.b16 %v1325
    %v2570 = vunpack.c.h.b16 %v1325
    %v2571 = vunpack.c.l.b16 %v1326
    %v2572 = vunpack.c.h.b16 %v1326
    %v2573 = vunpack.c.l.b16 %v1327
    %v2574 = vunpack.c.h.b16 %v1327
    %v2575 = vunpack.c.l.b16 %v1328
    %v2576 = vunpack.c.h.b16 %v1328
    %v2577 = vunpack.c.l.b16 %v1329
    %v2578 = vunpack.c.h.b16 %v1329
    %v2579 = vunpack.c.l.b16 %v1330
    %v2580 = vunpack.c.h.b16 %v1330
    %v2581 = vunpack.c.l.b16 %v1331
    %v2582 = vunpack.c.h.b16 %v1331
    %v2583 = vunpack.c.l.b16 %v1332
    %v2584 = vunpack.c.h.b16 %v1332
    %v2585 = vunpack.c.l.b16 %v1333
    %v2586 = vunpack.c.h.b16 %v1333
    %v2587 = vunpack.c.l.b16 %v1334
    %v2588 = vunpack.c.h.b16 %v1334
    %v2589 = vunpack.c.l.b16 %v1335
    %v2590 = vunpack.c.h.b16 %v1335
    %v2591 = vunpack.c.l.b16 %v1336
    %v2592 = vunpack.c.h.b16 %v1336
    %v2593 = vunpack.c.l.b16 %v1337
    %v2594 = vunpack.c.h.b16 %v1337
    %v2595 = vunpack.c.l.b16 %v1338
    %v2596 = vunpack.c.h.b16 %v1338
    %v2597 = vunpack.c.l.b16 %v1339
    %v2598 = vunpack.c.h.b16 %v1339
    %v2599 = vunpack.c.l.b16 %v1340
    %v2600 = vunpack.c.h.b16 %v1340
    %v2601 = vunpack.c.l.b16 %v1341
    %v2602 = vunpack.c.h.b16 %v1341
    %v2603 = vunpack.c.l.b16 %v1342
    %v2604 = vunpack.c.h.b16 %v1342
    %v2605 = vunpack.c.l.b16 %v1343
    %v2606 = vunpack.c.h.b16 %v1343
    %v2607 = vunpack.c.l.b16 %v1344
    %v2608 = vunpack.c.h.b16 %v1344
    %v2609 = vunpack.c.l.b16 %v1345
    %v2610 = vunpack.c.h.b16 %v1345
    %v2611 = vunpack.c.l.b16 %v1346
    %v2612 = vunpack.c.h.b16 %v1346
    %v2613 = vunpack.c.l.b16 %v1347
    %v2614 = vunpack.c.h.b16 %v1347
    %v2615 = vunpack.c.l.b16 %v1348
    %v2616 = vunpack.c.h.b16 %v1348
    %v2617 = vunpack.c.l.b16 %v1349
    %v2618 = vunpack.c.h.b16 %v1349
    %v2619 = vunpack.c.l.b16 %v1350
    %v2620 = vunpack.c.h.b16 %v1350
    %v2621 = vunpack.c.l.b16 %v1351
    %v2622 = vunpack.c.h.b16 %v1351
    %v2623 = vunpack.c.l.b16 %v1352
    %v2624 = vunpack.c.h.b16 %v1352
    %v2625 = vunpack.c.l.b16 %v1353
    %v2626 = vunpack.c.h.b16 %v1353
    %v2627 = vunpack.c.l.b16 %v1354
    %v2628 = vunpack.c.h.b16 %v1354
    %v2629 = vunpack.c.l.b16 %v1355
    %v2630 = vunpack.c.h.b16 %v1355
    %v2631 = vunpack.c.l.b16 %v1356
    %v2632 = vunpack.c.h.b16 %v1356
    %v2633 = vunpack.c.l.b16 %v1357
    %v2634 = vunpack.c.h.b16 %v1357
    %v2635 = vunpack.c.l.b16 %v1358
    %v2636 = vunpack.c.h.b16 %v1358
    %v2637 = vunpack.c.l.b16 %v1359
    %v2638 = vunpack.c.h.b16 %v1359
    %v2639 = vunpack.c.l.b16 %v1360
    %v2640 = vunpack.c.h.b16 %v1360
    %v2641 = vunpack.c.l.b16 %v1361
    %v2642 = vunpack.c.h.b16 %v1361
    %v2643 = vunpack.c.l.b16 %v1362
    %v2644 = vunpack.c.h.b16 %v1362
    %v2645 = vunpack.c.l.b16 %v1363
    %v2646 = vunpack.c.h.b16 %v1363
    %v2647 = vunpack.c.l.b16 %v1364
    %v2648 = vunpack.c.h.b16 %v1364
    %v2649 = vunpack.c.l.b16 %v1365
    %v2650 = vunpack.c.h.b16 %v1365
    %v2651 = vunpack.c.l.b16 %v1366
    %v2652 = vunpack.c.h.b16 %v1366
    %v2653 = vunpack.c.l.b16 %v1367
    %v2654 = vunpack.c.h.b16 %v1367
    %v2655 = vunpack.c.l.b16 %v1368
    %v2656 = vunpack.c.h.b16 %v1368
    %v2657 = vunpack.c.l.b16 %v1369
    %v2658 = vunpack.c.h.b16 %v1369
    %v2659 = vunpack.c.l.b16 %v1370
    %v2660 = vunpack.c.h.b16 %v1370
    %v2661 = vunpack.c.l.b16 %v1371
    %v2662 = vunpack.c.h.b16 %v1371
    %v2663 = vunpack.c.l.b16 %v1372
    %v2664 = vunpack.c.h.b16 %v1372
    %v2665 = vunpack.c.l.b16 %v1373
    %v2666 = vunpack.c.h.b16 %v1373
    %v2667 = vunpack.c.l.b16 %v1374
    %v2668 = vunpack.c.h.b16 %v1374
    %v2669 = vunpack.c.l.b16 %v1375
    %v2670 = vunpack.c.h.b16 %v1375
    %v2671 = vunpack.c.l.b16 %v1376
    %v2672 = vunpack.c.h.b16 %v1376
    %v2673 = vunpack.c.l.b16 %v1377
    %v2674 = vunpack.c.h.b16 %v1377
    %v2675 = vunpack.c.l.b16 %v1378
    %v2676 = vunpack.c.h.b16 %v1378
    %v2677 = vunpack.c.l.b16 %v1379
    %v2678 = vunpack.c.h.b16 %v1379
    %v2679 = vunpack.c.l.b16 %v1380
    %v2680 = vunpack.c.h.b16 %v1380
    %v2681 = vunpack.c.l.b16 %v1381
    %v2682 = vunpack.c.h.b16 %v1381
    %v2683 = vunpack.c.l.b16 %v1382
    %v2684 = vunpack.c.h.b16 %v1382
    %v2685 = vunpack.c.l.b16 %v1383
    %v2686 = vunpack.c.h.b16 %v1383
    %v2687 = vunpack.c.l.b16 %v1384
    %v2688 = vunpack.c.h.b16 %v1384
    %v2689 = vunpack.c.l.b16 %v1385
    %v2690 = vunpack.c.h.b16 %v1385
    %v2691 = vunpack.c.l.b16 %v1386
    %v2692 = vunpack.c.h.b16 %v1386
    %v2693 = vunpack.c.l.b16 %v1387
    %v2694 = vunpack.c.h.b16 %v1387
    %v2695 = vunpack.c.l.b16 %v1388
    %v2696 = vunpack.c.h.b16 %v1388
    %v2697 = vunpack.c.l.b16 %v1389
    %v2698 = vunpack.c.h.b16 %v1389
    %v2699 = vunpack.c.l.b16 %v1390
    %v2700 = vunpack.c.h.b16 %v1390
    %v2701 = vunpack.c.l.b16 %v1391
    %v2702 = vunpack.c.h.b16 %v1391
    %v2703 = vunpack.c.l.b16 %v1392
    %v2704 = vunpack.c.h.b16 %v1392
    %v2705 = vunpack.c.l.b16 %v1393
    %v2706 = vunpack.c.h.b16 %v1393
    %v2707 = vunpack.c.l.b16 %v1394
    %v2708 = vunpack.c.h.b16 %v1394
    %v2709 = vunpack.c.l.b16 %v1395
    %v2710 = vunpack.c.h.b16 %v1395
    %v2711 = vunpack.c.l.b16 %v1396
    %v2712 = vunpack.c.h.b16 %v1396
    %v2713 = vunpack.c.l.b16 %v1397
    %v2714 = vunpack.c.h.b16 %v1397
    %v2715 = vunpack.c.l.b16 %v1398
    %v2716 = vunpack.c.h.b16 %v1398
    %v2717 = vunpack.c.l.b16 %v1399
    %v2718 = vunpack.c.h.b16 %v1399
    %v2719 = vunpack.c.l.b16 %v1400
    %v2720 = vunpack.c.h.b16 %v1400
    %v2721 = vunpack.c.l.b16 %v1401
    %v2722 = vunpack.c.h.b16 %v1401
    %v2723 = vunpack.c.l.b16 %v1402
    %v2724 = vunpack.c.h.b16 %v1402
    %v2725 = vunpack.c.l.b16 %v1403
    %v2726 = vunpack.c.h.b16 %v1403
    %v2727 = vunpack.c.l.b16 %v1404
    %v2728 = vunpack.c.h.b16 %v1404
    %v2729 = vunpack.c.l.b16 %v1405
    %v2730 = vunpack.c.h.b16 %v1405
    %v2731 = vunpack.c.l.b16 %v1406
    %v2732 = vunpack.c.h.b16 %v1406
    %v2733 = vunpack.c.l.b16 %v1407
    %v2734 = vunpack.c.h.b16 %v1407
    %v2735 = vunpack.c.l.b16 %v1408
    %v2736 = vunpack.c.h.b16 %v1408
    %v2737 = vunpack.c.l.b16 %v1409
    %v2738 = vunpack.c.h.b16 %v1409
    %v2739 = vunpack.c.l.b16 %v1410
    %v2740 = vunpack.c.h.b16 %v1410
    %v2741 = vunpack.c.l.b16 %v1411
    %v2742 = vunpack.c.h.b16 %v1411
    %v2743 = vunpack.c.l.b16 %v1412
    %v2744 = vunpack.c.h.b16 %v1412
    %v2745 = vunpack.c.l.b16 %v1413
    %v2746 = vunpack.c.h.b16 %v1413
    %v2747 = vunpack.c.l.b16 %v1414
    %v2748 = vunpack.c.h.b16 %v1414
    %v2749 = vunpack.c.l.b16 %v1415
    %v2750 = vunpack.c.h.b16 %v1415
    %v2751 = vunpack.c.l.b16 %v1416
    %v2752 = vunpack.c.h.b16 %v1416
    %v2753 = vunpack.c.l.b16 %v1417
    %v2754 = vunpack.c.h.b16 %v1417
    %v2755 = vunpack.c.l.b16 %v1418
    %v2756 = vunpack.c.h.b16 %v1418
    %v2757 = vunpack.c.l.b16 %v1419
    %v2758 = vunpack.c.h.b16 %v1419
    %v2759 = vunpack.c.l.b16 %v1420
    %v2760 = vunpack.c.h.b16 %v1420
    %v2761 = vunpack.c.l.b16 %v1421
    %v2762 = vunpack.c.h.b16 %v1421
    %v2763 = vunpack.c.l.b16 %v1422
    %v2764 = vunpack.c.h.b16 %v1422
    %v2765 = vunpack.c.l.b16 %v1423
    %v2766 = vunpack.c.h.b16 %v1423
    %v2767 = vunpack.c.l.b16 %v1424
    %v2768 = vunpack.c.h.b16 %v1424
    %v2769 = vunpack.c.l.b16 %v1425
    %v2770 = vunpack.c.h.b16 %v1425
    %v2771 = vunpack.c.l.b16 %v1426
    %v2772 = vunpack.c.h.b16 %v1426
    %v2773 = vunpack.c.l.b16 %v1427
    %v2774 = vunpack.c.h.b16 %v1427
    %v2775 = vunpack.c.l.b16 %v1428
    %v2776 = vunpack.c.h.b16 %v1428
    %v2777 = vunpack.c.l.b16 %v1429
    %v2778 = vunpack.c.h.b16 %v1429
    %v2779 = vunpack.c.l.b16 %v1430
    %v2780 = vunpack.c.h.b16 %v1430
    %v2781 = vunpack.c.l.b16 %v1431
    %v2782 = vunpack.c.h.b16 %v1431
    %v2783 = vunpack.c.l.b16 %v1432
    %v2784 = vunpack.c.h.b16 %v1432
    %v2785 = vunpack.c.l.b16 %v1433
    %v2786 = vunpack.c.h.b16 %v1433
    %v2787 = vunpack.c.l.b16 %v1434
    %v2788 = vunpack.c.h.b16 %v1434
    %v2789 = vunpack.c.l.b16 %v1435
    %v2790 = vunpack.c.h.b16 %v1435
    %v2791 = vunpack.c.l.b16 %v1436
    %v2792 = vunpack.c.h.b16 %v1436
    %v2793 = vunpack.c.l.b16 %v1437
    %v2794 = vunpack.c.h.b16 %v1437
    %v2795 = vunpack.c.l.b16 %v1438
    %v2796 = vunpack.c.h.b16 %v1438
    %v2797 = vunpack.c.l.b16 %v1439
    %v2798 = vunpack.c.h.b16 %v1439
    %v2799 = vunpack.c.l.b16 %v1440
    %v2800 = vunpack.c.h.b16 %v1440
    %v2801 = vunpack.c.l.b16 %v1441
    %v2802 = vunpack.c.h.b16 %v1441
    %v2803 = vunpack.c.l.b16 %v1442
    %v2804 = vunpack.c.h.b16 %v1442
    %v2805 = vunpack.c.l.b16 %v1443
    %v2806 = vunpack.c.h.b16 %v1443
    %v2807 = vunpack.c.l.b16 %v1444
    %v2808 = vunpack.c.h.b16 %v1444
    %v2809 = vunpack.c.l.b16 %v1445
    %v2810 = vunpack.c.h.b16 %v1445
    %v2811 = vunpack.c.l.b16 %v1446
    %v2812 = vunpack.c.h.b16 %v1446
    %v2813 = vunpack.c.l.b16 %v1447
    %v2814 = vunpack.c.h.b16 %v1447
    %v2815 = vunpack.c.l.b16 %v1448
    %v2816 = vunpack.c.h.b16 %v1448
    %v2817 = vunpack.c.l.b16 %v1449
    %v2818 = vunpack.c.h.b16 %v1449
    %v2819 = vunpack.c.l.b16 %v1450
    %v2820 = vunpack.c.h.b16 %v1450
    %v2821 = vunpack.c.l.b16 %v1451
    %v2822 = vunpack.c.h.b16 %v1451
    %v2823 = vunpack.c.l.b16 %v1452
    %v2824 = vunpack.c.h.b16 %v1452
    %v2825 = vunpack.c.l.b16 %v1453
    %v2826 = vunpack.c.h.b16 %v1453
    %v2827 = vunpack.c.l.b16 %v1454
    %v2828 = vunpack.c.h.b16 %v1454
    %v2829 = vunpack.c.l.b16 %v1455
    %v2830 = vunpack.c.h.b16 %v1455
    %v2831 = vunpack.c.l.b16 %v1456
    %v2832 = vunpack.c.h.b16 %v1456
    %v2833 = vunpack.c.l.b16 %v1457
    %v2834 = vunpack.c.h.b16 %v1457
    %v2835 = vunpack.c.l.b16 %v1458
    %v2836 = vunpack.c.h.b16 %v1458
    %v2837 = vunpack.c.l.b16 %v1459
    %v2838 = vunpack.c.h.b16 %v1459
    %v2839 = vunpack.c.l.b16 %v1460
    %v2840 = vunpack.c.h.b16 %v1460
    %v2841 = vunpack.c.l.b16 %v1461
    %v2842 = vunpack.c.h.b16 %v1461
    %v2843 = vunpack.c.l.b16 %v1462
    %v2844 = vunpack.c.h.b16 %v1462
    %v2845 = vunpack.c.l.b16 %v1463
    %v2846 = vunpack.c.h.b16 %v1463
    %v2847 = vunpack.c.l.b16 %v1464
    %v2848 = vunpack.c.h.b16 %v1464
    %v2849 = vunpack.c.l.b16 %v1465
    %v2850 = vunpack.c.h.b16 %v1465
    %v2851 = vunpack.c.l.b16 %v1466
    %v2852 = vunpack.c.h.b16 %v1466
    %v2853 = vunpack.c.l.b16 %v1467
    %v2854 = vunpack.c.h.b16 %v1467
    %v2855 = vunpack.c.l.b16 %v1468
    %v2856 = vunpack.c.h.b16 %v1468
    %v2857 = vunpack.c.l.b16 %v1469
    %v2858 = vunpack.c.h.b16 %v1469
    %v2859 = vunpack.c.l.b16 %v1470
    %v2860 = vunpack.c.h.b16 %v1470
    %v2861 = vunpack.c.l.b16 %v1471
    %v2862 = vunpack.c.h.b16 %v1471
    %v2863 = vunpack.c.l.b16 %v1472
    %v2864 = vunpack.c.h.b16 %v1472
    %v2865 = vunpack.c.l.b16 %v1473
    %v2866 = vunpack.c.h.b16 %v1473
    %v2867 = vunpack.c.l.b16 %v1474
    %v2868 = vunpack.c.h.b16 %v1474
    %v2869 = vunpack.c.l.b16 %v1475
    %v2870 = vunpack.c.h.b16 %v1475
    %v2871 = vunpack.c.l.b16 %v1476
    %v2872 = vunpack.c.h.b16 %v1476
    %v2873 = vunpack.c.l.b16 %v1477
    %v2874 = vunpack.c.h.b16 %v1477
    %v2875 = vunpack.c.l.b16 %v1478
    %v2876 = vunpack.c.h.b16 %v1478
    %v2877 = vunpack.c.l.b16 %v1479
    %v2878 = vunpack.c.h.b16 %v1479
    %v2879 = vunpack.c.l.b16 %v1480
    %v2880 = vunpack.c.h.b16 %v1480
    %v2881 = vunpack.c.l.b16 %v1481
    %v2882 = vunpack.c.h.b16 %v1481
    %v2883 = vunpack.c.l.b16 %v1482
    %v2884 = vunpack.c.h.b16 %v1482
    %v2885 = vunpack.c.l.b16 %v1483
    %v2886 = vunpack.c.h.b16 %v1483
    %v2887 = vunpack.c.l.b16 %v1484
    %v2888 = vunpack.c.h.b16 %v1484
    %v2889 = vunpack.c.l.b16 %v1485
    %v2890 = vunpack.c.h.b16 %v1485
    %v2891 = vunpack.c.l.b16 %v1486
    %v2892 = vunpack.c.h.b16 %v1486
    %v2893 = vunpack.c.l.b16 %v1487
    %v2894 = vunpack.c.h.b16 %v1487
    %v2895 = vunpack.c.l.b16 %v1488
    %v2896 = vunpack.c.h.b16 %v1488
    %v2897 = vunpack.c.l.b16 %v1489
    %v2898 = vunpack.c.h.b16 %v1489
    %v2899 = vunpack.c.l.b16 %v1490
    %v2900 = vunpack.c.h.b16 %v1490
    %v2901 = vunpack.c.l.b16 %v1491
    %v2902 = vunpack.c.h.b16 %v1491
    %v2903 = vunpack.c.l.b16 %v1492
    %v2904 = vunpack.c.h.b16 %v1492
    %v2905 = vunpack.c.l.b16 %v1493
    %v2906 = vunpack.c.h.b16 %v1493
    %v2907 = vunpack.c.l.b16 %v1494
    %v2908 = vunpack.c.h.b16 %v1494
    %v2909 = vunpack.c.l.b16 %v1495
    %v2910 = vunpack.c.h.b16 %v1495
    %v2911 = vunpack.c.l.b16 %v1496
    %v2912 = vunpack.c.h.b16 %v1496
    %v2913 = vunpack.c.l.b16 %v1497
    %v2914 = vunpack.c.h.b16 %v1497
    %v2915 = vunpack.c.l.b16 %v1498
    %v2916 = vunpack.c.h.b16 %v1498
    %v2917 = vunpack.c.l.b16 %v1499
    %v2918 = vunpack.c.h.b16 %v1499
    %v2919 = vunpack.c.l.b16 %v1500
    %v2920 = vunpack.c.h.b16 %v1500
    %v2921 = vunpack.c.l.b16 %v1501
    %v2922 = vunpack.c.h.b16 %v1501
    %v2923 = vunpack.c.l.b16 %v1502
    %v2924 = vunpack.c.h.b16 %v1502
    %v2925 = vunpack.c.l.b16 %v1503
    %v2926 = vunpack.c.h.b16 %v1503
    %v2927 = vunpack.c.l.b16 %v1504
    %v2928 = vunpack.c.h.b16 %v1504
    %v2929 = vunpack.c.l.b16 %v1505
    %v2930 = vunpack.c.h.b16 %v1505
    %v2931 = vunpack.c.l.b16 %v1506
    %v2932 = vunpack.c.h.b16 %v1506
    %v2933 = vunpack.c.l.b16 %v1507
    %v2934 = vunpack.c.h.b16 %v1507
    %v2935 = vunpack.c.l.b16 %v1508
    %v2936 = vunpack.c.h.b16 %v1508
    %v2937 = vunpack.c.l.b16 %v1509
    %v2938 = vunpack.c.h.b16 %v1509
    %v2939 = vunpack.c.l.b16 %v1510
    %v2940 = vunpack.c.h.b16 %v1510
    %v2941 = vunpack.c.l.b16 %v1511
    %v2942 = vunpack.c.h.b16 %v1511
    %v2943 = vunpack.c.l.b16 %v1512
    %v2944 = vunpack.c.h.b16 %v1512
    %v2945 = vunpack.c.l.b16 %v1513
    %v2946 = vunpack.c.h.b16 %v1513
    %v2947 = vunpack.c.l.b16 %v1514
    %v2948 = vunpack.c.h.b16 %v1514
    %v2949 = vunpack.c.l.b16 %v1515
    %v2950 = vunpack.c.h.b16 %v1515
    %v2951 = vunpack.c.l.b16 %v1516
    %v2952 = vunpack.c.h.b16 %v1516
    %v2953 = vunpack.c.l.b16 %v1517
    %v2954 = vunpack.c.h.b16 %v1517
    %v2955 = vunpack.c.l.b16 %v1518
    %v2956 = vunpack.c.h.b16 %v1518
    %v2957 = vunpack.c.l.b16 %v1519
    %v2958 = vunpack.c.h.b16 %v1519
    %v2959 = vunpack.c.l.b16 %v1520
    %v2960 = vunpack.c.h.b16 %v1520
    %v2961 = vunpack.c.l.b16 %v1521
    %v2962 = vunpack.c.h.b16 %v1521
    %v2963 = vunpack.c.l.b16 %v1522
    %v2964 = vunpack.c.h.b16 %v1522
    %v2965 = vunpack.c.l.b16 %v1523
    %v2966 = vunpack.c.h.b16 %v1523
    %v2967 = vunpack.c.l.b16 %v1524
    %v2968 = vunpack.c.h.b16 %v1524
    %v2969 = vunpack.c.l.b16 %v1525
    %v2970 = vunpack.c.h.b16 %v1525
    %v2971 = vunpack.c.l.b16 %v1526
    %v2972 = vunpack.c.h.b16 %v1526
    %v2973 = vunpack.c.l.b16 %v1527
    %v2974 = vunpack.c.h.b16 %v1527
    %v2975 = vunpack.c.l.b16 %v1528
    %v2976 = vunpack.c.h.b16 %v1528
    %v2977 = vunpack.c.l.b16 %v1529
    %v2978 = vunpack.c.h.b16 %v1529
    %v2979 = vunpack.c.l.b16 %v1530
    %v2980 = vunpack.c.h.b16 %v1530
    %v2981 = vunpack.c.l.b16 %v1531
    %v2982 = vunpack.c.h.b16 %v1531
    %v2983 = vunpack.c.l.b16 %v1532
    %v2984 = vunpack.c.h.b16 %v1532
    %v2985 = vunpack.c.l.b16 %v1533
    %v2986 = vunpack.c.h.b16 %v1533
    %v2987 = vunpack.c.l.b16 %v1534
    %v2988 = vunpack.c.h.b16 %v1534
    %v2989 = vunpack.c.l.b16 %v1535
    %v2990 = vunpack.c.h.b16 %v1535
    %v2991 = vunpack.c.l.b16 %v1536
    %v2992 = vunpack.c.h.b16 %v1536
    %v2993 = vunpack.c.l.b16 %v1537
    %v2994 = vunpack.c.h.b16 %v1537
    %v2995 = vunpack.c.l.b16 %v1538
    %v2996 = vunpack.c.h.b16 %v1538
    %v2997 = vunpack.c.l.b16 %v1539
    %v2998 = vunpack.c.h.b16 %v1539
    %v2999 = vunpack.c.l.b16 %v1540
    %v3000 = vunpack.c.h.b16 %v1540
    %v3001 = vunpack.c.l.b16 %v1541
    %v3002 = vunpack.c.h.b16 %v1541
    %v3003 = vunpack.c.l.b16 %v1542
    %v3004 = vunpack.c.h.b16 %v1542
    %v3005 = vunpack.c.l.b16 %v1543
    %v3006 = vunpack.c.h.b16 %v1543
    %v3007 = vunpack.c.l.b16 %v1544
    %v3008 = vunpack.c.h.b16 %v1544
    %v3009 = vunpack.c.l.b16 %v1545
    %v3010 = vunpack.c.h.b16 %v1545
    %v3011 = vunpack.c.l.b16 %v1546
    %v3012 = vunpack.c.h.b16 %v1546
    %v3013 = vunpack.c.l.b16 %v1547
    %v3014 = vunpack.c.h.b16 %v1547
    %v3015 = vunpack.c.l.b16 %v1548
    %v3016 = vunpack.c.h.b16 %v1548
    %v3017 = vunpack.c.l.b16 %v1549
    %v3018 = vunpack.c.h.b16 %v1549
    %v3019 = vunpack.c.l.b16 %v1550
    %v3020 = vunpack.c.h.b16 %v1550
    %v3021 = vunpack.c.l.b16 %v1551
    %v3022 = vunpack.c.h.b16 %v1551
    %v3023 = vunpack.c.l.b16 %v1552
    %v3024 = vunpack.c.h.b16 %v1552
    %v3025 = vunpack.c.l.b16 %v1553
    %v3026 = vunpack.c.h.b16 %v1553
    %v3027 = vunpack.c.l.b16 %v1554
    %v3028 = vunpack.c.h.b16 %v1554
    %v3029 = vunpack.c.l.b16 %v1555
    %v3030 = vunpack.c.h.b16 %v1555
    %v3031 = vunpack.c.l.b16 %v1556
    %v3032 = vunpack.c.h.b16 %v1556
    %v3033 = vunpack.c.l.b16 %v1557
    %v3034 = vunpack.c.h.b16 %v1557
    %v3035 = vunpack.c.l.b16 %v1558
    %v3036 = vunpack.c.h.b16 %v1558
    %v3037 = vunpack.c.l.b16 %v1559
    %v3038 = vunpack.c.h.b16 %v1559
    %v3039 = vunpack.c.l.b16 %v1560
    %v3040 = vunpack.c.h.b16 %v1560
    %v3041 = vunpack.c.l.b16 %v1561
    %v3042 = vunpack.c.h.b16 %v1561
    %v3043 = vunpack.c.l.b16 %v1562
    %v3044 = vunpack.c.h.b16 %v1562
    %v3045 = vunpack.c.l.b16 %v1563
    %v3046 = vunpack.c.h.b16 %v1563
    %v3047 = vunpack.c.l.b16 %v1564
    %v3048 = vunpack.c.h.b16 %v1564
    %v3049 = vunpack.c.l.b16 %v1565
    %v3050 = vunpack.c.h.b16 %v1565
    %v3051 = vunpack.c.l.b16 %v1566
    %v3052 = vunpack.c.h.b16 %v1566
    %v3053 = vunpack.c.l.b16 %v1567
    %v3054 = vunpack.c.h.b16 %v1567
    %v3055 = vunpack.c.l.b16 %v1568
    %v3056 = vunpack.c.h.b16 %v1568
    %v3057 = vunpack.c.l.b16 %v1569
    %v3058 = vunpack.c.h.b16 %v1569
    %v3059 = vunpack.c.l.b16 %v1570
    %v3060 = vunpack.c.h.b16 %v1570
    %v3061 = vunpack.c.l.b16 %v1571
    %v3062 = vunpack.c.h.b16 %v1571
    %v3063 = vunpack.c.l.b16 %v1572
    %v3064 = vunpack.c.h.b16 %v1572
    %v3065 = vunpack.c.l.b16 %v1573
    %v3066 = vunpack.c.h.b16 %v1573
    %v3067 = vunpack.c.l.b16 %v1574
    %v3068 = vunpack.c.h.b16 %v1574
    %v3069 = vunpack.c.l.b16 %v1575
    %v3070 = vunpack.c.h.b16 %v1575
    %v3071 = vunpack.c.l.b16 %v1576
    %v3072 = vunpack.c.h.b16 %v1576
    %v3073 = vunpack.c.l.b16 %v1577
    %v3074 = vunpack.c.h.b16 %v1577
    %v3075 = vunpack.c.l.b16 %v1578
    %v3076 = vunpack.c.h.b16 %v1578
    %v3077 = vunpack.c.l.b16 %v1579
    %v3078 = vunpack.c.h.b16 %v1579
    %v3079 = vunpack.c.l.b16 %v1580
    %v3080 = vunpack.c.h.b16 %v1580
    %v3081 = vunpack.c.l.b16 %v1581
    %v3082 = vunpack.c.h.b16 %v1581
    %v3083 = vunpack.c.l.b16 %v1582
    %v3084 = vunpack.c.h.b16 %v1582
    %v3085 = vunpack.c.l.b16 %v1583
    %v3086 = vunpack.c.h.b16 %v1583
    %v3087 = vunpack.c.l.b16 %v1584
    %v3088 = vunpack.c.h.b16 %v1584
    %v3089 = vunpack.c.l.b16 %v1585
    %v3090 = vunpack.c.h.b16 %v1585
    %v3091 = vunpack.c.l.b16 %v1586
    %v3092 = vunpack.c.h.b16 %v1586
    %v3093 = vunpack.c.l.b16 %v1587
    %v3094 = vunpack.c.h.b16 %v1587
    %v3095 = vunpack.c.l.b16 %v1588
    %v3096 = vunpack.c.h.b16 %v1588
    %v3097 = vunpack.c.l.b16 %v1589
    %v3098 = vunpack.c.h.b16 %v1589
    %v3099 = vunpack.c.l.b16 %v1590
    %v3100 = vunpack.c.h.b16 %v1590
    %v3101 = vunpack.c.l.b16 %v1591
    %v3102 = vunpack.c.h.b16 %v1591
    %v3103 = vunpack.c.l.b16 %v1592
    %v3104 = vunpack.c.h.b16 %v1592
    %v3105 = vunpack.c.l.b16 %v1593
    %v3106 = vunpack.c.h.b16 %v1593
    %v3107 = vunpack.c.l.b16 %v1594
    %v3108 = vunpack.c.h.b16 %v1594
    %v3109 = vunpack.c.l.b16 %v1595
    %v3110 = vunpack.c.h.b16 %v1595
    %v3111 = vunpack.c.l.b16 %v1596
    %v3112 = vunpack.c.h.b16 %v1596
    %v3113 = vunpack.c.l.b16 %v1597
    %v3114 = vunpack.c.h.b16 %v1597
    %v3115 = vunpack.c.l.b16 %v1598
    %v3116 = vunpack.c.h.b16 %v1598
    %v3117 = vunpack.c.l.b16 %v1599
    %v3118 = vunpack.c.h.b16 %v1599
    %v3119 = vunpack.c.l.b16 %v1600
    %v3120 = vunpack.c.h.b16 %v1600
    %v3121 = vunpack.c.l.b16 %v1601
    %v3122 = vunpack.c.h.b16 %v1601
    %v3123 = vunpack.c.l.b16 %v1602
    %v3124 = vunpack.c.h.b16 %v1602
    %v3125 = vunpack.c.l.b16 %v1603
    %v3126 = vunpack.c.h.b16 %v1603
    %v3127 = vunpack.c.l.b16 %v1604
    %v3128 = vunpack.c.h.b16 %v1604
    %v3129 = vunpack.c.l.b16 %v1605
    %v3130 = vunpack.c.h.b16 %v1605
    %v3131 = vunpack.c.l.b16 %v1606
    %v3132 = vunpack.c.h.b16 %v1606
    %v3133 = vunpack.c.l.b16 %v1607
    %v3134 = vunpack.c.h.b16 %v1607
    %v3135 = vunpack.c.l.b16 %v1608
    %v3136 = vunpack.c.h.b16 %v1608
    %v3137 = vunpack.c.l.b16 %v1609
    %v3138 = vunpack.c.h.b16 %v1609
    %v3139 = vunpack.c.l.b16 %v1610
    %v3140 = vunpack.c.h.b16 %v1610
    %v3141 = vunpack.c.l.b16 %v1611
    %v3142 = vunpack.c.h.b16 %v1611
    %v3143 = vunpack.c.l.b16 %v1612
    %v3144 = vunpack.c.h.b16 %v1612
    %v3145 = vunpack.c.l.b16 %v1613
    %v3146 = vunpack.c.h.b16 %v1613
    %v3147 = vunpack.c.l.b16 %v1614
    %v3148 = vunpack.c.h.b16 %v1614
    %v3149 = vunpack.c.l.b16 %v1615
    %v3150 = vunpack.c.h.b16 %v1615
    %v3151 = vunpack.c.l.b16 %v1616
    %v3152 = vunpack.c.h.b16 %v1616
    %v3153 = vunpack.c.l.b16 %v1617
    %v3154 = vunpack.c.h.b16 %v1617
    %v3155 = vunpack.c.l.b16 %v1618
    %v3156 = vunpack.c.h.b16 %v1618
    %v3157 = vunpack.c.l.b16 %v1619
    %v3158 = vunpack.c.h.b16 %v1619
    %v3159 = vunpack.c.l.b16 %v1620
    %v3160 = vunpack.c.h.b16 %v1620
    %v3161 = vunpack.c.l.b16 %v1621
    %v3162 = vunpack.c.h.b16 %v1621
    %v3163 = vunpack.c.l.b16 %v1622
    %v3164 = vunpack.c.h.b16 %v1622
    %v3165 = vunpack.c.l.b16 %v1623
    %v3166 = vunpack.c.h.b16 %v1623
    %v3167 = vunpack.c.l.b16 %v1624
    %v3168 = vunpack.c.h.b16 %v1624
    %v3169 = vunpack.c.l.b16 %v1625
    %v3170 = vunpack.c.h.b16 %v1625
    %v3171 = vunpack.c.l.b16 %v1626
    %v3172 = vunpack.c.h.b16 %v1626
    %v3173 = vunpack.c.l.b16 %v1627
    %v3174 = vunpack.c.h.b16 %v1627
    %v3175 = vunpack.c.l.b16 %v1628
    %v3176 = vunpack.c.h.b16 %v1628
    %v3177 = vunpack.c.l.b16 %v1629
    %v3178 = vunpack.c.h.b16 %v1629
    %v3179 = vunpack.c.l.b16 %v1630
    %v3180 = vunpack.c.h.b16 %v1630
    %v3181 = vunpack.c.l.b16 %v1631
    %v3182 = vunpack.c.h.b16 %v1631
    %v3183 = vunpack.c.l.b16 %v1632
    %v3184 = vunpack.c.h.b16 %v1632
    %v3185 = vunpack.c.l.b16 %v1633
    %v3186 = vunpack.c.h.b16 %v1633
    %v3187 = vunpack.c.l.b16 %v1634
    %v3188 = vunpack.c.h.b16 %v1634
    %v3189 = vunpack.c.l.b16 %v1635
    %v3190 = vunpack.c.h.b16 %v1635
    %v3191 = vunpack.c.l.b16 %v1636
    %v3192 = vunpack.c.h.b16 %v1636
    %v3193 = vunpack.c.l.b16 %v1637
    %v3194 = vunpack.c.h.b16 %v1637
    %v3195 = vunpack.c.l.b16 %v1638
    %v3196 = vunpack.c.h.b16 %v1638
    %v3197 = vunpack.c.l.b16 %v1639
    %v3198 = vunpack.c.h.b16 %v1639
    %v3199 = vunpack.c.l.b16 %v1640
    %v3200 = vunpack.c.h.b16 %v1640
    %v3201 = vunpack.c.l.b16 %v1641
    %v3202 = vunpack.c.h.b16 %v1641
    %v3203 = vunpack.c.l.b16 %v1642
    %v3204 = vunpack.c.h.b16 %v1642
    %v3205 = vunpack.c.l.b16 %v1643
    %v3206 = vunpack.c.h.b16 %v1643
    %v3207 = vunpack.c.l.b16 %v1644
    %v3208 = vunpack.c.h.b16 %v1644
    %v3209 = vunpack.c.l.b16 %v1645
    %v3210 = vunpack.c.h.b16 %v1645
    %v3211 = vunpack.c.l.b16 %v1646
    %v3212 = vunpack.c.h.b16 %v1646
    %v3213 = vunpack.c.l.b16 %v1647
    %v3214 = vunpack.c.h.b16 %v1647
    %v3215 = vunpack.c.l.b16 %v1648
    %v3216 = vunpack.c.h.b16 %v1648
    %v3217 = vunpack.c.l.b16 %v1649
    %v3218 = vunpack.c.h.b16 %v1649
    %v3219 = vunpack.c.l.b16 %v1650
    %v3220 = vunpack.c.h.b16 %v1650
    %v3221 = vunpack.c.l.b16 %v1651
    %v3222 = vunpack.c.h.b16 %v1651
    %v3223 = vunpack.c.l.b16 %v1652
    %v3224 = vunpack.c.h.b16 %v1652
    %v3225 = vunpack.c.l.b16 %v1653
    %v3226 = vunpack.c.h.b16 %v1653
    %v3227 = vunpack.c.l.b16 %v1654
    %v3228 = vunpack.c.h.b16 %v1654
    %v3229 = vunpack.c.l.b16 %v1655
    %v3230 = vunpack.c.h.b16 %v1655
    %v3231 = vunpack.c.l.b16 %v1656
    %v3232 = vunpack.c.h.b16 %v1656
    %v3233 = vunpack.c.l.b16 %v1657
    %v3234 = vunpack.c.h.b16 %v1657
    %v3235 = vunpack.c.l.b16 %v1658
    %v3236 = vunpack.c.h.b16 %v1658
    %v3237 = vpack.c.b16 %v2221, %v2213
    %v3238 = vpack.c.b16 %v2222, %v2214
    %v3239 = vpack.c.b16 %v2223, %v2215
    %v3240 = vpack.c.b16 %v2224, %v2216
    %v3241 = vpack.c.b16 %v2225, %v2217
    %v3242 = vpack.c.b16 %v2226, %v2218
    %v3243 = vpack.c.b16 %v2227, %v2219
    %v3244 = vpack.c.b16 %v2228, %v2220
    %v3245 = vpack.c.b16 %v2237, %v2229
    %v3246 = vpack.c.b16 %v2238, %v2230
    %v3247 = vpack.c.b16 %v2239, %v2231
    %v3248 = vpack.c.b16 %v2240, %v2232
    %v3249 = vpack.c.b16 %v2241, %v2233
    %v3250 = vpack.c.b16 %v2242, %v2234
    %v3251 = vpack.c.b16 %v2243, %v2235
    %v3252 = vpack.c.b16 %v2244, %v2236
    %v3253 = vpack.c.b16 %v2253, %v2245
    %v3254 = vpack.c.b16 %v2254, %v2246
    %v3255 = vpack.c.b16 %v2255, %v2247
    %v3256 = vpack.c.b16 %v2256, %v2248
    %v3257 = vpack.c.b16 %v2257, %v2249
    %v3258 = vpack.c.b16 %v2258, %v2250
    %v3259 = vpack.c.b16 %v2259, %v2251
    %v3260 = vpack.c.b16 %v2260, %v2252
    %v3261 = vpack.c.b16 %v2269, %v2261
    %v3262 = vpack.c.b16 %v2270, %v2262
    %v3263 = vpack.c.b16 %v2271, %v2263
    %v3264 = vpack.c.b16 %v2272, %v2264
    %v3265 = vpack.c.b16 %v2273, %v2265
    %v3266 = vpack.c.b16 %v2274, %v2266
    %v3267 = vpack.c.b16 %v2275, %v2267
    %v3268 = vpack.c.b16 %v2276, %v2268
    %v3269 = vpack.c.b16 %v2285, %v2277
    %v3270 = vpack.c.b16 %v2286, %v2278
    %v3271 = vpack.c.b16 %v2287, %v2279
    %v3272 = vpack.c.b16 %v2288, %v2280
    %v3273 = vpack.c.b16 %v2289, %v2281
    %v3274 = vpack.c.b16 %v2290, %v2282
    %v3275 = vpack.c.b16 %v2291, %v2283
    %v3276 = vpack.c.b16 %v2292, %v2284
    %v3277 = vpack.c.b16 %v2301, %v2293
    %v3278 = vpack.c.b16 %v2302, %v2294
    %v3279 = vpack.c.b16 %v2303, %v2295
    %v3280 = vpack.c.b16 %v2304, %v2296
    %v3281 = vpack.c.b16 %v2305, %v2297
    %v3282 = vpack.c.b16 %v2306, %v2298
    %v3283 = vpack.c.b16 %v2307, %v2299
    %v3284 = vpack.c.b16 %v2308, %v2300
    %v3285 = vpack.c.b16 %v2317, %v2309
    %v3286 = vpack.c.b16 %v2318, %v2310
    %v3287 = vpack.c.b16 %v2319, %v2311
    %v3288 = vpack.c.b16 %v2320, %v2312
    %v3289 = vpack.c.b16 %v2321, %v2313
    %v3290 = vpack.c.b16 %v2322, %v2314
    %v3291 = vpack.c.b16 %v2323, %v2315
    %v3292 = vpack.c.b16 %v2324, %v2316
    %v3293 = vpack.c.b16 %v2333, %v2325
    %v3294 = vpack.c.b16 %v2334, %v2326
    %v3295 = vpack.c.b16 %v2335, %v2327
    %v3296 = vpack.c.b16 %v2336, %v2328
    %v3297 = vpack.c.b16 %v2337, %v2329
    %v3298 = vpack.c.b16 %v2338, %v2330
    %v3299 = vpack.c.b16 %v2339, %v2331
    %v3300 = vpack.c.b16 %v2340, %v2332
    %v3301 = vpack.c.b16 %v2349, %v2341
    %v3302 = vpack.c.b16 %v2350, %v2342
    %v3303 = vpack.c.b16 %v2351, %v2343
    %v3304 = vpack.c.b16 %v2352, %v2344
    %v3305 = vpack.c.b16 %v2353, %v2345
    %v3306 = vpack.c.b16 %v2354, %v2346
    %v3307 = vpack.c.b16 %v2355, %v2347
    %v3308 = vpack.c.b16 %v2356, %v2348
    %v3309 = vpack.c.b16 %v2365, %v2357
    %v3310 = vpack.c.b16 %v2366, %v2358
    %v3311 = vpack.c.b16 %v2367, %v2359
    %v3312 = vpack.c.b16 %v2368, %v2360
    %v3313 = vpack.c.b16 %v2369, %v2361
    %v3314 = vpack.c.b16 %v2370, %v2362
    %v3315 = vpack.c.b16 %v2371, %v2363
    %v3316 = vpack.c.b16 %v2372, %v2364
    %v3317 = vpack.c.b16 %v2381, %v2373
    %v3318 = vpack.c.b16 %v2382, %v2374
    %v3319 = vpack.c.b16 %v2383, %v2375
    %v3320 = vpack.c.b16 %v2384, %v2376
    %v3321 = vpack.c.b16 %v2385, %v2377
    %v3322 = vpack.c.b16 %v2386, %v2378
    %v3323 = vpack.c.b16 %v2387, %v2379
    %v3324 = vpack.c.b16 %v2388, %v2380
    %v3325 = vpack.c.b16 %v2397, %v2389
    %v3326 = vpack.c.b16 %v2398, %v2390
    %v3327 = vpack.c.b16 %v2399, %v2391
    %v3328 = vpack.c.b16 %v2400, %v2392
    %v3329 = vpack.c.b16 %v2401, %v2393
    %v3330 = vpack.c.b16 %v2402, %v2394
    %v3331 = vpack.c.b16 %v2403, %v2395
    %v3332 = vpack.c.b16 %v2404, %v2396
    %v3333 = vpack.c.b16 %v2413, %v2405
    %v3334 = vpack.c.b16 %v2414, %v2406
    %v3335 = vpack.c.b16 %v2415, %v2407
    %v3336 = vpack.c.b16 %v2416, %v2408
    %v3337 = vpack.c.b16 %v2417, %v2409
    %v3338 = vpack.c.b16 %v2418, %v2410
    %v3339 = vpack.c.b16 %v2419, %v2411
    %v3340 = vpack.c.b16 %v2420, %v2412
    %v3341 = vpack.c.b16 %v2429, %v2421
    %v3342 = vpack.c.b16 %v2430, %v2422
    %v3343 = vpack.c.b16 %v2431, %v2423
    %v3344 = vpack.c.b16 %v2432, %v2424
    %v3345 = vpack.c.b16 %v2433, %v2425
    %v3346 = vpack.c.b16 %v2434, %v2426
    %v3347 = vpack.c.b16 %v2435, %v2427
    %v3348 = vpack.c.b16 %v2436, %v2428
    %v3349 = vpack.c.b16 %v2445, %v2437
    %v3350 = vpack.c.b16 %v2446, %v2438
    %v3351 = vpack.c.b16 %v2447, %v2439
    %v3352 = vpack.c.b16 %v2448, %v2440
    %v3353 = vpack.c.b16 %v2449, %v2441
    %v3354 = vpack.c.b16 %v2450, %v2442
    %v3355 = vpack.c.b16 %v2451, %v2443
    %v3356 = vpack.c.b16 %v2452, %v2444
    %v3357 = vpack.c.b16 %v2461, %v2453
    %v3358 = vpack.c.b16 %v2462, %v2454
    %v3359 = vpack.c.b16 %v2463, %v2455
    %v3360 = vpack.c.b16 %v2464, %v2456
    %v3361 = vpack.c.b16 %v2465, %v2457
    %v3362 = vpack.c.b16 %v2466, %v2458
    %v3363 = vpack.c.b16 %v2467, %v2459
    %v3364 = vpack.c.b16 %v2468, %v2460
    %v3365 = vpack.c.b16 %v2477, %v2469
    %v3366 = vpack.c.b16 %v2478, %v2470
    %v3367 = vpack.c.b16 %v2479, %v2471
    %v3368 = vpack.c.b16 %v2480, %v2472
    %v3369 = vpack.c.b16 %v2481, %v2473
    %v3370 = vpack.c.b16 %v2482, %v2474
    %v3371 = vpack.c.b16 %v2483, %v2475
    %v3372 = vpack.c.b16 %v2484, %v2476
    %v3373 = vpack.c.b16 %v2493, %v2485
    %v3374 = vpack.c.b16 %v2494, %v2486
    %v3375 = vpack.c.b16 %v2495, %v2487
    %v3376 = vpack.c.b16 %v2496, %v2488
    %v3377 = vpack.c.b16 %v2497, %v2489
    %v3378 = vpack.c.b16 %v2498, %v2490
    %v3379 = vpack.c.b16 %v2499, %v2491
    %v3380 = vpack.c.b16 %v2500, %v2492
    %v3381 = vpack.c.b16 %v2509, %v2501
    %v3382 = vpack.c.b16 %v2510, %v2502
    %v3383 = vpack.c.b16 %v2511, %v2503
    %v3384 = vpack.c.b16 %v2512, %v2504
    %v3385 = vpack.c.b16 %v2513, %v2505
    %v3386 = vpack.c.b16 %v2514, %v2506
    %v3387 = vpack.c.b16 %v2515, %v2507
    %v3388 = vpack.c.b16 %v2516, %v2508
    %v3389 = vpack.c.b16 %v2525, %v2517
    %v3390 = vpack.c.b16 %v2526, %v2518
    %v3391 = vpack.c.b16 %v2527, %v2519
    %v3392 = vpack.c.b16 %v2528, %v2520
    %v3393 = vpack.c.b16 %v2529, %v2521
    %v3394 = vpack.c.b16 %v2530, %v2522
    %v3395 = vpack.c.b16 %v2531, %v2523
    %v3396 = vpack.c.b16 %v2532, %v2524
    %v3397 = vpack.c.b16 %v2541, %v2533
    %v3398 = vpack.c.b16 %v2542, %v2534
    %v3399 = vpack.c.b16 %v2543, %v2535
    %v3400 = vpack.c.b16 %v2544, %v2536
    %v3401 = vpack.c.b16 %v2545, %v2537
    %v3402 = vpack.c.b16 %v2546, %v2538
    %v3403 = vpack.c.b16 %v2547, %v2539
    %v3404 = vpack.c.b16 %v2548, %v2540
    %v3405 = vpack.c.b16 %v2557, %v2549
    %v3406 = vpack.c.b16 %v2558, %v2550
    %v3407 = vpack.c.b16 %v2559, %v2551
    %v3408 = vpack.c.b16 %v2560, %v2552
    %v3409 = vpack.c.b16 %v2561, %v2553
    %v3410 = vpack.c.b16 %v2562, %v2554
    %v3411 = vpack.c.b16 %v2563, %v2555
    %v3412 = vpack.c.b16 %v2564, %v2556
    %v3413 = vpack.c.b16 %v2573, %v2565
    %v3414 = vpack.c.b16 %v2574, %v2566
    %v3415 = vpack.c.b16 %v2575, %v2567
    %v3416 = vpack.c.b16 %v2576, %v2568
    %v3417 = vpack.c.b16 %v2577, %v2569
    %v3418 = vpack.c.b16 %v2578, %v2570
    %v3419 = vpack.c.b16 %v2579, %v2571
    %v3420 = vpack.c.b16 %v2580, %v2572
    %v3421 = vpack.c.b16 %v2589, %v2581
    %v3422 = vpack.c.b16 %v2590, %v2582
    %v3423 = vpack.c.b16 %v2591, %v2583
    %v3424 = vpack.c.b16 %v2592, %v2584
    %v3425 = vpack.c.b16 %v2593, %v2585
    %v3426 = vpack.c.b16 %v2594, %v2586
    %v3427 = vpack.c.b16 %v2595, %v2587
    %v3428 = vpack.c.b16 %v2596, %v2588
    %v3429 = vpack.c.b16 %v2605, %v2597
    %v3430 = vpack.c.b16 %v2606, %v2598
    %v3431 = vpack.c.b16 %v2607, %v2599
    %v3432 = vpack.c.b16 %v2608, %v2600
    %v3433 = vpack.c.b16 %v2609, %v2601
    %v3434 = vpack.c.b16 %v2610, %v2602
    %v3435 = vpack.c.b16 %v2611, %v2603
    %v3436 = vpack.c.b16 %v2612, %v2604
    %v3437 = vpack.c.b16 %v2621, %v2613
    %v3438 = vpack.c.b16 %v2622, %v2614
    %v3439 = vpack.c.b16 %v2623, %v2615
    %v3440 = vpack.c.b16 %v2624, %v2616
    %v3441 = vpack.c.b16 %v2625, %v2617
    %v3442 = vpack.c.b16 %v2626, %v2618
    %v3443 = vpack.c.b16 %v2627, %v2619
    %v3444 = vpack.c.b16 %v2628, %v2620
    %v3445 = vpack.c.b16 %v2637, %v2629
    %v3446 = vpack.c.b16 %v2638, %v2630
    %v3447 = vpack.c.b16 %v2639, %v2631
    %v3448 = vpack.c.b16 %v2640, %v2632
    %v3449 = vpack.c.b16 %v2641, %v2633
    %v3450 = vpack.c.b16 %v2642, %v2634
    %v3451 = vpack.c.b16 %v2643, %v2635
    %v3452 = vpack.c.b16 %v2644, %v2636
    %v3453 = vpack.c.b16 %v2653, %v2645
    %v3454 = vpack.c.b16 %v2654, %v2646
    %v3455 = vpack.c.b16 %v2655, %v2647
    %v3456 = vpack.c.b16 %v2656, %v2648
    %v3457 = vpack.c.b16 %v2657, %v2649
    %v3458 = vpack.c.b16 %v2658, %v2650
    %v3459 = vpack.c.b16 %v2659, %v2651
    %v3460 = vpack.c.b16 %v2660, %v2652
    %v3461 = vpack.c.b16 %v2669, %v2661
    %v3462 = vpack.c.b16 %v2670, %v2662
    %v3463 = vpack.c.b16 %v2671, %v2663
    %v3464 = vpack.c.b16 %v2672, %v2664
    %v3465 = vpack.c.b16 %v2673, %v2665
    %v3466 = vpack.c.b16 %v2674, %v2666
    %v3467 = vpack.c.b16 %v2675, %v2667
    %v3468 = vpack.c.b16 %v2676, %v2668
    %v3469 = vpack.c.b16 %v2685, %v2677
    %v3470 = vpack.c.b16 %v2686, %v2678
    %v3471 = vpack.c.b16 %v2687, %v2679
    %v3472 = vpack.c.b16 %v2688, %v2680
    %v3473 = vpack.c.b16 %v2689, %v2681
    %v3474 = vpack.c.b16 %v2690, %v2682
    %v3475 = vpack.c.b16 %v2691, %v2683
    %v3476 = vpack.c.b16 %v2692, %v2684
    %v3477 = vpack.c.b16 %v2701, %v2693
    %v3478 = vpack.c.b16 %v2702, %v2694
    %v3479 = vpack.c.b16 %v2703, %v2695
    %v3480 = vpack.c.b16 %v2704, %v2696
    %v3481 = vpack.c.b16 %v2705, %v2697
    %v3482 = vpack.c.b16 %v2706, %v2698
    %v3483 = vpack.c.b16 %v2707, %v2699
    %v3484 = vpack.c.b16 %v2708, %v2700
    %v3485 = vpack.c.b16 %v2717, %v2709
    %v3486 = vpack.c.b16 %v2718, %v2710
    %v3487 = vpack.c.b16 %v2719, %v2711
    %v3488 = vpack.c.b16 %v2720, %v2712
    %v3489 = vpack.c.b16 %v2721, %v2713
    %v3490 = vpack.c.b16 %v2722, %v2714
    %v3491 = vpack.c.b16 %v2723, %v2715
    %v3492 = vpack.c.b16 %v2724, %v2716
    %v3493 = vpack.c.b16 %v2733, %v2725
    %v3494 = vpack.c.b16 %v2734, %v2726
    %v3495 = vpack.c.b16 %v2735, %v2727
    %v3496 = vpack.c.b16 %v2736, %v2728
    %v3497 = vpack.c.b16 %v2737, %v2729
    %v3498 = vpack.c.b16 %v2738, %v2730
    %v3499 = vpack.c.b16 %v2739, %v2731
    %v3500 = vpack.c.b16 %v2740, %v2732
    %v3501 = vpack.c.b16 %v2749, %v2741
    %v3502 = vpack.c.b16 %v2750, %v2742
    %v3503 = vpack.c.b16 %v2751, %v2743
    %v3504 = vpack.c.b16 %v2752, %v2744
    %v3505 = vpack.c.b16 %v2753, %v2745
    %v3506 = vpack.c.b16 %v2754, %v2746
    %v3507 = vpack.c.b16 %v2755, %v2747
    %v3508 = vpack.c.b16 %v2756, %v2748
    %v3509 = vpack.c.b16 %v2765, %v2757
    %v3510 = vpack.c.b16 %v2766, %v2758
    %v3511 = vpack.c.b16 %v2767, %v2759
    %v3512 = vpack.c.b16 %v2768, %v2760
    %v3513 = vpack.c.b16 %v2769, %v2761
    %v3514 = vpack.c.b16 %v2770, %v2762
    %v3515 = vpack.c.b16 %v2771, %v2763
    %v3516 = vpack.c.b16 %v2772, %v2764
    %v3517 = vpack.c.b16 %v2781, %v2773
    %v3518 = vpack.c.b16 %v2782, %v2774
    %v3519 = vpack.c.b16 %v2783, %v2775
    %v3520 = vpack.c.b16 %v2784, %v2776
    %v3521 = vpack.c.b16 %v2785, %v2777
    %v3522 = vpack.c.b16 %v2786, %v2778
    %v3523 = vpack.c.b16 %v2787, %v2779
    %v3524 = vpack.c.b16 %v2788, %v2780
    %v3525 = vpack.c.b16 %v2797, %v2789
    %v3526 = vpack.c.b16 %v2798, %v2790
    %v3527 = vpack.c.b16 %v2799, %v2791
    %v3528 = vpack.c.b16 %v2800, %v2792
    %v3529 = vpack.c.b16 %v2801, %v2793
    %v3530 = vpack.c.b16 %v2802, %v2794
    %v3531 = vpack.c.b16 %v2803, %v2795
    %v3532 = vpack.c.b16 %v2804, %v2796
    %v3533 = vpack.c.b16 %v2813, %v2805
    %v3534 = vpack.c.b16 %v2814, %v2806
    %v3535 = vpack.c.b16 %v2815, %v2807
    %v3536 = vpack.c.b16 %v2816, %v2808
    %v3537 = vpack.c.b16 %v2817, %v2809
    %v3538 = vpack.c.b16 %v2818, %v2810
    %v3539 = vpack.c.b16 %v2819, %v2811
    %v3540 = vpack.c.b16 %v2820, %v2812
    %v3541 = vpack.c.b16 %v2829, %v2821
    %v3542 = vpack.c.b16 %v2830, %v2822
    %v3543 = vpack.c.b16 %v2831, %v2823
    %v3544 = vpack.c.b16 %v2832, %v2824
    %v3545 = vpack.c.b16 %v2833, %v2825
    %v3546 = vpack.c.b16 %v2834, %v2826
    %v3547 = vpack.c.b16 %v2835, %v2827
    %v3548 = vpack.c.b16 %v2836, %v2828
    %v3549 = vpack.c.b16 %v2845, %v2837
    %v3550 = vpack.c.b16 %v2846, %v2838
    %v3551 = vpack.c.b16 %v2847, %v2839
    %v3552 = vpack.c.b16 %v2848, %v2840
    %v3553 = vpack.c.b16 %v2849, %v2841
    %v3554 = vpack.c.b16 %v2850, %v2842
    %v3555 = vpack.c.b16 %v2851, %v2843
    %v3556 = vpack.c.b16 %v2852, %v2844
    %v3557 = vpack.c.b16 %v2861, %v2853
    %v3558 = vpack.c.b16 %v2862, %v2854
    %v3559 = vpack.c.b16 %v2863, %v2855
    %v3560 = vpack.c.b16 %v2864, %v2856
    %v3561 = vpack.c.b16 %v2865, %v2857
    %v3562 = vpack.c.b16 %v2866, %v2858
    %v3563 = vpack.c.b16 %v2867, %v2859
    %v3564 = vpack.c.b16 %v2868, %v2860
    %v3565 = vpack.c.b16 %v2877, %v2869
    %v3566 = vpack.c.b16 %v2878, %v2870
    %v3567 = vpack.c.b16 %v2879, %v2871
    %v3568 = vpack.c.b16 %v2880, %v2872
    %v3569 = vpack.c.b16 %v2881, %v2873
    %v3570 = vpack.c.b16 %v2882, %v2874
    %v3571 = vpack.c.b16 %v2883, %v2875
    %v3572 = vpack.c.b16 %v2884, %v2876
    %v3573 = vpack.c.b16 %v2893, %v2885
    %v3574 = vpack.c.b16 %v2894, %v2886
    %v3575 = vpack.c.b16 %v2895, %v2887
    %v3576 = vpack.c.b16 %v2896, %v2888
    %v3577 = vpack.c.b16 %v2897, %v2889
    %v3578 = vpack.c.b16 %v2898, %v2890
    %v3579 = vpack.c.b16 %v2899, %v2891
    %v3580 = vpack.c.b16 %v2900, %v2892
    %v3581 = vpack.c.b16 %v2909, %v2901
    %v3582 = vpack.c.b16 %v2910, %v2902
    %v3583 = vpack.c.b16 %v2911, %v2903
    %v3584 = vpack.c.b16 %v2912, %v2904
    %v3585 = vpack.c.b16 %v2913, %v2905
    %v3586 = vpack.c.b16 %v2914, %v2906
    %v3587 = vpack.c.b16 %v2915, %v2907
    %v3588 = vpack.c.b16 %v2916, %v2908
    %v3589 = vpack.c.b16 %v2925, %v2917
    %v3590 = vpack.c.b16 %v2926, %v2918
    %v3591 = vpack.c.b16 %v2927, %v2919
    %v3592 = vpack.c.b16 %v2928, %v2920
    %v3593 = vpack.c.b16 %v2929, %v2921
    %v3594 = vpack.c.b16 %v2930, %v2922
    %v3595 = vpack.c.b16 %v2931, %v2923
    %v3596 = vpack.c.b16 %v2932, %v2924
    %v3597 = vpack.c.b16 %v2941, %v2933
    %v3598 = vpack.c.b16 %v2942, %v2934
    %v3599 = vpack.c.b16 %v2943, %v2935
    %v3600 = vpack.c.b16 %v2944, %v2936
    %v3601 = vpack.c.b16 %v2945, %v2937
    %v3602 = vpack.c.b16 %v2946, %v2938
    %v3603 = vpack.c.b16 %v2947, %v2939
    %v3604 = vpack.c.b16 %v2948, %v2940
    %v3605 = vpack.c.b16 %v2957, %v2949
    %v3606 = vpack.c.b16 %v2958, %v2950
    %v3607 = vpack.c.b16 %v2959, %v2951
    %v3608 = vpack.c.b16 %v2960, %v2952
    %v3609 = vpack.c.b16 %v2961, %v2953
    %v3610 = vpack.c.b16 %v2962, %v2954
    %v3611 = vpack.c.b16 %v2963, %v2955
    %v3612 = vpack.c.b16 %v2964, %v2956
    %v3613 = vpack.c.b16 %v2973, %v2965
    %v3614 = vpack.c.b16 %v2974, %v2966
    %v3615 = vpack.c.b16 %v2975, %v2967
    %v3616 = vpack.c.b16 %v2976, %v2968
    %v3617 = vpack.c.b16 %v2977, %v2969
    %v3618 = vpack.c.b16 %v2978, %v2970
    %v3619 = vpack.c.b16 %v2979, %v2971
    %v3620 = vpack.c.b16 %v2980, %v2972
    %v3621 = vpack.c.b16 %v2989, %v2981
    %v3622 = vpack.c.b16 %v2990, %v2982
    %v3623 = vpack.c.b16 %v2991, %v2983
    %v3624 = vpack.c.b16 %v2992, %v2984
    %v3625 = vpack.c.b16 %v2993, %v2985
    %v3626 = vpack.c.b16 %v2994, %v2986
    %v3627 = vpack.c.b16 %v2995, %v2987
    %v3628 = vpack.c.b16 %v2996, %v2988
    %v3629 = vpack.c.b16 %v3005, %v2997
    %v3630 = vpack.c.b16 %v3006, %v2998
    %v3631 = vpack.c.b16 %v3007, %v2999
    %v3632 = vpack.c.b16 %v3008, %v3000
    %v3633 = vpack.c.b16 %v3009, %v3001
    %v3634 = vpack.c.b16 %v3010, %v3002
    %v3635 = vpack.c.b16 %v3011, %v3003
    %v3636 = vpack.c.b16 %v3012, %v3004
    %v3637 = vpack.c.b16 %v3021, %v3013
    %v3638 = vpack.c.b16 %v3022, %v3014
    %v3639 = vpack.c.b16 %v3023, %v3015
    %v3640 = vpack.c.b16 %v3024, %v3016
    %v3641 = vpack.c.b16 %v3025, %v3017
    %v3642 = vpack.c.b16 %v3026, %v3018
    %v3643 = vpack.c.b16 %v3027, %v3019
    %v3644 = vpack.c.b16 %v3028, %v3020
    %v3645 = vpack.c.b16 %v3037, %v3029
    %v3646 = vpack.c.b16 %v3038, %v3030
    %v3647 = vpack.c.b16 %v3039, %v3031
    %v3648 = vpack.c.b16 %v3040, %v3032
    %v3649 = vpack.c.b16 %v3041, %v3033
    %v3650 = vpack.c.b16 %v3042, %v3034
    %v3651 = vpack.c.b16 %v3043, %v3035
    %v3652 = vpack.c.b16 %v3044, %v3036
    %v3653 = vpack.c.b16 %v3053, %v3045
    %v3654 = vpack.c.b16 %v3054, %v3046
    %v3655 = vpack.c.b16 %v3055, %v3047
    %v3656 = vpack.c.b16 %v3056, %v3048
    %v3657 = vpack.c.b16 %v3057, %v3049
    %v3658 = vpack.c.b16 %v3058, %v3050
    %v3659 = vpack.c.b16 %v3059, %v3051
    %v3660 = vpack.c.b16 %v3060, %v3052
    %v3661 = vpack.c.b16 %v3069, %v3061
    %v3662 = vpack.c.b16 %v3070, %v3062
    %v3663 = vpack.c.b16 %v3071, %v3063
    %v3664 = vpack.c.b16 %v3072, %v3064
    %v3665 = vpack.c.b16 %v3073, %v3065
    %v3666 = vpack.c.b16 %v3074, %v3066
    %v3667 = vpack.c.b16 %v3075, %v3067
    %v3668 = vpack.c.b16 %v3076, %v3068
    %v3669 = vpack.c.b16 %v3085, %v3077
    %v3670 = vpack.c.b16 %v3086, %v3078
    %v3671 = vpack.c.b16 %v3087, %v3079
    %v3672 = vpack.c.b16 %v3088, %v3080
    %v3673 = vpack.c.b16 %v3089, %v3081
    %v3674 = vpack.c.b16 %v3090, %v3082
    %v3675 = vpack.c.b16 %v3091, %v3083
    %v3676 = vpack.c.b16 %v3092, %v3084
    %v3677 = vpack.c.b16 %v3101, %v3093
    %v3678 = vpack.c.b16 %v3102, %v3094
    %v3679 = vpack.c.b16 %v3103, %v3095
    %v3680 = vpack.c.b16 %v3104, %v3096
    %v3681 = vpack.c.b16 %v3105, %v3097
    %v3682 = vpack.c.b16 %v3106, %v3098
    %v3683 = vpack.c.b16 %v3107, %v3099
    %v3684 = vpack.c.b16 %v3108, %v3100
    %v3685 = vpack.c.b16 %v3117, %v3109
    %v3686 = vpack.c.b16 %v3118, %v3110
    %v3687 = vpack.c.b16 %v3119, %v3111
    %v3688 = vpack.c.b16 %v3120, %v3112
    %v3689 = vpack.c.b16 %v3121, %v3113
    %v3690 = vpack.c.b16 %v3122, %v3114
    %v3691 = vpack.c.b16 %v3123, %v3115
    %v3692 = vpack.c.b16 %v3124, %v3116
    %v3693 = vpack.c.b16 %v3133, %v3125
    %v3694 = vpack.c.b16 %v3134, %v3126
    %v3695 = vpack.c.b16 %v3135, %v3127
    %v3696 = vpack.c.b16 %v3136, %v3128
    %v3697 = vpack.c.b16 %v3137, %v3129
    %v3698 = vpack.c.b16 %v3138, %v3130
    %v3699 = vpack.c.b16 %v3139, %v3131
    %v3700 = vpack.c.b16 %v3140, %v3132
    %v3701 = vpack.c.b16 %v3149, %v3141
    %v3702 = vpack.c.b16 %v3150, %v3142
    %v3703 = vpack.c.b16 %v3151, %v3143
    %v3704 = vpack.c.b16 %v3152, %v3144
    %v3705 = vpack.c.b16 %v3153, %v3145
    %v3706 = vpack.c.b16 %v3154, %v3146
    %v3707 = vpack.c.b16 %v3155, %v3147
    %v3708 = vpack.c.b16 %v3156, %v3148
    %v3709 = vpack.c.b16 %v3165, %v3157
    %v3710 = vpack.c.b16 %v3166, %v3158
    %v3711 = vpack.c.b16 %v3167, %v3159
    %v3712 = vpack.c.b16 %v3168, %v3160
    %v3713 = vpack.c.b16 %v3169, %v3161
    %v3714 = vpack.c.b16 %v3170, %v3162
    %v3715 = vpack.c.b16 %v3171, %v3163
    %v3716 = vpack.c.b16 %v3172, %v3164
    %v3717 = vpack.c.b16 %v3181, %v3173
    %v3718 = vpack.c.b16 %v3182, %v3174
    %v3719 = vpack.c.b16 %v3183, %v3175
    %v3720 = vpack.c.b16 %v3184, %v3176
    %v3721 = vpack.c.b16 %v3185, %v3177
    %v3722 = vpack.c.b16 %v3186, %v3178
    %v3723 = vpack.c.b16 %v3187, %v3179
    %v3724 = vpack.c.b16 %v3188, %v3180
    %v3725 = vpack.c.b16 %v3197, %v3189
    %v3726 = vpack.c.b16 %v3198, %v3190
    %v3727 = vpack.c.b16 %v3199, %v3191
    %v3728 = vpack.c.b16 %v3200, %v3192
    %v3729 = vpack.c.b16 %v3201, %v3193
    %v3730 = vpack.c.b16 %v3202, %v3194
    %v3731 = vpack.c.b16 %v3203, %v3195
    %v3732 = vpack.c.b16 %v3204, %v3196
    %v3733 = vpack.c.b16 %v3213, %v3205
    %v3734 = vpack.c.b16 %v3214, %v3206
    %v3735 = vpack.c.b16 %v3215, %v3207
    %v3736 = vpack.c.b16 %v3216, %v3208
    %v3737 = vpack.c.b16 %v3217, %v3209
    %v3738 = vpack.c.b16 %v3218, %v3210
    %v3739 = vpack.c.b16 %v3219, %v3211
    %v3740 = vpack.c.b16 %v3220, %v3212
    %v3741 = vpack.c.b16 %v3229, %v3221
    %v3742 = vpack.c.b16 %v3230, %v3222
    %v3743 = vpack.c.b16 %v3231, %v3223
    %v3744 = vpack.c.b16 %v3232, %v3224
    %v3745 = vpack.c.b16 %v3233, %v3225
    %v3746 = vpack.c.b16 %v3234, %v3226
    %v3747 = vpack.c.b16 %v3235, %v3227
    %v3748 = vpack.c.b16 %v3236, %v3228
    %4261 = vmatprep.subr.bf16.mxu0 %v3238
    %4262 = vmatpush1.bf16.msra.mxu0 %v3237
    %4263 = vmatprep.subr.bf16.mxu0 %v3246
    %4264 = vmatpush1.bf16.msra.mxu0 %v3245
    %4265 = vmatprep.subr.bf16.mxu0 %v3254
    %4266 = vmatpush1.bf16.msra.mxu0 %v3253
    %4267 = vmatprep.subr.bf16.mxu0 %v3262
    %4268 = vmatpush1.bf16.msra.mxu0 %v3261
    %4269 = vmatprep.subr.bf16.mxu0 %v3270
    %4270 = vmatpush1.bf16.msra.mxu0 %v3269
    %4271 = vmatprep.subr.bf16.mxu0 %v3278
    %4272 = vmatpush1.bf16.msra.mxu0 %v3277
    %4273 = vmatprep.subr.bf16.mxu0 %v3286
    %4274 = vmatpush1.bf16.msra.mxu0 %v3285
    %4275 = vmatprep.subr.bf16.mxu0 %v3294
    %4276 = vmatpush1.bf16.msra.mxu0 %v3293
    %4277 = vmatprep.subr.bf16.mxu0 %v3302
    %4278 = vmatpush1.bf16.msra.mxu0 %v3301
    %4279 = vmatprep.subr.bf16.mxu0 %v3310
    %4280 = vmatpush1.bf16.msra.mxu0 %v3309
    %4281 = vmatprep.subr.bf16.mxu0 %v3318
    %4282 = vmatpush1.bf16.msra.mxu0 %v3317
    %4283 = vmatprep.subr.bf16.mxu0 %v3326
    %4284 = vmatpush1.bf16.msra.mxu0 %v3325
    %4285 = vmatprep.subr.bf16.mxu0 %v3334
    %4286 = vmatpush1.bf16.msra.mxu0 %v3333
    %4287 = vmatprep.subr.bf16.mxu0 %v3342
    %4288 = vmatpush1.bf16.msra.mxu0 %v3341
    %4289 = vmatprep.subr.bf16.mxu0 %v3350
    %4290 = vmatpush1.bf16.msra.mxu0 %v3349
    %4291 = vmatprep.subr.bf16.mxu0 %v3358
    %4292 = vmatpush1.bf16.msra.mxu0 %v3357
    %4293 = vmatprep.mubr.bf16.mxu0 %v1140
    %4294 = vmatmul.mubr.bf16.gmra.mrb[0].mxu0 %v1139
    %v4295 = vpop.f32.mrb[0].mxu0
    %v4296 = vadd.f32 %v1664, %v4295
    %v4297 = vpop.f32.mrb[0].mxu0
    %v4298 = vadd.f32 %v1668, %v4297
    %v4299 = vpop.f32.mrb[0].mxu0
    %v4300 = vpop.f32.mrb[0].mxu0
    %4301 = vdwg.mxu0
    %4302 = vmatprep.subr.bf16.mxu0 %v3366
    %4303 = vmatpush1.bf16.msra.mxu0 %v3365
    %4304 = vmatprep.subr.bf16.mxu0 %v3374
    %4305 = vmatpush1.bf16.msra.mxu0 %v3373
    %4306 = vmatprep.subr.bf16.mxu0 %v3382
    %4307 = vmatpush1.bf16.msra.mxu0 %v3381
    %4308 = vmatprep.subr.bf16.mxu0 %v3390
    %4309 = vmatpush1.bf16.msra.mxu0 %v3389
    %4310 = vmatprep.subr.bf16.mxu0 %v3398
    %4311 = vmatpush1.bf16.msra.mxu0 %v3397
    %4312 = vmatprep.subr.bf16.mxu0 %v3406
    %4313 = vmatpush1.bf16.msra.mxu0 %v3405
    %4314 = vmatprep.subr.bf16.mxu0 %v3414
    %4315 = vmatpush1.bf16.msra.mxu0 %v3413
    %4316 = vmatprep.subr.bf16.mxu0 %v3422
    %4317 = vmatpush1.bf16.msra.mxu0 %v3421
    %4318 = vmatprep.subr.bf16.mxu0 %v3430
    %4319 = vmatpush1.bf16.msra.mxu0 %v3429
    %4320 = vmatprep.subr.bf16.mxu0 %v3438
    %4321 = vmatpush1.bf16.msra.mxu0 %v3437
    %4322 = vmatprep.subr.bf16.mxu0 %v3446
    %4323 = vmatpush1.bf16.msra.mxu0 %v3445
    %4324 = vmatprep.subr.bf16.mxu0 %v3454
    %4325 = vmatpush1.bf16.msra.mxu0 %v3453
    %4326 = vmatprep.subr.bf16.mxu0 %v3462
    %4327 = vmatpush1.bf16.msra.mxu0 %v3461
    %4328 = vmatprep.subr.bf16.mxu0 %v3470
    %4329 = vmatpush1.bf16.msra.mxu0 %v3469
    %4330 = vmatprep.subr.bf16.mxu0 %v3478
    %4331 = vmatpush1.bf16.msra.mxu0 %v3477
    %4332 = vmatprep.subr.bf16.mxu0 %v3486
    %4333 = vmatpush1.bf16.msra.mxu0 %v3485
    %4334 = vmatprep.mubr.bf16.mxu0 %v1142
    %4335 = vmatmul.mubr.bf16.gmra.mrb[0].mxu0 %v1141
    %v4336 = vpop.f32.mrb[0].mxu0
    %v4337 = vadd.f32 %v4296, %v4336
    %v4338 = vpop.f32.mrb[0].mxu0
    %v4339 = vadd.f32 %v4298, %v4338
    %v4340 = vpop.f32.mrb[0].mxu0
    %v4341 = vpop.f32.mrb[0].mxu0
    %4342 = vdwg.mxu0
    %4343 = vmatprep.subr.bf16.mxu0 %v3494
    %4344 = vmatpush1.bf16.msra.mxu0 %v3493
    %4345 = vmatprep.subr.bf16.mxu0 %v3502
    %4346 = vmatpush1.bf16.msra.mxu0 %v3501
    %4347 = vmatprep.subr.bf16.mxu0 %v3510
    %4348 = vmatpush1.bf16.msra.mxu0 %v3509
    %4349 = vmatprep.subr.bf16.mxu0 %v3518
    %4350 = vmatpush1.bf16.msra.mxu0 %v3517
    %4351 = vmatprep.subr.bf16.mxu0 %v3526
    %4352 = vmatpush1.bf16.msra.mxu0 %v3525
    %4353 = vmatprep.subr.bf16.mxu0 %v3534
    %4354 = vmatpush1.bf16.msra.mxu0 %v3533
    %4355 = vmatprep.subr.bf16.mxu0 %v3542
    %4356 = vmatpush1.bf16.msra.mxu0 %v3541
    %4357 = vmatprep.subr.bf16.mxu0 %v3550
    %4358 = vmatpush1.bf16.msra.mxu0 %v3549
    %4359 = vmatprep.subr.bf16.mxu0 %v3558
    %4360 = vmatpush1.bf16.msra.mxu0 %v3557
    %4361 = vmatprep.subr.bf16.mxu0 %v3566
    %4362 = vmatpush1.bf16.msra.mxu0 %v3565
    %4363 = vmatprep.subr.bf16.mxu0 %v3574
    %4364 = vmatpush1.bf16.msra.mxu0 %v3573
    %4365 = vmatprep.subr.bf16.mxu0 %v3582
    %4366 = vmatpush1.bf16.msra.mxu0 %v3581
    %4367 = vmatprep.subr.bf16.mxu0 %v3590
    %4368 = vmatpush1.bf16.msra.mxu0 %v3589
    %4369 = vmatprep.subr.bf16.mxu0 %v3598
    %4370 = vmatpush1.bf16.msra.mxu0 %v3597
    %4371 = vmatprep.subr.bf16.mxu0 %v3606
    %4372 = vmatpush1.bf16.msra.mxu0 %v3605
    %4373 = vmatprep.subr.bf16.mxu0 %v3614
    %4374 = vmatpush1.bf16.msra.mxu0 %v3613
    %4375 = vmatprep.mubr.bf16.mxu0 %v1144
    %4376 = vmatmul.mubr.bf16.gmra.mrb[0].mxu0 %v1143
    %v4377 = vpop.f32.mrb[0].mxu0
    %v4378 = vadd.f32 %v4337, %v4377
    %v4379 = vpop.f32.mrb[0].mxu0
    %v4380 = vadd.f32 %v4339, %v4379
    %v4381 = vpop.f32.mrb[0].mxu0
    %v4382 = vpop.f32.mrb[0].mxu0
    %4383 = vdwg.mxu0
    %4384 = vmatprep.subr.bf16.mxu0 %v3622
    %4385 = vmatpush1.bf16.msra.mxu0 %v3621
    %4386 = vmatprep.subr.bf16.mxu0 %v3630
    %4387 = vmatpush1.bf16.msra.mxu0 %v3629
    %4388 = vmatprep.subr.bf16.mxu0 %v3638
    %4389 = vmatpush1.bf16.msra.mxu0 %v3637
    %4390 = vmatprep.subr.bf16.mxu0 %v3646
    %4391 = vmatpush1.bf16.msra.mxu0 %v3645
    %4392 = vmatprep.subr.bf16.mxu0 %v3654
    %4393 = vmatpush1.bf16.msra.mxu0 %v3653
    %4394 = vmatprep.subr.bf16.mxu0 %v3662
    %4395 = vmatpush1.bf16.msra.mxu0 %v3661
    %4396 = vmatprep.subr.bf16.mxu0 %v3670
    %4397 = vmatpush1.bf16.msra.mxu0 %v3669
    %4398 = vmatprep.subr.bf16.mxu0 %v3678
    %4399 = vmatpush1.bf16.msra.mxu0 %v3677
    %4400 = vmatprep.subr.bf16.mxu0 %v3686
    %4401 = vmatpush1.bf16.msra.mxu0 %v3685
    %4402 = vmatprep.subr.bf16.mxu0 %v3694
    %4403 = vmatpush1.bf16.msra.mxu0 %v3693
    %4404 = vmatprep.subr.bf16.mxu0 %v3702
    %4405 = vmatpush1.bf16.msra.mxu0 %v3701
    %4406 = vmatprep.subr.bf16.mxu0 %v3710
    %4407 = vmatpush1.bf16.msra.mxu0 %v3709
    %4408 = vmatprep.subr.bf16.mxu0 %v3718
    %4409 = vmatpush1.bf16.msra.mxu0 %v3717
    %4410 = vmatprep.subr.bf16.mxu0 %v3726
    %4411 = vmatpush1.bf16.msra.mxu0 %v3725
    %4412 = vmatprep.subr.bf16.mxu0 %v3734
    %4413 = vmatpush1.bf16.msra.mxu0 %v3733
    %4414 = vmatprep.subr.bf16.mxu0 %v3742
    %4415 = vmatpush1.bf16.msra.mxu0 %v3741
    %4416 = vmatprep.mubr.bf16.mxu0 %v1146
    %4417 = vmatmul.mubr.bf16.gmra.mrb[0].mxu0 %v1145
    %v4418 = vpop.f32.mrb[0].mxu0
    %v4419 = vadd.f32 %v4378, %v4418
    %v4420 = vpop.f32.mrb[0].mxu0
    %v4421 = vadd.f32 %v4380, %v4420
    %v4422 = vpop.f32.mrb[0].mxu0
    %v4423 = vpop.f32.mrb[0].mxu0
    %4424 = vdwg.mxu0
    %4425 = vmatprep.subr.bf16.mxu0 %v3240
    %4426 = vmatpush1.bf16.msra.mxu0 %v3239
    %4427 = vmatprep.subr.bf16.mxu0 %v3248
    %4428 = vmatpush1.bf16.msra.mxu0 %v3247
    %4429 = vmatprep.subr.bf16.mxu0 %v3256
    %4430 = vmatpush1.bf16.msra.mxu0 %v3255
    %4431 = vmatprep.subr.bf16.mxu0 %v3264
    %4432 = vmatpush1.bf16.msra.mxu0 %v3263
    %4433 = vmatprep.subr.bf16.mxu0 %v3272
    %4434 = vmatpush1.bf16.msra.mxu0 %v3271
    %4435 = vmatprep.subr.bf16.mxu0 %v3280
    %4436 = vmatpush1.bf16.msra.mxu0 %v3279
    %4437 = vmatprep.subr.bf16.mxu0 %v3288
    %4438 = vmatpush1.bf16.msra.mxu0 %v3287
    %4439 = vmatprep.subr.bf16.mxu0 %v3296
    %4440 = vmatpush1.bf16.msra.mxu0 %v3295
    %4441 = vmatprep.subr.bf16.mxu0 %v3304
    %4442 = vmatpush1.bf16.msra.mxu0 %v3303
    %4443 = vmatprep.subr.bf16.mxu0 %v3312
    %4444 = vmatpush1.bf16.msra.mxu0 %v3311
    %4445 = vmatprep.subr.bf16.mxu0 %v3320
    %4446 = vmatpush1.bf16.msra.mxu0 %v3319
    %4447 = vmatprep.subr.bf16.mxu0 %v3328
    %4448 = vmatpush1.bf16.msra.mxu0 %v3327
    %4449 = vmatprep.subr.bf16.mxu0 %v3336
    %4450 = vmatpush1.bf16.msra.mxu0 %v3335
    %4451 = vmatprep.subr.bf16.mxu0 %v3344
    %4452 = vmatpush1.bf16.msra.mxu0 %v3343
    %4453 = vmatprep.subr.bf16.mxu0 %v3352
    %4454 = vmatpush1.bf16.msra.mxu0 %v3351
    %4455 = vmatprep.subr.bf16.mxu0 %v3360
    %4456 = vmatpush1.bf16.msra.mxu0 %v3359
    %4457 = vmatprep.mubr.bf16.mxu0 %v1140
    %4458 = vmatmul.mubr.bf16.gmra.mrb[0].mxu0 %v1139
    %v4459 = vpop.f32.mrb[0].mxu0
    %v4460 = vadd.f32 %v1672, %v4459
    %v4461 = vpop.f32.mrb[0].mxu0
    %v4462 = vadd.f32 %v1676, %v4461
    %v4463 = vpop.f32.mrb[0].mxu0
    %v4464 = vpop.f32.mrb[0].mxu0
    %4465 = vdwg.mxu0
    %4466 = vmatprep.subr.bf16.mxu0 %v3368
    %4467 = vmatpush1.bf16.msra.mxu0 %v3367
    %4468 = vmatprep.subr.bf16.mxu0 %v3376
    %4469 = vmatpush1.bf16.msra.mxu0 %v3375
    %4470 = vmatprep.subr.bf16.mxu0 %v3384
    %4471 = vmatpush1.bf16.msra.mxu0 %v3383
    %4472 = vmatprep.subr.bf16.mxu0 %v3392
    %4473 = vmatpush1.bf16.msra.mxu0 %v3391
    %4474 = vmatprep.subr.bf16.mxu0 %v3400
    %4475 = vmatpush1.bf16.msra.mxu0 %v3399
    %4476 = vmatprep.subr.bf16.mxu0 %v3408
    %4477 = vmatpush1.bf16.msra.mxu0 %v3407
    %4478 = vmatprep.subr.bf16.mxu0 %v3416
    %4479 = vmatpush1.bf16.msra.mxu0 %v3415
    %4480 = vmatprep.subr.bf16.mxu0 %v3424
    %4481 = vmatpush1.bf16.msra.mxu0 %v3423
    %4482 = vmatprep.subr.bf16.mxu0 %v3432
    %4483 = vmatpush1.bf16.msra.mxu0 %v3431
    %4484 = vmatprep.subr.bf16.mxu0 %v3440
    %4485 = vmatpush1.bf16.msra.mxu0 %v3439
    %4486 = vmatprep.subr.bf16.mxu0 %v3448
    %4487 = vmatpush1.bf16.msra.mxu0 %v3447
    %4488 = vmatprep.subr.bf16.mxu0 %v3456
    %4489 = vmatpush1.bf16.msra.mxu0 %v3455
    %4490 = vmatprep.subr.bf16.mxu0 %v3464
    %4491 = vmatpush1.bf16.msra.mxu0 %v3463
    %4492 = vmatprep.subr.bf16.mxu0 %v3472
    %4493 = vmatpush1.bf16.msra.mxu0 %v3471
    %4494 = vmatprep.subr.bf16.mxu0 %v3480
    %4495 = vmatpush1.bf16.msra.mxu0 %v3479
    %4496 = vmatprep.subr.bf16.mxu0 %v3488
    %4497 = vmatpush1.bf16.msra.mxu0 %v3487
    %4498 = vmatprep.mubr.bf16.mxu0 %v1142
    %4499 = vmatmul.mubr.bf16.gmra.mrb[0].mxu0 %v1141
    %v4500 = vpop.f32.mrb[0].mxu0
    %v4501 = vadd.f32 %v4460, %v4500
    %v4502 = vpop.f32.mrb[0].mxu0
    %v4503 = vadd.f32 %v4462, %v4502
    %v4504 = vpop.f32.mrb[0].mxu0
    %v4505 = vpop.f32.mrb[0].mxu0
    %4506 = vdwg.mxu0
    %4507 = vmatprep.subr.bf16.mxu0 %v3496
    %4508 = vmatpush1.bf16.msra.mxu0 %v3495
    %4509 = vmatprep.subr.bf16.mxu0 %v3504
    %4510 = vmatpush1.bf16.msra.mxu0 %v3503
    %4511 = vmatprep.subr.bf16.mxu0 %v3512
    %4512 = vmatpush1.bf16.msra.mxu0 %v3511
    %4513 = vmatprep.subr.bf16.mxu0 %v3520
    %4514 = vmatpush1.bf16.msra.mxu0 %v3519
    %4515 = vmatprep.subr.bf16.mxu0 %v3528
    %4516 = vmatpush1.bf16.msra.mxu0 %v3527
    %4517 = vmatprep.subr.bf16.mxu0 %v3536
    %4518 = vmatpush1.bf16.msra.mxu0 %v3535
    %4519 = vmatprep.subr.bf16.mxu0 %v3544
    %4520 = vmatpush1.bf16.msra.mxu0 %v3543
    %4521 = vmatprep.subr.bf16.mxu0 %v3552
    %4522 = vmatpush1.bf16.msra.mxu0 %v3551
    %4523 = vmatprep.subr.bf16.mxu0 %v3560
    %4524 = vmatpush1.bf16.msra.mxu0 %v3559
    %4525 = vmatprep.subr.bf16.mxu0 %v3568
    %4526 = vmatpush1.bf16.msra.mxu0 %v3567
    %4527 = vmatprep.subr.bf16.mxu0 %v3576
    %4528 = vmatpush1.bf16.msra.mxu0 %v3575
    %4529 = vmatprep.subr.bf16.mxu0 %v3584
    %4530 = vmatpush1.bf16.msra.mxu0 %v3583
    %4531 = vmatprep.subr.bf16.mxu0 %v3592
    %4532 = vmatpush1.bf16.msra.mxu0 %v3591
    %4533 = vmatprep.subr.bf16.mxu0 %v3600
    %4534 = vmatpush1.bf16.msra.mxu0 %v3599
    %4535 = vmatprep.subr.bf16.mxu0 %v3608
    %4536 = vmatpush1.bf16.msra.mxu0 %v3607
    %4537 = vmatprep.subr.bf16.mxu0 %v3616
    %4538 = vmatpush1.bf16.msra.mxu0 %v3615
    %4539 = vmatprep.mubr.bf16.mxu0 %v1144
    %4540 = vmatmul.mubr.bf16.gmra.mrb[0].mxu0 %v1143
    %v4541 = vpop.f32.mrb[0].mxu0
    %v4542 = vadd.f32 %v4501, %v4541
    %v4543 = vpop.f32.mrb[0].mxu0
    %v4544 = vadd.f32 %v4503, %v4543
    %v4545 = vpop.f32.mrb[0].mxu0
    %v4546 = vpop.f32.mrb[0].mxu0
    %4547 = vdwg.mxu0
    %4548 = vmatprep.subr.bf16.mxu0 %v3624
    %4549 = vmatpush1.bf16.msra.mxu0 %v3623
    %4550 = vmatprep.subr.bf16.mxu0 %v3632
    %4551 = vmatpush1.bf16.msra.mxu0 %v3631
    %4552 = vmatprep.subr.bf16.mxu0 %v3640
    %4553 = vmatpush1.bf16.msra.mxu0 %v3639
    %4554 = vmatprep.subr.bf16.mxu0 %v3648
    %4555 = vmatpush1.bf16.msra.mxu0 %v3647
    %4556 = vmatprep.subr.bf16.mxu0 %v3656
    %4557 = vmatpush1.bf16.msra.mxu0 %v3655
    %4558 = vmatprep.subr.bf16.mxu0 %v3664
    %4559 = vmatpush1.bf16.msra.mxu0 %v3663
    %4560 = vmatprep.subr.bf16.mxu0 %v3672
    %4561 = vmatpush1.bf16.msra.mxu0 %v3671
    %4562 = vmatprep.subr.bf16.mxu0 %v3680
    %4563 = vmatpush1.bf16.msra.mxu0 %v3679
    %4564 = vmatprep.subr.bf16.mxu0 %v3688
    %4565 = vmatpush1.bf16.msra.mxu0 %v3687
    %4566 = vmatprep.subr.bf16.mxu0 %v3696
    %4567 = vmatpush1.bf16.msra.mxu0 %v3695
    %4568 = vmatprep.subr.bf16.mxu0 %v3704
    %4569 = vmatpush1.bf16.msra.mxu0 %v3703
    %4570 = vmatprep.subr.bf16.mxu0 %v3712
    %4571 = vmatpush1.bf16.msra.mxu0 %v3711
    %4572 = vmatprep.subr.bf16.mxu0 %v3720
    %4573 = vmatpush1.bf16.msra.mxu0 %v3719
    %4574 = vmatprep.subr.bf16.mxu0 %v3728
    %4575 = vmatpush1.bf16.msra.mxu0 %v3727
    %4576 = vmatprep.subr.bf16.mxu0 %v3736
    %4577 = vmatpush1.bf16.msra.mxu0 %v3735
    %4578 = vmatprep.subr.bf16.mxu0 %v3744
    %4579 = vmatpush1.bf16.msra.mxu0 %v3743
    %4580 = vmatprep.mubr.bf16.mxu0 %v1146
    %4581 = vmatmul.mubr.bf16.gmra.mrb[0].mxu0 %v1145
    %v4582 = vpop.f32.mrb[0].mxu0
    %v4583 = vadd.f32 %v4542, %v4582
    %v4584 = vpop.f32.mrb[0].mxu0
    %v4585 = vadd.f32 %v4544, %v4584
    %v4586 = vpop.f32.mrb[0].mxu0
    %v4587 = vpop.f32.mrb[0].mxu0
    %4588 = vdwg.mxu0
    %4589 = vmatprep.subr.bf16.mxu0 %v3242
    %4590 = vmatpush1.bf16.msra.mxu0 %v3241
    %4591 = vmatprep.subr.bf16.mxu0 %v3250
    %4592 = vmatpush1.bf16.msra.mxu0 %v3249
    %4593 = vmatprep.subr.bf16.mxu0 %v3258
    %4594 = vmatpush1.bf16.msra.mxu0 %v3257
    %4595 = vmatprep.subr.bf16.mxu0 %v3266
    %4596 = vmatpush1.bf16.msra.mxu0 %v3265
    %4597 = vmatprep.subr.bf16.mxu0 %v3274
    %4598 = vmatpush1.bf16.msra.mxu0 %v3273
    %4599 = vmatprep.subr.bf16.mxu0 %v3282
    %4600 = vmatpush1.bf16.msra.mxu0 %v3281
    %4601 = vmatprep.subr.bf16.mxu0 %v3290
    %4602 = vmatpush1.bf16.msra.mxu0 %v3289
    %4603 = vmatprep.subr.bf16.mxu0 %v3298
    %4604 = vmatpush1.bf16.msra.mxu0 %v3297
    %4605 = vmatprep.subr.bf16.mxu0 %v3306
    %4606 = vmatpush1.bf16.msra.mxu0 %v3305
    %4607 = vmatprep.subr.bf16.mxu0 %v3314
    %4608 = vmatpush1.bf16.msra.mxu0 %v3313
    %4609 = vmatprep.subr.bf16.mxu0 %v3322
    %4610 = vmatpush1.bf16.msra.mxu0 %v3321
    %4611 = vmatprep.subr.bf16.mxu0 %v3330
    %4612 = vmatpush1.bf16.msra.mxu0 %v3329
    %4613 = vmatprep.subr.bf16.mxu0 %v3338
    %4614 = vmatpush1.bf16.msra.mxu0 %v3337
    %4615 = vmatprep.subr.bf16.mxu0 %v3346
    %4616 = vmatpush1.bf16.msra.mxu0 %v3345
    %4617 = vmatprep.subr.bf16.mxu0 %v3354
    %4618 = vmatpush1.bf16.msra.mxu0 %v3353
    %4619 = vmatprep.subr.bf16.mxu0 %v3362
    %4620 = vmatpush1.bf16.msra.mxu0 %v3361
    %4621 = vmatprep.mubr.bf16.mxu0 %v1140
    %4622 = vmatmul.mubr.bf16.gmra.mrb[0].mxu0 %v1139
    %v4623 = vpop.f32.mrb[0].mxu0
    %v4624 = vadd.f32 %v1680, %v4623
    %v4625 = vpop.f32.mrb[0].mxu0
    %v4626 = vadd.f32 %v1684, %v4625
    %v4627 = vpop.f32.mrb[0].mxu0
    %v4628 = vpop.f32.mrb[0].mxu0
    %4629 = vdwg.mxu0
    %4630 = vmatprep.subr.bf16.mxu0 %v3370
    %4631 = vmatpush1.bf16.msra.mxu0 %v3369
    %4632 = vmatprep.subr.bf16.mxu0 %v3378
    %4633 = vmatpush1.bf16.msra.mxu0 %v3377
    %4634 = vmatprep.subr.bf16.mxu0 %v3386
    %4635 = vmatpush1.bf16.msra.mxu0 %v3385
    %4636 = vmatprep.subr.bf16.mxu0 %v3394
    %4637 = vmatpush1.bf16.msra.mxu0 %v3393
    %4638 = vmatprep.subr.bf16.mxu0 %v3402
    %4639 = vmatpush1.bf16.msra.mxu0 %v3401
    %4640 = vmatprep.subr.bf16.mxu0 %v3410
    %4641 = vmatpush1.bf16.msra.mxu0 %v3409
    %4642 = vmatprep.subr.bf16.mxu0 %v3418
    %4643 = vmatpush1.bf16.msra.mxu0 %v3417
    %4644 = vmatprep.subr.bf16.mxu0 %v3426
    %4645 = vmatpush1.bf16.msra.mxu0 %v3425
    %4646 = vmatprep.subr.bf16.mxu0 %v3434
    %4647 = vmatpush1.bf16.msra.mxu0 %v3433
    %4648 = vmatprep.subr.bf16.mxu0 %v3442
    %4649 = vmatpush1.bf16.msra.mxu0 %v3441
    %4650 = vmatprep.subr.bf16.mxu0 %v3450
    %4651 = vmatpush1.bf16.msra.mxu0 %v3449
    %4652 = vmatprep.subr.bf16.mxu0 %v3458
    %4653 = vmatpush1.bf16.msra.mxu0 %v3457
    %4654 = vmatprep.subr.bf16.mxu0 %v3466
    %4655 = vmatpush1.bf16.msra.mxu0 %v3465
    %4656 = vmatprep.subr.bf16.mxu0 %v3474
    %4657 = vmatpush1.bf16.msra.mxu0 %v3473
    %4658 = vmatprep.subr.bf16.mxu0 %v3482
    %4659 = vmatpush1.bf16.msra.mxu0 %v3481
    %4660 = vmatprep.subr.bf16.mxu0 %v3490
    %4661 = vmatpush1.bf16.msra.mxu0 %v3489
    %4662 = vmatprep.mubr.bf16.mxu0 %v1142
    %4663 = vmatmul.mubr.bf16.gmra.mrb[0].mxu0 %v1141
    %v4664 = vpop.f32.mrb[0].mxu0
    %v4665 = vadd.f32 %v4624, %v4664
    %v4666 = vpop.f32.mrb[0].mxu0
    %v4667 = vadd.f32 %v4626, %v4666
    %v4668 = vpop.f32.mrb[0].mxu0
    %v4669 = vpop.f32.mrb[0].mxu0
    %4670 = vdwg.mxu0
    %4671 = vmatprep.subr.bf16.mxu0 %v3498
    %4672 = vmatpush1.bf16.msra.mxu0 %v3497
    %4673 = vmatprep.subr.bf16.mxu0 %v3506
    %4674 = vmatpush1.bf16.msra.mxu0 %v3505
    %4675 = vmatprep.subr.bf16.mxu0 %v3514
    %4676 = vmatpush1.bf16.msra.mxu0 %v3513
    %4677 = vmatprep.subr.bf16.mxu0 %v3522
    %4678 = vmatpush1.bf16.msra.mxu0 %v3521
    %4679 = vmatprep.subr.bf16.mxu0 %v3530
    %4680 = vmatpush1.bf16.msra.mxu0 %v3529
    %4681 = vmatprep.subr.bf16.mxu0 %v3538
    %4682 = vmatpush1.bf16.msra.mxu0 %v3537
    %4683 = vmatprep.subr.bf16.mxu0 %v3546
    %4684 = vmatpush1.bf16.msra.mxu0 %v3545
    %4685 = vmatprep.subr.bf16.mxu0 %v3554
    %4686 = vmatpush1.bf16.msra.mxu0 %v3553
    %4687 = vmatprep.subr.bf16.mxu0 %v3562
    %4688 = vmatpush1.bf16.msra.mxu0 %v3561
    %4689 = vmatprep.subr.bf16.mxu0 %v3570
    %4690 = vmatpush1.bf16.msra.mxu0 %v3569
    %4691 = vmatprep.subr.bf16.mxu0 %v3578
    %4692 = vmatpush1.bf16.msra.mxu0 %v3577
    %4693 = vmatprep.subr.bf16.mxu0 %v3586
    %4694 = vmatpush1.bf16.msra.mxu0 %v3585
    %4695 = vmatprep.subr.bf16.mxu0 %v3594
    %4696 = vmatpush1.bf16.msra.mxu0 %v3593
    %4697 = vmatprep.subr.bf16.mxu0 %v3602
    %4698 = vmatpush1.bf16.msra.mxu0 %v3601
    %4699 = vmatprep.subr.bf16.mxu0 %v3610
    %4700 = vmatpush1.bf16.msra.mxu0 %v3609
    %4701 = vmatprep.subr.bf16.mxu0 %v3618
    %4702 = vmatpush1.bf16.msra.mxu0 %v3617
    %4703 = vmatprep.mubr.bf16.mxu0 %v1144
    %4704 = vmatmul.mubr.bf16.gmra.mrb[0].mxu0 %v1143
    %v4705 = vpop.f32.mrb[0].mxu0
    %v4706 = vadd.f32 %v4665, %v4705
    %v4707 = vpop.f32.mrb[0].mxu0
    %v4708 = vadd.f32 %v4667, %v4707
    %v4709 = vpop.f32.mrb[0].mxu0
    %v4710 = vpop.f32.mrb[0].mxu0
    %4711 = vdwg.mxu0
    %4712 = vmatprep.subr.bf16.mxu0 %v3626
    %4713 = vmatpush1.bf16.msra.mxu0 %v3625
    %4714 = vmatprep.subr.bf16.mxu0 %v3634
    %4715 = vmatpush1.bf16.msra.mxu0 %v3633
    %4716 = vmatprep.subr.bf16.mxu0 %v3642
    %4717 = vmatpush1.bf16.msra.mxu0 %v3641
    %4718 = vmatprep.subr.bf16.mxu0 %v3650
    %4719 = vmatpush1.bf16.msra.mxu0 %v3649
    %4720 = vmatprep.subr.bf16.mxu0 %v3658
    %4721 = vmatpush1.bf16.msra.mxu0 %v3657
    %4722 = vmatprep.subr.bf16.mxu0 %v3666
    %4723 = vmatpush1.bf16.msra.mxu0 %v3665
    %4724 = vmatprep.subr.bf16.mxu0 %v3674
    %4725 = vmatpush1.bf16.msra.mxu0 %v3673
    %4726 = vmatprep.subr.bf16.mxu0 %v3682
    %4727 = vmatpush1.bf16.msra.mxu0 %v3681
    %4728 = vmatprep.subr.bf16.mxu0 %v3690
    %4729 = vmatpush1.bf16.msra.mxu0 %v3689
    %4730 = vmatprep.subr.bf16.mxu0 %v3698
    %4731 = vmatpush1.bf16.msra.mxu0 %v3697
    %4732 = vmatprep.subr.bf16.mxu0 %v3706
    %4733 = vmatpush1.bf16.msra.mxu0 %v3705
    %4734 = vmatprep.subr.bf16.mxu0 %v3714
    %4735 = vmatpush1.bf16.msra.mxu0 %v3713
    %4736 = vmatprep.subr.bf16.mxu0 %v3722
    %4737 = vmatpush1.bf16.msra.mxu0 %v3721
    %4738 = vmatprep.subr.bf16.mxu0 %v3730
    %4739 = vmatpush1.bf16.msra.mxu0 %v3729
    %4740 = vmatprep.subr.bf16.mxu0 %v3738
    %4741 = vmatpush1.bf16.msra.mxu0 %v3737
    %4742 = vmatprep.subr.bf16.mxu0 %v3746
    %4743 = vmatpush1.bf16.msra.mxu0 %v3745
    %4744 = vmatprep.mubr.bf16.mxu0 %v1146
    %4745 = vmatmul.mubr.bf16.gmra.mrb[0].mxu0 %v1145
    %v4746 = vpop.f32.mrb[0].mxu0
    %v4747 = vadd.f32 %v4706, %v4746
    %v4748 = vpop.f32.mrb[0].mxu0
    %v4749 = vadd.f32 %v4708, %v4748
    %v4750 = vpop.f32.mrb[0].mxu0
    %v4751 = vpop.f32.mrb[0].mxu0
    %4752 = vdwg.mxu0
    %4753 = vmatprep.subr.bf16.mxu0 %v3244
    %4754 = vmatpush1.bf16.msra.mxu0 %v3243
    %4755 = vmatprep.subr.bf16.mxu0 %v3252
    %4756 = vmatpush1.bf16.msra.mxu0 %v3251
    %4757 = vmatprep.subr.bf16.mxu0 %v3260
    %4758 = vmatpush1.bf16.msra.mxu0 %v3259
    %4759 = vmatprep.subr.bf16.mxu0 %v3268
    %4760 = vmatpush1.bf16.msra.mxu0 %v3267
    %4761 = vmatprep.subr.bf16.mxu0 %v3276
    %4762 = vmatpush1.bf16.msra.mxu0 %v3275
    %4763 = vmatprep.subr.bf16.mxu0 %v3284
    %4764 = vmatpush1.bf16.msra.mxu0 %v3283
    %4765 = vmatprep.subr.bf16.mxu0 %v3292
    %4766 = vmatpush1.bf16.msra.mxu0 %v3291
    %4767 = vmatprep.subr.bf16.mxu0 %v3300
    %4768 = vmatpush1.bf16.msra.mxu0 %v3299
    %4769 = vmatprep.subr.bf16.mxu0 %v3308
    %4770 = vmatpush1.bf16.msra.mxu0 %v3307
    %4771 = vmatprep.subr.bf16.mxu0 %v3316
    %4772 = vmatpush1.bf16.msra.mxu0 %v3315
    %4773 = vmatprep.subr.bf16.mxu0 %v3324
    %4774 = vmatpush1.bf16.msra.mxu0 %v3323
    %4775 = vmatprep.subr.bf16.mxu0 %v3332
    %4776 = vmatpush1.bf16.msra.mxu0 %v3331
    %4777 = vmatprep.subr.bf16.mxu0 %v3340
    %4778 = vmatpush1.bf16.msra.mxu0 %v3339
    %4779 = vmatprep.subr.bf16.mxu0 %v3348
    %4780 = vmatpush1.bf16.msra.mxu0 %v3347
    %4781 = vmatprep.subr.bf16.mxu0 %v3356
    %4782 = vmatpush1.bf16.msra.mxu0 %v3355
    %4783 = vmatprep.subr.bf16.mxu0 %v3364
    %4784 = vmatpush1.bf16.msra.mxu0 %v3363
    %4785 = vmatprep.mubr.bf16.mxu0 %v1140
    %4786 = vmatmul.mubr.bf16.gmra.mrb[0].mxu0 %v1139
    %v4787 = vpop.f32.mrb[0].mxu0
    %v4788 = vadd.f32 %v1688, %v4787
    %v4789 = vpop.f32.mrb[0].mxu0
    %v4790 = vadd.f32 %v1692, %v4789
    %v4791 = vpop.f32.mrb[0].mxu0
    %v4792 = vpop.f32.mrb[0].mxu0
    %4793 = vdwg.mxu0
    %4794 = vmatprep.subr.bf16.mxu0 %v3372
    %4795 = vmatpush1.bf16.msra.mxu0 %v3371
    %4796 = vmatprep.subr.bf16.mxu0 %v3380
    %4797 = vmatpush1.bf16.msra.mxu0 %v3379
    %4798 = vmatprep.subr.bf16.mxu0 %v3388
    %4799 = vmatpush1.bf16.msra.mxu0 %v3387
    %4800 = vmatprep.subr.bf16.mxu0 %v3396
    %4801 = vmatpush1.bf16.msra.mxu0 %v3395
    %4802 = vmatprep.subr.bf16.mxu0 %v3404
    %4803 = vmatpush1.bf16.msra.mxu0 %v3403
    %4804 = vmatprep.subr.bf16.mxu0 %v3412
    %4805 = vmatpush1.bf16.msra.mxu0 %v3411
    %4806 = vmatprep.subr.bf16.mxu0 %v3420
    %4807 = vmatpush1.bf16.msra.mxu0 %v3419
    %4808 = vmatprep.subr.bf16.mxu0 %v3428
    %4809 = vmatpush1.bf16.msra.mxu0 %v3427
    %4810 = vmatprep.subr.bf16.mxu0 %v3436
    %4811 = vmatpush1.bf16.msra.mxu0 %v3435
    %4812 = vmatprep.subr.bf16.mxu0 %v3444
    %4813 = vmatpush1.bf16.msra.mxu0 %v3443
    %4814 = vmatprep.subr.bf16.mxu0 %v3452
    %4815 = vmatpush1.bf16.msra.mxu0 %v3451
    %4816 = vmatprep.subr.bf16.mxu0 %v3460
    %4817 = vmatpush1.bf16.msra.mxu0 %v3459
    %4818 = vmatprep.subr.bf16.mxu0 %v3468
    %4819 = vmatpush1.bf16.msra.mxu0 %v3467
    %4820 = vmatprep.subr.bf16.mxu0 %v3476
    %4821 = vmatpush1.bf16.msra.mxu0 %v3475
    %4822 = vmatprep.subr.bf16.mxu0 %v3484
    %4823 = vmatpush1.bf16.msra.mxu0 %v3483
    %4824 = vmatprep.subr.bf16.mxu0 %v3492
    %4825 = vmatpush1.bf16.msra.mxu0 %v3491
    %4826 = vmatprep.mubr.bf16.mxu0 %v1142
    %4827 = vmatmul.mubr.bf16.gmra.mrb[0].mxu0 %v1141
    %v4828 = vpop.f32.mrb[0].mxu0
    %v4829 = vadd.f32 %v4788, %v4828
    %v4830 = vpop.f32.mrb[0].mxu0
    %v4831 = vadd.f32 %v4790, %v4830
    %v4832 = vpop.f32.mrb[0].mxu0
    %v4833 = vpop.f32.mrb[0].mxu0
    %4834 = vdwg.mxu0
    %4835 = vmatprep.subr.bf16.mxu0 %v3500
    %4836 = vmatpush1.bf16.msra.mxu0 %v3499
    %4837 = vmatprep.subr.bf16.mxu0 %v3508
    %4838 = vmatpush1.bf16.msra.mxu0 %v3507
    %4839 = vmatprep.subr.bf16.mxu0 %v3516
    %4840 = vmatpush1.bf16.msra.mxu0 %v3515
    %4841 = vmatprep.subr.bf16.mxu0 %v3524
    %4842 = vmatpush1.bf16.msra.mxu0 %v3523
    %4843 = vmatprep.subr.bf16.mxu0 %v3532
    %4844 = vmatpush1.bf16.msra.mxu0 %v3531
    %4845 = vmatprep.subr.bf16.mxu0 %v3540
    %4846 = vmatpush1.bf16.msra.mxu0 %v3539
    %4847 = vmatprep.subr.bf16.mxu0 %v3548
    %4848 = vmatpush1.bf16.msra.mxu0 %v3547
    %4849 = vmatprep.subr.bf16.mxu0 %v3556
    %4850 = vmatpush1.bf16.msra.mxu0 %v3555
    %4851 = vmatprep.subr.bf16.mxu0 %v3564
    %4852 = vmatpush1.bf16.msra.mxu0 %v3563
    %4853 = vmatprep.subr.bf16.mxu0 %v3572
    %4854 = vmatpush1.bf16.msra.mxu0 %v3571
    %4855 = vmatprep.subr.bf16.mxu0 %v3580
    %4856 = vmatpush1.bf16.msra.mxu0 %v3579
    %4857 = vmatprep.subr.bf16.mxu0 %v3588
    %4858 = vmatpush1.bf16.msra.mxu0 %v3587
    %4859 = vmatprep.subr.bf16.mxu0 %v3596
    %4860 = vmatpush1.bf16.msra.mxu0 %v3595
    %4861 = vmatprep.subr.bf16.mxu0 %v3604
    %4862 = vmatpush1.bf16.msra.mxu0 %v3603
    %4863 = vmatprep.subr.bf16.mxu0 %v3612
    %4864 = vmatpush1.bf16.msra.mxu0 %v3611
    %4865 = vmatprep.subr.bf16.mxu0 %v3620
    %4866 = vmatpush1.bf16.msra.mxu0 %v3619
    %4867 = vmatprep.mubr.bf16.mxu0 %v1144
    %4868 = vmatmul.mubr.bf16.gmra.mrb[0].mxu0 %v1143
    %v4869 = vpop.f32.mrb[0].mxu0
    %v4870 = vadd.f32 %v4829, %v4869
    %v4871 = vpop.f32.mrb[0].mxu0
    %v4872 = vadd.f32 %v4831, %v4871
    %v4873 = vpop.f32.mrb[0].mxu0
    %v4874 = vpop.f32.mrb[0].mxu0
    %4875 = vdwg.mxu0
    %4876 = vmatprep.subr.bf16.mxu0 %v3628
    %4877 = vmatpush1.bf16.msra.mxu0 %v3627
    %4878 = vmatprep.subr.bf16.mxu0 %v3636
    %4879 = vmatpush1.bf16.msra.mxu0 %v3635
    %4880 = vmatprep.subr.bf16.mxu0 %v3644
    %4881 = vmatpush1.bf16.msra.mxu0 %v3643
    %4882 = vmatprep.subr.bf16.mxu0 %v3652
    %4883 = vmatpush1.bf16.msra.mxu0 %v3651
    %4884 = vmatprep.subr.bf16.mxu0 %v3660
    %4885 = vmatpush1.bf16.msra.mxu0 %v3659
    %4886 = vmatprep.subr.bf16.mxu0 %v3668
    %4887 = vmatpush1.bf16.msra.mxu0 %v3667
    %4888 = vmatprep.subr.bf16.mxu0 %v3676
    %4889 = vmatpush1.bf16.msra.mxu0 %v3675
    %4890 = vmatprep.subr.bf16.mxu0 %v3684
    %4891 = vmatpush1.bf16.msra.mxu0 %v3683
    %4892 = vmatprep.subr.bf16.mxu0 %v3692
    %4893 = vmatpush1.bf16.msra.mxu0 %v3691
    %4894 = vmatprep.subr.bf16.mxu0 %v3700
    %4895 = vmatpush1.bf16.msra.mxu0 %v3699
    %4896 = vmatprep.subr.bf16.mxu0 %v3708
    %4897 = vmatpush1.bf16.msra.mxu0 %v3707
    %4898 = vmatprep.subr.bf16.mxu0 %v3716
    %4899 = vmatpush1.bf16.msra.mxu0 %v3715
    %4900 = vmatprep.subr.bf16.mxu0 %v3724
    %4901 = vmatpush1.bf16.msra.mxu0 %v3723
    %4902 = vmatprep.subr.bf16.mxu0 %v3732
    %4903 = vmatpush1.bf16.msra.mxu0 %v3731
    %4904 = vmatprep.subr.bf16.mxu0 %v3740
    %4905 = vmatpush1.bf16.msra.mxu0 %v3739
    %4906 = vmatprep.subr.bf16.mxu0 %v3748
    %4907 = vmatpush1.bf16.msra.mxu0 %v3747
    %4908 = vmatprep.mubr.bf16.mxu0 %v1146
    %4909 = vmatmul.mubr.bf16.gmra.mrb[0].mxu0 %v1145
    %v4910 = vpop.f32.mrb[0].mxu0
    %v4911 = vadd.f32 %v4870, %v4910
    %v4912 = vpop.f32.mrb[0].mxu0
    %v4913 = vadd.f32 %v4872, %v4912
    %v4914 = vpop.f32.mrb[0].mxu0
    %v4915 = vpop.f32.mrb[0].mxu0
    %4916 = vdwg.mxu0
    %v4917 = vmax.f32 %v4419, 0.0
    %v4918 = vmax.f32 %v4421, 0.0
    %v4919 = vmax.f32 %v4583, 0.0
    %v4920 = vmax.f32 %v4585, 0.0
    %v4921 = vmax.f32 %v4747, 0.0
    %v4922 = vmax.f32 %v4749, 0.0
    %v4923 = vmax.f32 %v4911, 0.0
    %v4924 = vmax.f32 %v4913, 0.0
    %v4925 = vpack.c.bf16 %v4917, %v4917
    %v4926 = vpack.c.bf16 %v4918, %v4918
    %v4927 = vpack.c.bf16 %v4919, %v4919
    %v4928 = vpack.c.bf16 %v4920, %v4920
    %v4929 = vpack.c.bf16 %v4921, %v4921
    %v4930 = vpack.c.bf16 %v4922, %v4922
    %v4931 = vpack.c.bf16 %v4923, %v4923
    %v4932 = vpack.c.bf16 %v4924, %v4924
    %v4933 = vld [vmem:[#allocation11] sm:$0xff]
    %v4934 = vld [vmem:[#allocation11 + $0x8] sm:$0xff]
    %v4935 = vld [vmem:[#allocation11 + $0x10] sm:$0xff]
    %v4936 = vld [vmem:[#allocation11 + $0x18] sm:$0xff]
    %v4937 = vld [vmem:[#allocation11 + $0x20] sm:$0xff]
    %v4938 = vld [vmem:[#allocation11 + $0x28] sm:$0xff]
    %v4939 = vld [vmem:[#allocation11 + $0x30] sm:$0xff]
    %v4940 = vld [vmem:[#allocation11 + $0x38] sm:$0xff]
    %v4941 = vld [vmem:[#allocation11 + $0x40] sm:$0xff]
    %v4942 = vld [vmem:[#allocation11 + $0x48] sm:$0xff]
    %v4943 = vld [vmem:[#allocation11 + $0x50] sm:$0xff]
    %v4944 = vld [vmem:[#allocation11 + $0x58] sm:$0xff]
    %v4945 = vld [vmem:[#allocation11 + $0x60] sm:$0xff]
    %v4946 = vld [vmem:[#allocation11 + $0x68] sm:$0xff]
    %v4947 = vld [vmem:[#allocation11 + $0x70] sm:$0xff]
    %v4948 = vld [vmem:[#allocation11 + $0x78] sm:$0xff]
    %v4949 = vld [vmem:[#allocation11 + $0x80] sm:$0xff]
    %v4950 = vld [vmem:[#allocation11 + $0x88] sm:$0xff]
    %v4951 = vld [vmem:[#allocation11 + $0x90] sm:$0xff]
    %v4952 = vld [vmem:[#allocation11 + $0x98] sm:$0xff]
    %v4953 = vld [vmem:[#allocation11 + $0xa0] sm:$0xff]
    %v4954 = vld [vmem:[#allocation11 + $0xa8] sm:$0xff]
    %v4955 = vld [vmem:[#allocation11 + $0xb0] sm:$0xff]
    %v4956 = vld [vmem:[#allocation11 + $0xb8] sm:$0xff]
    %v4957 = vld [vmem:[#allocation11 + $0xc0] sm:$0xff]
    %v4958 = vld [vmem:[#allocation11 + $0xc8] sm:$0xff]
    %v4959 = vld [vmem:[#allocation11 + $0xd0] sm:$0xff]
    %v4960 = vld [vmem:[#allocation11 + $0xd8] sm:$0xff]
    %v4961 = vld [vmem:[#allocation11 + $0xe0] sm:$0xff]
    %v4962 = vld [vmem:[#allocation11 + $0xe8] sm:$0xff]
    %v4963 = vld [vmem:[#allocation11 + $0xf0] sm:$0xff]
    %v4964 = vld [vmem:[#allocation11 + $0xf8] sm:$0xff]
    %v4965 = vld [vmem:[#allocation11 + $0x100] sm:$0xff]
    %v4966 = vld [vmem:[#allocation11 + $0x108] sm:$0xff]
    %v4967 = vld [vmem:[#allocation11 + $0x110] sm:$0xff]
    %v4968 = vld [vmem:[#allocation11 + $0x118] sm:$0xff]
    %v4969 = vld [vmem:[#allocation11 + $0x120] sm:$0xff]
    %v4970 = vld [vmem:[#allocation11 + $0x128] sm:$0xff]
    %v4971 = vld [vmem:[#allocation11 + $0x130] sm:$0xff]
    %v4972 = vld [vmem:[#allocation11 + $0x138] sm:$0xff]
    %v4973 = vld [vmem:[#allocation11 + $0x140] sm:$0xff]
    %v4974 = vld [vmem:[#allocation11 + $0x148] sm:$0xff]
    %v4975 = vld [vmem:[#allocation11 + $0x150] sm:$0xff]
    %v4976 = vld [vmem:[#allocation11 + $0x158] sm:$0xff]
    %v4977 = vld [vmem:[#allocation11 + $0x160] sm:$0xff]
    %v4978 = vld [vmem:[#allocation11 + $0x168] sm:$0xff]
    %v4979 = vld [vmem:[#allocation11 + $0x170] sm:$0xff]
    %v4980 = vld [vmem:[#allocation11 + $0x178] sm:$0xff]
    %v4981 = vld [vmem:[#allocation11 + $0x180] sm:$0xff]
    %v4982 = vld [vmem:[#allocation11 + $0x188] sm:$0xff]
    %v4983 = vld [vmem:[#allocation11 + $0x190] sm:$0xff]
    %v4984 = vld [vmem:[#allocation11 + $0x198] sm:$0xff]
    %v4985 = vld [vmem:[#allocation11 + $0x1a0] sm:$0xff]
    %v4986 = vld [vmem:[#allocation11 + $0x1a8] sm:$0xff]
    %v4987 = vld [vmem:[#allocation11 + $0x1b0] sm:$0xff]
    %v4988 = vld [vmem:[#allocation11 + $0x1b8] sm:$0xff]
    %v4989 = vld [vmem:[#allocation11 + $0x1c0] sm:$0xff]
    %v4990 = vld [vmem:[#allocation11 + $0x1c8] sm:$0xff]
    %v4991 = vld [vmem:[#allocation11 + $0x1d0] sm:$0xff]
    %v4992 = vld [vmem:[#allocation11 + $0x1d8] sm:$0xff]
    %v4993 = vld [vmem:[#allocation11 + $0x1e0] sm:$0xff]
    %v4994 = vld [vmem:[#allocation11 + $0x1e8] sm:$0xff]
    %v4995 = vld [vmem:[#allocation11 + $0x1f0] sm:$0xff]
    %v4996 = vld [vmem:[#allocation11 + $0x1f8] sm:$0xff]
    %v4997 = vld [vmem:[#allocation11 + $0x200] sm:$0xff]
    %v4998 = vld [vmem:[#allocation11 + $0x208] sm:$0xff]
    %v4999 = vld [vmem:[#allocation11 + $0x210] sm:$0xff]
    %v5000 = vld [vmem:[#allocation11 + $0x218] sm:$0xff]
    %v5001 = vld [vmem:[#allocation11 + $0x220] sm:$0xff]
    %v5002 = vld [vmem:[#allocation11 + $0x228] sm:$0xff]
    %v5003 = vld [vmem:[#allocation11 + $0x230] sm:$0xff]
    %v5004 = vld [vmem:[#allocation11 + $0x238] sm:$0xff]
    %v5005 = vld [vmem:[#allocation11 + $0x240] sm:$0xff]
    %v5006 = vld [vmem:[#allocation11 + $0x248] sm:$0xff]
    %v5007 = vld [vmem:[#allocation11 + $0x250] sm:$0xff]
    %v5008 = vld [vmem:[#allocation11 + $0x258] sm:$0xff]
    %v5009 = vld [vmem:[#allocation11 + $0x260] sm:$0xff]
    %v5010 = vld [vmem:[#allocation11 + $0x268] sm:$0xff]
    %v5011 = vld [vmem:[#allocation11 + $0x270] sm:$0xff]
    %v5012 = vld [vmem:[#allocation11 + $0x278] sm:$0xff]
    %v5013 = vld [vmem:[#allocation11 + $0x280] sm:$0xff]
    %v5014 = vld [vmem:[#allocation11 + $0x288] sm:$0xff]
    %v5015 = vld [vmem:[#allocation11 + $0x290] sm:$0xff]
    %v5016 = vld [vmem:[#allocation11 + $0x298] sm:$0xff]
    %v5017 = vld [vmem:[#allocation11 + $0x2a0] sm:$0xff]
    %v5018 = vld [vmem:[#allocation11 + $0x2a8] sm:$0xff]
    %v5019 = vld [vmem:[#allocation11 + $0x2b0] sm:$0xff]
    %v5020 = vld [vmem:[#allocation11 + $0x2b8] sm:$0xff]
    %v5021 = vld [vmem:[#allocation11 + $0x2c0] sm:$0xff]
    %v5022 = vld [vmem:[#allocation11 + $0x2c8] sm:$0xff]
    %v5023 = vld [vmem:[#allocation11 + $0x2d0] sm:$0xff]
    %v5024 = vld [vmem:[#allocation11 + $0x2d8] sm:$0xff]
    %v5025 = vld [vmem:[#allocation11 + $0x2e0] sm:$0xff]
    %v5026 = vld [vmem:[#allocation11 + $0x2e8] sm:$0xff]
    %v5027 = vld [vmem:[#allocation11 + $0x2f0] sm:$0xff]
    %v5028 = vld [vmem:[#allocation11 + $0x2f8] sm:$0xff]
    %v5029 = vld [vmem:[#allocation11 + $0x300] sm:$0xff]
    %v5030 = vld [vmem:[#allocation11 + $0x308] sm:$0xff]
    %v5031 = vld [vmem:[#allocation11 + $0x310] sm:$0xff]
    %v5032 = vld [vmem:[#allocation11 + $0x318] sm:$0xff]
    %v5033 = vld [vmem:[#allocation11 + $0x320] sm:$0xff]
    %v5034 = vld [vmem:[#allocation11 + $0x328] sm:$0xff]
    %v5035 = vld [vmem:[#allocation11 + $0x330] sm:$0xff]
    %v5036 = vld [vmem:[#allocation11 + $0x338] sm:$0xff]
    %v5037 = vld [vmem:[#allocation11 + $0x340] sm:$0xff]
    %v5038 = vld [vmem:[#allocation11 + $0x348] sm:$0xff]
    %v5039 = vld [vmem:[#allocation11 + $0x350] sm:$0xff]
    %v5040 = vld [vmem:[#allocation11 + $0x358] sm:$0xff]
    %v5041 = vld [vmem:[#allocation11 + $0x360] sm:$0xff]
    %v5042 = vld [vmem:[#allocation11 + $0x368] sm:$0xff]
    %v5043 = vld [vmem:[#allocation11 + $0x370] sm:$0xff]
    %v5044 = vld [vmem:[#allocation11 + $0x378] sm:$0xff]
    %v5045 = vld [vmem:[#allocation11 + $0x380] sm:$0xff]
    %v5046 = vld [vmem:[#allocation11 + $0x388] sm:$0xff]
    %v5047 = vld [vmem:[#allocation11 + $0x390] sm:$0xff]
    %v5048 = vld [vmem:[#allocation11 + $0x398] sm:$0xff]
    %v5049 = vld [vmem:[#allocation11 + $0x3a0] sm:$0xff]
    %v5050 = vld [vmem:[#allocation11 + $0x3a8] sm:$0xff]
    %v5051 = vld [vmem:[#allocation11 + $0x3b0] sm:$0xff]
    %v5052 = vld [vmem:[#allocation11 + $0x3b8] sm:$0xff]
    %v5053 = vld [vmem:[#allocation11 + $0x3c0] sm:$0xff]
    %v5054 = vld [vmem:[#allocation11 + $0x3c8] sm:$0xff]
    %v5055 = vld [vmem:[#allocation11 + $0x3d0] sm:$0xff]
    %v5056 = vld [vmem:[#allocation11 + $0x3d8] sm:$0xff]
    %v5057 = vld [vmem:[#allocation11 + $0x3e0] sm:$0xff]
    %v5058 = vld [vmem:[#allocation11 + $0x3e8] sm:$0xff]
    %v5059 = vld [vmem:[#allocation11 + $0x3f0] sm:$0xff]
    %v5060 = vld [vmem:[#allocation11 + $0x3f8] sm:$0xff]
    %v5061 = vld [vmem:[#allocation13] sm:$0x3]
    %v5063 = vlaneseq
    %v5064 = vshrl.u32 %v5063, 7
    %v5065 = vsub.s32 0, %v5064
    %v5066 = vrot.slane %v5061, %v5065
    %v5067 = vlaneseq
    %v5068 = vshrl.u32 %v5067, 7
    %v5069 = vsub.s32 1, %v5068
    %v5070 = vrot.slane %v5061, %v5069
    %v5201 = vunpack.c.l.b16 %v4933
    %v5202 = vunpack.c.h.b16 %v4933
    %v5203 = vunpack.c.l.b16 %v4934
    %v5204 = vunpack.c.h.b16 %v4934
    %v5205 = vunpack.c.l.b16 %v4935
    %v5206 = vunpack.c.h.b16 %v4935
    %v5207 = vunpack.c.l.b16 %v4936
    %v5208 = vunpack.c.h.b16 %v4936
    %v5209 = vunpack.c.l.b16 %v4937
    %v5210 = vunpack.c.h.b16 %v4937
    %v5211 = vunpack.c.l.b16 %v4938
    %v5212 = vunpack.c.h.b16 %v4938
    %v5213 = vunpack.c.l.b16 %v4939
    %v5214 = vunpack.c.h.b16 %v4939
    %v5215 = vunpack.c.l.b16 %v4940
    %v5216 = vunpack.c.h.b16 %v4940
    %v5217 = vunpack.c.l.b16 %v4941
    %v5218 = vunpack.c.h.b16 %v4941
    %v5219 = vunpack.c.l.b16 %v4942
    %v5220 = vunpack.c.h.b16 %v4942
    %v5221 = vunpack.c.l.b16 %v4943
    %v5222 = vunpack.c.h.b16 %v4943
    %v5223 = vunpack.c.l.b16 %v4944
    %v5224 = vunpack.c.h.b16 %v4944
    %v5225 = vunpack.c.l.b16 %v4945
    %v5226 = vunpack.c.h.b16 %v4945
    %v5227 = vunpack.c.l.b16 %v4946
    %v5228 = vunpack.c.h.b16 %v4946
    %v5229 = vunpack.c.l.b16 %v4947
    %v5230 = vunpack.c.h.b16 %v4947
    %v5231 = vunpack.c.l.b16 %v4948
    %v5232 = vunpack.c.h.b16 %v4948
    %v5233 = vunpack.c.l.b16 %v4949
    %v5234 = vunpack.c.h.b16 %v4949
    %v5235 = vunpack.c.l.b16 %v4950
    %v5236 = vunpack.c.h.b16 %v4950
    %v5237 = vunpack.c.l.b16 %v4951
    %v5238 = vunpack.c.h.b16 %v4951
    %v5239 = vunpack.c.l.b16 %v4952
    %v5240 = vunpack.c.h.b16 %v4952
    %v5241 = vunpack.c.l.b16 %v4953
    %v5242 = vunpack.c.h.b16 %v4953
    %v5243 = vunpack.c.l.b16 %v4954
    %v5244 = vunpack.c.h.b16 %v4954
    %v5245 = vunpack.c.l.b16 %v4955
    %v5246 = vunpack.c.h.b16 %v4955
    %v5247 = vunpack.c.l.b16 %v4956
    %v5248 = vunpack.c.h.b16 %v4956
    %v5249 = vunpack.c.l.b16 %v4957
    %v5250 = vunpack.c.h.b16 %v4957
    %v5251 = vunpack.c.l.b16 %v4958
    %v5252 = vunpack.c.h.b16 %v4958
    %v5253 = vunpack.c.l.b16 %v4959
    %v5254 = vunpack.c.h.b16 %v4959
    %v5255 = vunpack.c.l.b16 %v4960
    %v5256 = vunpack.c.h.b16 %v4960
    %v5257 = vunpack.c.l.b16 %v4961
    %v5258 = vunpack.c.h.b16 %v4961
    %v5259 = vunpack.c.l.b16 %v4962
    %v5260 = vunpack.c.h.b16 %v4962
    %v5261 = vunpack.c.l.b16 %v4963
    %v5262 = vunpack.c.h.b16 %v4963
    %v5263 = vunpack.c.l.b16 %v4964
    %v5264 = vunpack.c.h.b16 %v4964
    %v5265 = vunpack.c.l.b16 %v4965
    %v5266 = vunpack.c.h.b16 %v4965
    %v5267 = vunpack.c.l.b16 %v4966
    %v5268 = vunpack.c.h.b16 %v4966
    %v5269 = vunpack.c.l.b16 %v4967
    %v5270 = vunpack.c.h.b16 %v4967
    %v5271 = vunpack.c.l.b16 %v4968
    %v5272 = vunpack.c.h.b16 %v4968
    %v5273 = vunpack.c.l.b16 %v4969
    %v5274 = vunpack.c.h.b16 %v4969
    %v5275 = vunpack.c.l.b16 %v4970
    %v5276 = vunpack.c.h.b16 %v4970
    %v5277 = vunpack.c.l.b16 %v4971
    %v5278 = vunpack.c.h.b16 %v4971
    %v5279 = vunpack.c.l.b16 %v4972
    %v5280 = vunpack.c.h.b16 %v4972
    %v5281 = vunpack.c.l.b16 %v4973
    %v5282 = vunpack.c.h.b16 %v4973
    %v5283 = vunpack.c.l.b16 %v4974
    %v5284 = vunpack.c.h.b16 %v4974
    %v5285 = vunpack.c.l.b16 %v4975
    %v5286 = vunpack.c.h.b16 %v4975
    %v5287 = vunpack.c.l.b16 %v4976
    %v5288 = vunpack.c.h.b16 %v4976
    %v5289 = vunpack.c.l.b16 %v4977
    %v5290 = vunpack.c.h.b16 %v4977
    %v5291 = vunpack.c.l.b16 %v4978
    %v5292 = vunpack.c.h.b16 %v4978
    %v5293 = vunpack.c.l.b16 %v4979
    %v5294 = vunpack.c.h.b16 %v4979
    %v5295 = vunpack.c.l.b16 %v4980
    %v5296 = vunpack.c.h.b16 %v4980
    %v5297 = vunpack.c.l.b16 %v4981
    %v5298 = vunpack.c.h.b16 %v4981
    %v5299 = vunpack.c.l.b16 %v4982
    %v5300 = vunpack.c.h.b16 %v4982
    %v5301 = vunpack.c.l.b16 %v4983
    %v5302 = vunpack.c.h.b16 %v4983
    %v5303 = vunpack.c.l.b16 %v4984
    %v5304 = vunpack.c.h.b16 %v4984
    %v5305 = vunpack.c.l.b16 %v4985
    %v5306 = vunpack.c.h.b16 %v4985
    %v5307 = vunpack.c.l.b16 %v4986
    %v5308 = vunpack.c.h.b16 %v4986
    %v5309 = vunpack.c.l.b16 %v4987
    %v5310 = vunpack.c.h.b16 %v4987
    %v5311 = vunpack.c.l.b16 %v4988
    %v5312 = vunpack.c.h.b16 %v4988
    %v5313 = vunpack.c.l.b16 %v4989
    %v5314 = vunpack.c.h.b16 %v4989
    %v5315 = vunpack.c.l.b16 %v4990
    %v5316 = vunpack.c.h.b16 %v4990
    %v5317 = vunpack.c.l.b16 %v4991
    %v5318 = vunpack.c.h.b16 %v4991
    %v5319 = vunpack.c.l.b16 %v4992
    %v5320 = vunpack.c.h.b16 %v4992
    %v5321 = vunpack.c.l.b16 %v4993
    %v5322 = vunpack.c.h.b16 %v4993
    %v5323 = vunpack.c.l.b16 %v4994
    %v5324 = vunpack.c.h.b16 %v4994
    %v5325 = vunpack.c.l.b16 %v4995
    %v5326 = vunpack.c.h.b16 %v4995
    %v5327 = vunpack.c.l.b16 %v4996
    %v5328 = vunpack.c.h.b16 %v4996
    %v5329 = vunpack.c.l.b16 %v4997
    %v5330 = vunpack.c.h.b16 %v4997
    %v5331 = vunpack.c.l.b16 %v4998
    %v5332 = vunpack.c.h.b16 %v4998
    %v5333 = vunpack.c.l.b16 %v4999
    %v5334 = vunpack.c.h.b16 %v4999
    %v5335 = vunpack.c.l.b16 %v5000
    %v5336 = vunpack.c.h.b16 %v5000
    %v5337 = vunpack.c.l.b16 %v5001
    %v5338 = vunpack.c.h.b16 %v5001
    %v5339 = vunpack.c.l.b16 %v5002
    %v5340 = vunpack.c.h.b16 %v5002
    %v5341 = vunpack.c.l.b16 %v5003
    %v5342 = vunpack.c.h.b16 %v5003
    %v5343 = vunpack.c.l.b16 %v5004
    %v5344 = vunpack.c.h.b16 %v5004
    %v5345 = vunpack.c.l.b16 %v5005
    %v5346 = vunpack.c.h.b16 %v5005
    %v5347 = vunpack.c.l.b16 %v5006
    %v5348 = vunpack.c.h.b16 %v5006
    %v5349 = vunpack.c.l.b16 %v5007
    %v5350 = vunpack.c.h.b16 %v5007
    %v5351 = vunpack.c.l.b16 %v5008
    %v5352 = vunpack.c.h.b16 %v5008
    %v5353 = vunpack.c.l.b16 %v5009
    %v5354 = vunpack.c.h.b16 %v5009
    %v5355 = vunpack.c.l.b16 %v5010
    %v5356 = vunpack.c.h.b16 %v5010
    %v5357 = vunpack.c.l.b16 %v5011
    %v5358 = vunpack.c.h.b16 %v5011
    %v5359 = vunpack.c.l.b16 %v5012
    %v5360 = vunpack.c.h.b16 %v5012
    %v5361 = vunpack.c.l.b16 %v5013
    %v5362 = vunpack.c.h.b16 %v5013
    %v5363 = vunpack.c.l.b16 %v5014
    %v5364 = vunpack.c.h.b16 %v5014
    %v5365 = vunpack.c.l.b16 %v5015
    %v5366 = vunpack.c.h.b16 %v5015
    %v5367 = vunpack.c.l.b16 %v5016
    %v5368 = vunpack.c.h.b16 %v5016
    %v5369 = vunpack.c.l.b16 %v5017
    %v5370 = vunpack.c.h.b16 %v5017
    %v5371 = vunpack.c.l.b16 %v5018
    %v5372 = vunpack.c.h.b16 %v5018
    %v5373 = vunpack.c.l.b16 %v5019
    %v5374 = vunpack.c.h.b16 %v5019
    %v5375 = vunpack.c.l.b16 %v5020
    %v5376 = vunpack.c.h.b16 %v5020
    %v5377 = vunpack.c.l.b16 %v5021
    %v5378 = vunpack.c.h.b16 %v5021
    %v5379 = vunpack.c.l.b16 %v5022
    %v5380 = vunpack.c.h.b16 %v5022
    %v5381 = vunpack.c.l.b16 %v5023
    %v5382 = vunpack.c.h.b16 %v5023
    %v5383 = vunpack.c.l.b16 %v5024
    %v5384 = vunpack.c.h.b16 %v5024
    %v5385 = vunpack.c.l.b16 %v5025
    %v5386 = vunpack.c.h.b16 %v5025
    %v5387 = vunpack.c.l.b16 %v5026
    %v5388 = vunpack.c.h.b16 %v5026
    %v5389 = vunpack.c.l.b16 %v5027
    %v5390 = vunpack.c.h.b16 %v5027
    %v5391 = vunpack.c.l.b16 %v5028
    %v5392 = vunpack.c.h.b16 %v5028
    %v5393 = vunpack.c.l.b16 %v5029
    %v5394 = vunpack.c.h.b16 %v5029
    %v5395 = vunpack.c.l.b16 %v5030
    %v5396 = vunpack.c.h.b16 %v5030
    %v5397 = vunpack.c.l.b16 %v5031
    %v5398 = vunpack.c.h.b16 %v5031
    %v5399 = vunpack.c.l.b16 %v5032
    %v5400 = vunpack.c.h.b16 %v5032
    %v5401 = vunpack.c.l.b16 %v5033
    %v5402 = vunpack.c.h.b16 %v5033
    %v5403 = vunpack.c.l.b16 %v5034
    %v5404 = vunpack.c.h.b16 %v5034
    %v5405 = vunpack.c.l.b16 %v5035
    %v5406 = vunpack.c.h.b16 %v5035
    %v5407 = vunpack.c.l.b16 %v5036
    %v5408 = vunpack.c.h.b16 %v5036
    %v5409 = vunpack.c.l.b16 %v5037
    %v5410 = vunpack.c.h.b16 %v5037
    %v5411 = vunpack.c.l.b16 %v5038
    %v5412 = vunpack.c.h.b16 %v5038
    %v5413 = vunpack.c.l.b16 %v5039
    %v5414 = vunpack.c.h.b16 %v5039
    %v5415 = vunpack.c.l.b16 %v5040
    %v5416 = vunpack.c.h.b16 %v5040
    %v5417 = vunpack.c.l.b16 %v5041
    %v5418 = vunpack.c.h.b16 %v5041
    %v5419 = vunpack.c.l.b16 %v5042
    %v5420 = vunpack.c.h.b16 %v5042
    %v5421 = vunpack.c.l.b16 %v5043
    %v5422 = vunpack.c.h.b16 %v5043
    %v5423 = vunpack.c.l.b16 %v5044
    %v5424 = vunpack.c.h.b16 %v5044
    %v5425 = vunpack.c.l.b16 %v5045
    %v5426 = vunpack.c.h.b16 %v5045
    %v5427 = vunpack.c.l.b16 %v5046
    %v5428 = vunpack.c.h.b16 %v5046
    %v5429 = vunpack.c.l.b16 %v5047
    %v5430 = vunpack.c.h.b16 %v5047
    %v5431 = vunpack.c.l.b16 %v5048
    %v5432 = vunpack.c.h.b16 %v5048
    %v5433 = vunpack.c.l.b16 %v5049
    %v5434 = vunpack.c.h.b16 %v5049
    %v5435 = vunpack.c.l.b16 %v5050
    %v5436 = vunpack.c.h.b16 %v5050
    %v5437 = vunpack.c.l.b16 %v5051
    %v5438 = vunpack.c.h.b16 %v5051
    %v5439 = vunpack.c.l.b16 %v5052
    %v5440 = vunpack.c.h.b16 %v5052
    %v5441 = vunpack.c.l.b16 %v5053
    %v5442 = vunpack.c.h.b16 %v5053
    %v5443 = vunpack.c.l.b16 %v5054
    %v5444 = vunpack.c.h.b16 %v5054
    %v5445 = vunpack.c.l.b16 %v5055
    %v5446 = vunpack.c.h.b16 %v5055
    %v5447 = vunpack.c.l.b16 %v5056
    %v5448 = vunpack.c.h.b16 %v5056
    %v5449 = vunpack.c.l.b16 %v5057
    %v5450 = vunpack.c.h.b16 %v5057
    %v5451 = vunpack.c.l.b16 %v5058
    %v5452 = vunpack.c.h.b16 %v5058
    %v5453 = vunpack.c.l.b16 %v5059
    %v5454 = vunpack.c.h.b16 %v5059
    %v5455 = vunpack.c.l.b16 %v5060
    %v5456 = vunpack.c.h.b16 %v5060
    %v5457 = vpack.c.b16 %v5203, %v5201
    %v5458 = vpack.c.b16 %v5204, %v5202
    %v5459 = vpack.c.b16 %v5207, %v5205
    %v5460 = vpack.c.b16 %v5208, %v5206
    %v5461 = vpack.c.b16 %v5211, %v5209
    %v5462 = vpack.c.b16 %v5212, %v5210
    %v5463 = vpack.c.b16 %v5215, %v5213
    %v5464 = vpack.c.b16 %v5216, %v5214
    %v5465 = vpack.c.b16 %v5219, %v5217
    %v5466 = vpack.c.b16 %v5220, %v5218
    %v5467 = vpack.c.b16 %v5223, %v5221
    %v5468 = vpack.c.b16 %v5224, %v5222
    %v5469 = vpack.c.b16 %v5227, %v5225
    %v5470 = vpack.c.b16 %v5228, %v5226
    %v5471 = vpack.c.b16 %v5231, %v5229
    %v5472 = vpack.c.b16 %v5232, %v5230
    %v5473 = vpack.c.b16 %v5235, %v5233
    %v5474 = vpack.c.b16 %v5236, %v5234
    %v5475 = vpack.c.b16 %v5239, %v5237
    %v5476 = vpack.c.b16 %v5240, %v5238
    %v5477 = vpack.c.b16 %v5243, %v5241
    %v5478 = vpack.c.b16 %v5244, %v5242
    %v5479 = vpack.c.b16 %v5247, %v5245
    %v5480 = vpack.c.b16 %v5248, %v5246
    %v5481 = vpack.c.b16 %v5251, %v5249
    %v5482 = vpack.c.b16 %v5252, %v5250
    %v5483 = vpack.c.b16 %v5255, %v5253
    %v5484 = vpack.c.b16 %v5256, %v5254
    %v5485 = vpack.c.b16 %v5259, %v5257
    %v5486 = vpack.c.b16 %v5260, %v5258
    %v5487 = vpack.c.b16 %v5263, %v5261
    %v5488 = vpack.c.b16 %v5264, %v5262
    %v5489 = vpack.c.b16 %v5267, %v5265
    %v5490 = vpack.c.b16 %v5268, %v5266
    %v5491 = vpack.c.b16 %v5271, %v5269
    %v5492 = vpack.c.b16 %v5272, %v5270
    %v5493 = vpack.c.b16 %v5275, %v5273
    %v5494 = vpack.c.b16 %v5276, %v5274
    %v5495 = vpack.c.b16 %v5279, %v5277
    %v5496 = vpack.c.b16 %v5280, %v5278
    %v5497 = vpack.c.b16 %v5283, %v5281
    %v5498 = vpack.c.b16 %v5284, %v5282
    %v5499 = vpack.c.b16 %v5287, %v5285
    %v5500 = vpack.c.b16 %v5288, %v5286
    %v5501 = vpack.c.b16 %v5291, %v5289
    %v5502 = vpack.c.b16 %v5292, %v5290
    %v5503 = vpack.c.b16 %v5295, %v5293
    %v5504 = vpack.c.b16 %v5296, %v5294
    %v5505 = vpack.c.b16 %v5299, %v5297
    %v5506 = vpack.c.b16 %v5300, %v5298
    %v5507 = vpack.c.b16 %v5303, %v5301
    %v5508 = vpack.c.b16 %v5304, %v5302
    %v5509 = vpack.c.b16 %v5307, %v5305
    %v5510 = vpack.c.b16 %v5308, %v5306
    %v5511 = vpack.c.b16 %v5311, %v5309
    %v5512 = vpack.c.b16 %v5312, %v5310
    %v5513 = vpack.c.b16 %v5315, %v5313
    %v5514 = vpack.c.b16 %v5316, %v5314
    %v5515 = vpack.c.b16 %v5319, %v5317
    %v5516 = vpack.c.b16 %v5320, %v5318
    %v5517 = vpack.c.b16 %v5323, %v5321
    %v5518 = vpack.c.b16 %v5324, %v5322
    %v5519 = vpack.c.b16 %v5327, %v5325
    %v5520 = vpack.c.b16 %v5328, %v5326
    %v5521 = vpack.c.b16 %v5331, %v5329
    %v5522 = vpack.c.b16 %v5332, %v5330
    %v5523 = vpack.c.b16 %v5335, %v5333
    %v5524 = vpack.c.b16 %v5336, %v5334
    %v5525 = vpack.c.b16 %v5339, %v5337
    %v5526 = vpack.c.b16 %v5340, %v5338
    %v5527 = vpack.c.b16 %v5343, %v5341
    %v5528 = vpack.c.b16 %v5344, %v5342
    %v5529 = vpack.c.b16 %v5347, %v5345
    %v5530 = vpack.c.b16 %v5348, %v5346
    %v5531 = vpack.c.b16 %v5351, %v5349
    %v5532 = vpack.c.b16 %v5352, %v5350
    %v5533 = vpack.c.b16 %v5355, %v5353
    %v5534 = vpack.c.b16 %v5356, %v5354
    %v5535 = vpack.c.b16 %v5359, %v5357
    %v5536 = vpack.c.b16 %v5360, %v5358
    %v5537 = vpack.c.b16 %v5363, %v5361
    %v5538 = vpack.c.b16 %v5364, %v5362
    %v5539 = vpack.c.b16 %v5367, %v5365
    %v5540 = vpack.c.b16 %v5368, %v5366
    %v5541 = vpack.c.b16 %v5371, %v5369
    %v5542 = vpack.c.b16 %v5372, %v5370
    %v5543 = vpack.c.b16 %v5375, %v5373
    %v5544 = vpack.c.b16 %v5376, %v5374
    %v5545 = vpack.c.b16 %v5379, %v5377
    %v5546 = vpack.c.b16 %v5380, %v5378
    %v5547 = vpack.c.b16 %v5383, %v5381
    %v5548 = vpack.c.b16 %v5384, %v5382
    %v5549 = vpack.c.b16 %v5387, %v5385
    %v5550 = vpack.c.b16 %v5388, %v5386
    %v5551 = vpack.c.b16 %v5391, %v5389
    %v5552 = vpack.c.b16 %v5392, %v5390
    %v5553 = vpack.c.b16 %v5395, %v5393
    %v5554 = vpack.c.b16 %v5396, %v5394
    %v5555 = vpack.c.b16 %v5399, %v5397
    %v5556 = vpack.c.b16 %v5400, %v5398
    %v5557 = vpack.c.b16 %v5403, %v5401
    %v5558 = vpack.c.b16 %v5404, %v5402
    %v5559 = vpack.c.b16 %v5407, %v5405
    %v5560 = vpack.c.b16 %v5408, %v5406
    %v5561 = vpack.c.b16 %v5411, %v5409
    %v5562 = vpack.c.b16 %v5412, %v5410
    %v5563 = vpack.c.b16 %v5415, %v5413
    %v5564 = vpack.c.b16 %v5416, %v5414
    %v5565 = vpack.c.b16 %v5419, %v5417
    %v5566 = vpack.c.b16 %v5420, %v5418
    %v5567 = vpack.c.b16 %v5423, %v5421
    %v5568 = vpack.c.b16 %v5424, %v5422
    %v5569 = vpack.c.b16 %v5427, %v5425
    %v5570 = vpack.c.b16 %v5428, %v5426
    %v5571 = vpack.c.b16 %v5431, %v5429
    %v5572 = vpack.c.b16 %v5432, %v5430
    %v5573 = vpack.c.b16 %v5435, %v5433
    %v5574 = vpack.c.b16 %v5436, %v5434
    %v5575 = vpack.c.b16 %v5439, %v5437
    %v5576 = vpack.c.b16 %v5440, %v5438
    %v5577 = vpack.c.b16 %v5443, %v5441
    %v5578 = vpack.c.b16 %v5444, %v5442
    %v5579 = vpack.c.b16 %v5447, %v5445
    %v5580 = vpack.c.b16 %v5448, %v5446
    %v5581 = vpack.c.b16 %v5451, %v5449
    %v5582 = vpack.c.b16 %v5452, %v5450
    %v5583 = vpack.c.b16 %v5455, %v5453
    %v5584 = vpack.c.b16 %v5456, %v5454
    %5713 = vmatprep.subr.bf16.mxu0 %v5458
    %5714 = vmatpush1.bf16.msra.mxu0 %v5457
    %5715 = vmatprep.subr.bf16.mxu0 %v5460
    %5716 = vmatpush1.bf16.msra.mxu0 %v5459
    %5717 = vmatprep.subr.bf16.mxu0 %v5462
    %5718 = vmatpush1.bf16.msra.mxu0 %v5461
    %5719 = vmatprep.subr.bf16.mxu0 %v5464
    %5720 = vmatpush1.bf16.msra.mxu0 %v5463
    %5721 = vmatprep.subr.bf16.mxu0 %v5466
    %5722 = vmatpush1.bf16.msra.mxu0 %v5465
    %5723 = vmatprep.subr.bf16.mxu0 %v5468
    %5724 = vmatpush1.bf16.msra.mxu0 %v5467
    %5725 = vmatprep.subr.bf16.mxu0 %v5470
    %5726 = vmatpush1.bf16.msra.mxu0 %v5469
    %5727 = vmatprep.subr.bf16.mxu0 %v5472
    %5728 = vmatpush1.bf16.msra.mxu0 %v5471
    %5729 = vmatprep.subr.bf16.mxu0 %v5474
    %5730 = vmatpush1.bf16.msra.mxu0 %v5473
    %5731 = vmatprep.subr.bf16.mxu0 %v5476
    %5732 = vmatpush1.bf16.msra.mxu0 %v5475
    %5733 = vmatprep.subr.bf16.mxu0 %v5478
    %5734 = vmatpush1.bf16.msra.mxu0 %v5477
    %5735 = vmatprep.subr.bf16.mxu0 %v5480
    %5736 = vmatpush1.bf16.msra.mxu0 %v5479
    %5737 = vmatprep.subr.bf16.mxu0 %v5482
    %5738 = vmatpush1.bf16.msra.mxu0 %v5481
    %5739 = vmatprep.subr.bf16.mxu0 %v5484
    %5740 = vmatpush1.bf16.msra.mxu0 %v5483
    %5741 = vmatprep.subr.bf16.mxu0 %v5486
    %5742 = vmatpush1.bf16.msra.mxu0 %v5485
    %5743 = vmatprep.subr.bf16.mxu0 %v5488
    %5744 = vmatpush1.bf16.msra.mxu0 %v5487
    %5745 = vmatprep.mubr.bf16.mxu0 %v4926
    %5746 = vmatmul.mubr.bf16.gmra.mrb[0].mxu0 %v4925
    %v5747 = vpop.f32.mrb[0].mxu0
    %v5748 = vadd.f32 %v5066, %v5747
    %v5749 = vpop.f32.mrb[0].mxu0
    %v5750 = vadd.f32 %v5070, %v5749
    %v5751 = vpop.f32.mrb[0].mxu0
    %v5752 = vpop.f32.mrb[0].mxu0
    %5753 = vdwg.mxu0
    %5754 = vmatprep.subr.bf16.mxu0 %v5490
    %5755 = vmatpush1.bf16.msra.mxu0 %v5489
    %5756 = vmatprep.subr.bf16.mxu0 %v5492
    %5757 = vmatpush1.bf16.msra.mxu0 %v5491
    %5758 = vmatprep.subr.bf16.mxu0 %v5494
    %5759 = vmatpush1.bf16.msra.mxu0 %v5493
    %5760 = vmatprep.subr.bf16.mxu0 %v5496
    %5761 = vmatpush1.bf16.msra.mxu0 %v5495
    %5762 = vmatprep.subr.bf16.mxu0 %v5498
    %5763 = vmatpush1.bf16.msra.mxu0 %v5497
    %5764 = vmatprep.subr.bf16.mxu0 %v5500
    %5765 = vmatpush1.bf16.msra.mxu0 %v5499
    %5766 = vmatprep.subr.bf16.mxu0 %v5502
    %5767 = vmatpush1.bf16.msra.mxu0 %v5501
    %5768 = vmatprep.subr.bf16.mxu0 %v5504
    %5769 = vmatpush1.bf16.msra.mxu0 %v5503
    %5770 = vmatprep.subr.bf16.mxu0 %v5506
    %5771 = vmatpush1.bf16.msra.mxu0 %v5505
    %5772 = vmatprep.subr.bf16.mxu0 %v5508
    %5773 = vmatpush1.bf16.msra.mxu0 %v5507
    %5774 = vmatprep.subr.bf16.mxu0 %v5510
    %5775 = vmatpush1.bf16.msra.mxu0 %v5509
    %5776 = vmatprep.subr.bf16.mxu0 %v5512
    %5777 = vmatpush1.bf16.msra.mxu0 %v5511
    %5778 = vmatprep.subr.bf16.mxu0 %v5514
    %5779 = vmatpush1.bf16.msra.mxu0 %v5513
    %5780 = vmatprep.subr.bf16.mxu0 %v5516
    %5781 = vmatpush1.bf16.msra.mxu0 %v5515
    %5782 = vmatprep.subr.bf16.mxu0 %v5518
    %5783 = vmatpush1.bf16.msra.mxu0 %v5517
    %5784 = vmatprep.subr.bf16.mxu0 %v5520
    %5785 = vmatpush1.bf16.msra.mxu0 %v5519
    %5786 = vmatprep.mubr.bf16.mxu0 %v4928
    %5787 = vmatmul.mubr.bf16.gmra.mrb[0].mxu0 %v4927
    %v5788 = vpop.f32.mrb[0].mxu0
    %v5789 = vadd.f32 %v5748, %v5788
    %v5790 = vpop.f32.mrb[0].mxu0
    %v5791 = vadd.f32 %v5750, %v5790
    %v5792 = vpop.f32.mrb[0].mxu0
    %v5793 = vpop.f32.mrb[0].mxu0
    %5794 = vdwg.mxu0
    %5795 = vmatprep.subr.bf16.mxu0 %v5522
    %5796 = vmatpush1.bf16.msra.mxu0 %v5521
    %5797 = vmatprep.subr.bf16.mxu0 %v5524
    %5798 = vmatpush1.bf16.msra.mxu0 %v5523
    %5799 = vmatprep.subr.bf16.mxu0 %v5526
    %5800 = vmatpush1.bf16.msra.mxu0 %v5525
    %5801 = vmatprep.subr.bf16.mxu0 %v5528
    %5802 = vmatpush1.bf16.msra.mxu0 %v5527
    %5803 = vmatprep.subr.bf16.mxu0 %v5530
    %5804 = vmatpush1.bf16.msra.mxu0 %v5529
    %5805 = vmatprep.subr.bf16.mxu0 %v5532
    %5806 = vmatpush1.bf16.msra.mxu0 %v5531
    %5807 = vmatprep.subr.bf16.mxu0 %v5534
    %5808 = vmatpush1.bf16.msra.mxu0 %v5533
    %5809 = vmatprep.subr.bf16.mxu0 %v5536
    %5810 = vmatpush1.bf16.msra.mxu0 %v5535
    %5811 = vmatprep.subr.bf16.mxu0 %v5538
    %5812 = vmatpush1.bf16.msra.mxu0 %v5537
    %5813 = vmatprep.subr.bf16.mxu0 %v5540
    %5814 = vmatpush1.bf16.msra.mxu0 %v5539
    %5815 = vmatprep.subr.bf16.mxu0 %v5542
    %5816 = vmatpush1.bf16.msra.mxu0 %v5541
    %5817 = vmatprep.subr.bf16.mxu0 %v5544
    %5818 = vmatpush1.bf16.msra.mxu0 %v5543
    %5819 = vmatprep.subr.bf16.mxu0 %v5546
    %5820 = vmatpush1.bf16.msra.mxu0 %v5545
    %5821 = vmatprep.subr.bf16.mxu0 %v5548
    %5822 = vmatpush1.bf16.msra.mxu0 %v5547
    %5823 = vmatprep.subr.bf16.mxu0 %v5550
    %5824 = vmatpush1.bf16.msra.mxu0 %v5549
    %5825 = vmatprep.subr.bf16.mxu0 %v5552
    %5826 = vmatpush1.bf16.msra.mxu0 %v5551
    %5827 = vmatprep.mubr.bf16.mxu0 %v4930
    %5828 = vmatmul.mubr.bf16.gmra.mrb[0].mxu0 %v4929
    %v5829 = vpop.f32.mrb[0].mxu0
    %v5830 = vadd.f32 %v5789, %v5829
    %v5831 = vpop.f32.mrb[0].mxu0
    %v5832 = vadd.f32 %v5791, %v5831
    %v5833 = vpop.f32.mrb[0].mxu0
    %v5834 = vpop.f32.mrb[0].mxu0
    %5835 = vdwg.mxu0
    %5836 = vmatprep.subr.bf16.mxu0 %v5554
    %5837 = vmatpush1.bf16.msra.mxu0 %v5553
    %5838 = vmatprep.subr.bf16.mxu0 %v5556
    %5839 = vmatpush1.bf16.msra.mxu0 %v5555
    %5840 = vmatprep.subr.bf16.mxu0 %v5558
    %5841 = vmatpush1.bf16.msra.mxu0 %v5557
    %5842 = vmatprep.subr.bf16.mxu0 %v5560
    %5843 = vmatpush1.bf16.msra.mxu0 %v5559
    %5844 = vmatprep.subr.bf16.mxu0 %v5562
    %5845 = vmatpush1.bf16.msra.mxu0 %v5561
    %5846 = vmatprep.subr.bf16.mxu0 %v5564
    %5847 = vmatpush1.bf16.msra.mxu0 %v5563
    %5848 = vmatprep.subr.bf16.mxu0 %v5566
    %5849 = vmatpush1.bf16.msra.mxu0 %v5565
    %5850 = vmatprep.subr.bf16.mxu0 %v5568
    %5851 = vmatpush1.bf16.msra.mxu0 %v5567
    %5852 = vmatprep.subr.bf16.mxu0 %v5570
    %5853 = vmatpush1.bf16.msra.mxu0 %v5569
    %5854 = vmatprep.subr.bf16.mxu0 %v5572
    %5855 = vmatpush1.bf16.msra.mxu0 %v5571
    %5856 = vmatprep.subr.bf16.mxu0 %v5574
    %5857 = vmatpush1.bf16.msra.mxu0 %v5573
    %5858 = vmatprep.subr.bf16.mxu0 %v5576
    %5859 = vmatpush1.bf16.msra.mxu0 %v5575
    %5860 = vmatprep.subr.bf16.mxu0 %v5578
    %5861 = vmatpush1.bf16.msra.mxu0 %v5577
    %5862 = vmatprep.subr.bf16.mxu0 %v5580
    %5863 = vmatpush1.bf16.msra.mxu0 %v5579
    %5864 = vmatprep.subr.bf16.mxu0 %v5582
    %5865 = vmatpush1.bf16.msra.mxu0 %v5581
    %5866 = vmatprep.subr.bf16.mxu0 %v5584
    %5867 = vmatpush1.bf16.msra.mxu0 %v5583
    %5868 = vmatprep.mubr.bf16.mxu0 %v4932
    %5869 = vmatmul.mubr.bf16.gmra.mrb[0].mxu0 %v4931
    %v5870 = vpop.f32.mrb[0].mxu0
    %v5871 = vadd.f32 %v5830, %v5870
    %v5872 = vpop.f32.mrb[0].mxu0
    %v5873 = vadd.f32 %v5832, %v5872
    %v5874 = vpop.f32.mrb[0].mxu0
    %v5875 = vpop.f32.mrb[0].mxu0
    %5876 = vdwg.mxu0
    %5877 = vst [vmem:[#allocation17] sm:$0xff] %v5871
    %5878 = vst [vmem:[#allocation17 + $0x8] sm:$0xff] %v5873
    %v5879 = vpack.c.bf16 %v5871, %v5871
    %v5880 = vpack.c.bf16 %v5873, %v5873
    %v5881 = vld [vmem:[#allocation14] sm:$0xf]
    %v5882 = vld [vmem:[#allocation14 + $0x4] sm:$0xf]
    %v5883 = vld [vmem:[#allocation14 + $0x8] sm:$0xf]
    %v5884 = vld [vmem:[#allocation14 + $0xc] sm:$0xf]
    %v5885 = vld [vmem:[#allocation14 + $0x10] sm:$0xf]
    %v5886 = vld [vmem:[#allocation14 + $0x14] sm:$0xf]
    %v5887 = vld [vmem:[#allocation14 + $0x18] sm:$0xf]
    %v5888 = vld [vmem:[#allocation14 + $0x1c] sm:$0xf]
    %v5889 = vld [vmem:[#allocation14 + $0x20] sm:$0xf]
    %v5890 = vld [vmem:[#allocation14 + $0x24] sm:$0xf]
    %v5891 = vld [vmem:[#allocation14 + $0x28] sm:$0xf]
    %v5892 = vld [vmem:[#allocation14 + $0x2c] sm:$0xf]
    %v5893 = vld [vmem:[#allocation14 + $0x30] sm:$0xf]
    %v5894 = vld [vmem:[#allocation14 + $0x34] sm:$0xf]
    %v5895 = vld [vmem:[#allocation14 + $0x38] sm:$0xf]
    %v5896 = vld [vmem:[#allocation14 + $0x3c] sm:$0xf]
    %v5897 = vld [vmem:[#allocation14 + $0x40] sm:$0xf]
    %v5898 = vld [vmem:[#allocation14 + $0x44] sm:$0xf]
    %v5899 = vld [vmem:[#allocation14 + $0x48] sm:$0xf]
    %v5900 = vld [vmem:[#allocation14 + $0x4c] sm:$0xf]
    %v5901 = vld [vmem:[#allocation14 + $0x50] sm:$0xf]
    %v5902 = vld [vmem:[#allocation14 + $0x54] sm:$0xf]
    %v5903 = vld [vmem:[#allocation14 + $0x58] sm:$0xf]
    %v5904 = vld [vmem:[#allocation14 + $0x5c] sm:$0xf]
    %v5905 = vld [vmem:[#allocation14 + $0x60] sm:$0xf]
    %v5906 = vld [vmem:[#allocation14 + $0x64] sm:$0xf]
    %v5907 = vld [vmem:[#allocation14 + $0x68] sm:$0xf]
    %v5908 = vld [vmem:[#allocation14 + $0x6c] sm:$0xf]
    %v5909 = vld [vmem:[#allocation14 + $0x70] sm:$0xf]
    %v5910 = vld [vmem:[#allocation14 + $0x74] sm:$0xf]
    %v5911 = vld [vmem:[#allocation14 + $0x78] sm:$0xf]
    %v5912 = vld [vmem:[#allocation14 + $0x7c] sm:$0xf]
    %v5913 = vld [vmem:[#allocation16] sm:$0x1]
    %v5915 = vlaneseq
    %v5916 = vshrl.u32 %v5915, 7
    %v5917 = vsub.s32 0, %v5916
    %v5918 = vrot.slane %v5913, %v5917
    %v5952 = vunpack.c.l.b16 %v5881
    %v5953 = vunpack.c.l.b16 %v5882
    %v5954 = vunpack.c.l.b16 %v5883
    %v5955 = vunpack.c.l.b16 %v5884
    %v5956 = vunpack.c.l.b16 %v5885
    %v5957 = vunpack.c.l.b16 %v5886
    %v5958 = vunpack.c.l.b16 %v5887
    %v5959 = vunpack.c.l.b16 %v5888
    %v5960 = vunpack.c.l.b16 %v5889
    %v5961 = vunpack.c.l.b16 %v5890
    %v5962 = vunpack.c.l.b16 %v5891
    %v5963 = vunpack.c.l.b16 %v5892
    %v5964 = vunpack.c.l.b16 %v5893
    %v5965 = vunpack.c.l.b16 %v5894
    %v5966 = vunpack.c.l.b16 %v5895
    %v5967 = vunpack.c.l.b16 %v5896
    %v5968 = vunpack.c.l.b16 %v5897
    %v5969 = vunpack.c.l.b16 %v5898
    %v5970 = vunpack.c.l.b16 %v5899
    %v5971 = vunpack.c.l.b16 %v5900
    %v5972 = vunpack.c.l.b16 %v5901
    %v5973 = vunpack.c.l.b16 %v5902
    %v5974 = vunpack.c.l.b16 %v5903
    %v5975 = vunpack.c.l.b16 %v5904
    %v5976 = vunpack.c.l.b16 %v5905
    %v5977 = vunpack.c.l.b16 %v5906
    %v5978 = vunpack.c.l.b16 %v5907
    %v5979 = vunpack.c.l.b16 %v5908
    %v5980 = vunpack.c.l.b16 %v5909
    %v5981 = vunpack.c.l.b16 %v5910
    %v5982 = vunpack.c.l.b16 %v5911
    %v5983 = vunpack.c.l.b16 %v5912
    %v5984 = vpack.c.b16 %v5953, %v5952
    %v5985 = vpack.c.b16 %v5955, %v5954
    %v5986 = vpack.c.b16 %v5957, %v5956
    %v5987 = vpack.c.b16 %v5959, %v5958
    %v5988 = vpack.c.b16 %v5961, %v5960
    %v5989 = vpack.c.b16 %v5963, %v5962
    %v5990 = vpack.c.b16 %v5965, %v5964
    %v5991 = vpack.c.b16 %v5967, %v5966
    %v5992 = vpack.c.b16 %v5969, %v5968
    %v5993 = vpack.c.b16 %v5971, %v5970
    %v5994 = vpack.c.b16 %v5973, %v5972
    %v5995 = vpack.c.b16 %v5975, %v5974
    %v5996 = vpack.c.b16 %v5977, %v5976
    %v5997 = vpack.c.b16 %v5979, %v5978
    %v5998 = vpack.c.b16 %v5981, %v5980
    %v5999 = vpack.c.b16 %v5983, %v5982
    %6016 = vmatprep.subr.bf16.mxu0 0
    %6017 = vmatpush1.bf16.msra.mxu0 %v5984
    %6018 = vmatprep.subr.bf16.mxu0 0
    %6019 = vmatpush1.bf16.msra.mxu0 %v5985
    %6020 = vmatprep.subr.bf16.mxu0 0
    %6021 = vmatpush1.bf16.msra.mxu0 %v5986
    %6022 = vmatprep.subr.bf16.mxu0 0
    %6023 = vmatpush1.bf16.msra.mxu0 %v5987
    %6024 = vmatprep.subr.bf16.mxu0 0
    %6025 = vmatpush1.bf16.msra.mxu0 %v5988
    %6026 = vmatprep.subr.bf16.mxu0 0
    %6027 = vmatpush1.bf16.msra.mxu0 %v5989
    %6028 = vmatprep.subr.bf16.mxu0 0
    %6029 = vmatpush1.bf16.msra.mxu0 %v5990
    %6030 = vmatprep.subr.bf16.mxu0 0
    %6031 = vmatpush1.bf16.msra.mxu0 %v5991
    %6032 = vmatprep.subr.bf16.mxu0 0
    %6033 = vmatpush1.bf16.msra.mxu0 %v5992
    %6034 = vmatprep.subr.bf16.mxu0 0
    %6035 = vmatpush1.bf16.msra.mxu0 %v5993
    %6036 = vmatprep.subr.bf16.mxu0 0
    %6037 = vmatpush1.bf16.msra.mxu0 %v5994
    %6038 = vmatprep.subr.bf16.mxu0 0
    %6039 = vmatpush1.bf16.msra.mxu0 %v5995
    %6040 = vmatprep.subr.bf16.mxu0 0
    %6041 = vmatpush1.bf16.msra.mxu0 %v5996
    %6042 = vmatprep.subr.bf16.mxu0 0
    %6043 = vmatpush1.bf16.msra.mxu0 %v5997
    %6044 = vmatprep.subr.bf16.mxu0 0
    %6045 = vmatpush1.bf16.msra.mxu0 %v5998
    %6046 = vmatprep.subr.bf16.mxu0 0
    %6047 = vmatpush1.bf16.msra.mxu0 %v5999
    %6048 = vmatprep.mubr.bf16.mxu0 %v5880
    %6049 = vmatmul.mubr.bf16.gmra.mrb[0].mxu0 %v5879
    %v6050 = vpop.f32.mrb[0].mxu0
    %v6051 = vadd.f32 %v5918, %v6050
    %v6052 = vpop.f32.mrb[0].mxu0
    %v6053 = vpop.f32.mrb[0].mxu0
    %v6054 = vpop.f32.mrb[0].mxu0
    %6055 = vdwg.mxu0
    %6056 = vst [vmem:[#allocation18] sm:$0xff] %v6051
    // Predicated region
    $region74: #{tpu_custom_call.1} parent=1 // pred_check
      _
    $region75: #{tpu_custom_call.1} parent=1 // pred_check_branch
      %6058 = sbr.rel (0) target = $region77
    $region76: #{tpu_custom_call.1} parent=1 // pred_region
      %s6060 = ssub.s32 256, 256
      %6061 = vsyncadd [#allocation4], %s6060
      %s6063 = sshll.u32 [#allocation17], 4
      %s6064 = int_to_ptr.vmem [resolvable:$true] %s6063
      %6066 = dma.vmem_to_hbm [thread:$0]  %s6064, 256, %s9, [#allocation4]
    $region77: #{tpu_custom_call.1} parent=1 // pred_fallthru
      _
    // Predicated region
    $region78: #{tpu_custom_call.1} parent=1 // pred_check
      _
    $region79: #{tpu_custom_call.1} parent=1 // pred_check_branch
      %6068 = sbr.rel (0) target = $region81
    $region80: #{tpu_custom_call.1} parent=1 // pred_region
      %s6070 = ssub.s32 128, 128
      %6071 = vsyncadd [#allocation19], %s6070
      %s6073 = sshll.u32 [#allocation18], 4
      %s6074 = int_to_ptr.vmem [resolvable:$true] %s6073
      %6076 = dma.vmem_to_hbm [thread:$0]  %s6074, 128, %s10, [#allocation19]
    $region81: #{tpu_custom_call.1} parent=1 // pred_fallthru
      _
    // Predicated region
    $region82: #{tpu_custom_call.1} parent=1 // pred_check
      _
    $region83: #{tpu_custom_call.1} parent=1 // pred_check_branch
      %6078 = sbr.rel (0) target = $region85
    $region84: #{tpu_custom_call.1} parent=1 // pred_region
      %6079 = dma.done [#allocation4], 256
    $region85: #{tpu_custom_call.1} parent=1 // pred_fallthru
      _
    // Predicated region
    $region86: #{tpu_custom_call.1} parent=1 // pred_check
      _
    $region87: #{tpu_custom_call.1} parent=1 // pred_check_branch
      %6081 = sbr.rel (0) target = $region89
    $region88: #{tpu_custom_call.1} parent=1 // pred_region
      %6082 = dma.done [#allocation19], 128
    $region89: #{tpu_custom_call.1} parent=1 // pred_fallthru
      _
    %6083 = vsyncpa [#allocation3], 1
    %6084 = vsyncpa [#allocation6], 1
    %6085 = vsyncpa [#allocation9], 1
    %6086 = vsyncpa [#allocation12], 1
    %6087 = vsyncpa [#allocation15], 1
    %6088 = vsyncpa [#allocation4], 1
    %6089 = vsyncpa [#allocation19], 1

</llo_original>
